<compile_context>
chip_gen: v5e
topology: v5e:2x2
jax: 0.10.0
libtpu: 0.0.40
codegen_flags: <defaults>
</compile_context>

<pallas_src>
import functools
import math

import jax
import jax.numpy as jnp
from jax.experimental import pallas as pl
from jax.experimental.pallas import tpu as pltpu

EPS = 1e-5


def filternum_multiresBlock(ref_filters):
    alpha = 1.67
    a = int(ref_filters * alpha * 0.167)
    b = int(ref_filters * alpha * 0.333)
    c = int(ref_filters * alpha * 0.5)
    return [a, b, c, a + b + c]


def _pad128(n):
    return ((n + 127) // 128) * 128


# ------------------------------- Pallas kernel -------------------------------

def _block_kernel(x_ref, w1_ref, w2_ref, w3_ref, wid_ref, b1_ref, b2_ref,
                  bf_ref, o_ref, *, H, W, TH):
    """Fused multiresBottleneck for one (TH x W) spatial tile.

    x_ref : (TH+4, W, 9*CIN) bf16 tap-packed, halo'd input window
    w1_ref: (9*CIN, CA)  bf16 conv1 (BN1 folded)           -> o1 cols [0, a)
    w2_ref: (3,3,CA,CB)  bf16 conv2 (BN2 folded)           -> o2 cols [0, b)
    w3_ref: (3,3,CB,CPAD) bf16 conv3 (BN3 folded) + centre-tap identity that
            places o2 into concat cols [a, a+b); output cols [a+b, allf)
    wid_ref:(9*CIN, CPAD) bf16 identity 1x1 conv in the centre-tap rows
    b1/b2 : (1,CA)/(1,CB) f32 folded pre-ReLU biases
    bf_ref: (1,CPAD)      f32 folded bn3 + identity-bn bias (added once)
    o_ref : (TH, W, CPAD) bf16 output tile (concat layout, lane dense)
    """
    t = pl.program_id(1)
    r0 = t * TH                              # first output row (global)
    R1, R2 = TH + 4, TH + 2                  # o1 / o2 rows (incl. halo)
    KP = x_ref.shape[-1]                     # 9 * CIN
    CA = w1_ref.shape[-1]
    CB = w2_ref.shape[-1]
    CPAD = w3_ref.shape[-1]

    # ---- conv1 + folded BN + ReLU: a single (R1*W, 9*CIN)x(9*CIN, CA) matmul
    xw = x_ref[...].reshape(R1 * W, KP)
    o1 = jnp.dot(xw, w1_ref[...], preferred_element_type=jnp.float32)
    o1 = jnp.maximum(o1 + b1_ref[...], 0.0).reshape(R1, W, CA)
    # halo rows outside the image are conv2's zero padding -> zero them
    g1 = jax.lax.broadcasted_iota(jnp.int32, (R1, W, CA), 0) + (r0 - 2)
    o1 = jnp.where(jnp.logical_and(g1 >= 0, g1 < H), o1, 0.0)
    o1 = o1.astype(jnp.bfloat16)

    def dx_slabs(v, rows, ch):
        # three dx-shifted, flattened copies (zero columns at the edges);
        # the dy shift later becomes an aligned row slice of these slabs.
        z = jnp.zeros((rows, 1, ch), v.dtype)
        s0 = jnp.concatenate([z, v[:, :W - 1, :]], axis=1).reshape(rows * W, ch)
        s1 = v.reshape(rows * W, ch)
        s2 = jnp.concatenate([v[:, 1:, :], z], axis=1).reshape(rows * W, ch)
        return (s0, s1, s2)

    def conv3x3(slabs, w_ref, rout):
        acc = None
        for dy in range(3):
            for dx in range(3):
                lhs = slabs[dx][dy * W:(dy + rout) * W]
                p = jnp.dot(lhs, w_ref[dy, dx],
                            preferred_element_type=jnp.float32)
                acc = p if acc is None else acc + p
        return acc

    # ---- conv2 + folded BN + ReLU (slab-local output channels [0, b)) ------
    o2 = conv3x3(dx_slabs(o1, R1, CA), w2_ref, R2)
    o2 = jnp.maximum(o2 + b2_ref[...], 0.0).reshape(R2, W, CB)
    g2 = jax.lax.broadcasted_iota(jnp.int32, (R2, W, CB), 0) + (r0 - 1)
    o2 = jnp.where(jnp.logical_and(g2 >= 0, g2 < H), o2, 0.0)
    o2 = o2.astype(jnp.bfloat16)

    # ---- conv3 (augmented weight also places o2 at concat cols [a, a+b)) ---
    out = conv3x3(dx_slabs(o2, R2, CB), w3_ref, TH)        # (TH*W, CPAD) f32

    # ---- identity 1x1 conv on the centre window + combined folded biases ---
    xc = x_ref[pl.ds(2, TH)].reshape(TH * W, KP)
    out = out + jnp.dot(xc, wid_ref[...], preferred_element_type=jnp.float32)
    out = out + bf_ref[...]

    # ---- o1's concat contribution (cols [0, a) live in the first CA lanes) -
    o1c = o1.reshape(R1 * W, CA)[2 * W:(2 + TH) * W]
    if CPAD == CA:
        out = out + o1c
    else:
        o1w = jnp.concatenate(
            [o1c.astype(jnp.float32),
             jnp.zeros((TH * W, CPAD - CA), jnp.float32)], axis=1)
        out = out + o1w

    # residual add + final ReLU; one lane-dense store of the whole tile
    o_ref[...] = jnp.maximum(out, 0.0).reshape(TH, W, CPAD).astype(o_ref.dtype)


_VMEM = pl.BlockSpec(memory_space=pltpu.MemorySpace.VMEM)


def _vmem_limit_bytes():
    # Generation-aware scoped-VMEM limit (v7x has only 64 MiB physical; our
    # working set is tiny so ~60% of physical is comfortable everywhere).
    cap = 64 * 1024 * 1024
    try:
        cap = int(pltpu.get_tpu_info().vmem_capacity_bytes)
    except Exception:
        pass
    return max(16 * 1024 * 1024, min(int(cap * 0.6), 100 * 1024 * 1024))


# ------------------------------- wrapper --------------------------------------

@functools.partial(jax.jit, static_argnames=("allf", "row_tile"))
def multires_bottleneck(x_nchw, params, *, allf, row_tile=32):
    """Forward pass of multiresBottleneck.  x: (N, Cin, H, W) -> (N, allf, H, W)."""
    N, CIN, H, W = x_nchw.shape
    KP = 9 * CIN
    CA = params["w1"].shape[-1]
    CB = params["w2"].shape[-1]
    CPAD = params["w3"].shape[-1]

    # row tile = largest divisor of H <= row_tile (never fall back to TH = H
    # unless H itself is small); keeps matmul M = TH*W in the 256-512 range.
    TH = max(d for d in range(1, min(row_tile, H) + 1) if H % d == 0)
    T = H // TH
    R1 = TH + 4

    # Input prep (one fused XLA pass over the small-channel input): NCHW ->
    # NHWC bf16, tap-pack conv1's 3x3 window into the channel axis (K = 9*CIN)
    # and pre-gather per-tile halo'd row windows so the kernel's input block is
    # a small non-overlapping tile (no whole-image VMEM residency).
    # TODO(synk): for large CIN (9*CIN >> 128) a non-tap-packed path would be
    # preferable; this module is used with small in_channels.
    x = jnp.transpose(x_nchw, (0, 2, 3, 1)).astype(jnp.bfloat16)
    xp = jnp.pad(x, ((0, 0), (3, 3), (1, 1), (0, 0)))
    taps = [xp[:, dy:dy + H + 4, dx:dx + W, :]
            for dy in range(3) for dx in range(3)]
    packed = jnp.concatenate(taps, axis=-1)                    # (N, H+4, W, 9*CIN)
    x_tiles = jnp.stack([packed[:, t * TH:t * TH + R1] for t in range(T)],
                        axis=1)                                # (N, T, TH+4, W, 9*CIN)

    kernel = functools.partial(_block_kernel, H=H, W=W, TH=TH)

    M1, M2, M3 = N * T * R1 * W, N * T * (TH + 2) * W, N * T * TH * W
    flops = 2 * (M1 * KP * CA + M3 * KP * CPAD
                 + 9 * M2 * CA * CB + 9 * M3 * CB * CPAD)
    bytes_accessed = (N * T * R1 * W * KP) * 2 + N * H * W * CPAD * 2 + sum(
        int(p.size) * p.dtype.itemsize for p in params.values())

    out = pl.pallas_call(
        kernel,
        out_shape=jax.ShapeDtypeStruct((N, H, W, CPAD), jnp.bfloat16),
        grid=(N, T),
        in_specs=[
            # per-tile halo'd input window, auto-pipelined across (n, t)
            pl.BlockSpec((None, None, R1, W, KP), lambda n, t: (n, t, 0, 0, 0)),
            _VMEM,   # w1   (9*CIN, CA)
            _VMEM,   # w2   (3, 3, CA, CB)
            _VMEM,   # w3   (3, 3, CB, CPAD)  (augmented with o2 placement)
            _VMEM,   # wid  (9*CIN, CPAD)
            _VMEM,   # b1   (1, CA)
            _VMEM,   # b2   (1, CB)
            _VMEM,   # bf   (1, CPAD)
        ],
        out_specs=pl.BlockSpec((None, TH, W, CPAD), lambda n, t: (n, t, 0, 0)),
        compiler_params=pltpu.CompilerParams(
            dimension_semantics=("parallel", "parallel"),  # megacore sharding
            vmem_limit_bytes=_vmem_limit_bytes(),
        ),
        cost_estimate=pl.CostEstimate(flops=flops, transcendentals=0,
                                      bytes_accessed=bytes_accessed),
    )(x_tiles, params["w1"], params["w2"], params["w3"], params["wid"],
      params["b1"], params["b2"], params["bf"])

    # TODO(synk): fused consumers should take the NHWC / lane-padded bf16 tile
    # directly instead of paying this slice + NHWC->NCHW transpose.
    out = out[:, :, :, :allf].astype(jnp.float32)
    return jnp.transpose(out, (0, 3, 1, 2))


# ------------------------------- parameters -----------------------------------

def init_raw_params(key, in_channels, ref_filters):
    """Raw f32 conv weights/biases with PyTorch-default init."""
    a, b, c, allf = filternum_multiresBlock(ref_filters)
    kid, k1, k2, k3 = jax.random.split(key, 4)

    def conv_init(k, cin, cout, ksize):
        kw, kb = jax.random.split(k)
        bound = 1.0 / math.sqrt(cin * ksize * ksize)
        w = jax.random.uniform(kw, (ksize, ksize, cin, cout), jnp.float32, -bound, bound)
        bias = jax.random.uniform(kb, (cout,), jnp.float32, -bound, bound)
        return w, bias

    w1, b1 = conv_init(k1, in_channels, a, 3)
    w2, b2 = conv_init(k2, a, b, 3)
    w3, b3 = conv_init(k3, b, c, 3)
    wi, bi = conv_init(kid, in_channels, allf, 1)
    return {"w1": w1, "b1": b1, "w2": w2, "b2": b2, "w3": w3, "b3": b3,
            "wi": wi, "bi": bi}


def pack_params(raw, in_channels, ref_filters):
    """Fold eval-mode BN into the weights and pack them into the kernel layouts."""
    a, b, c, allf = filternum_multiresBlock(ref_filters)
    cin = in_channels
    CA, CB, CPAD = _pad128(a), _pad128(b), _pad128(allf)
    # Eval-mode BatchNorm with PyTorch-default stats: gamma=1, beta=0, mean=0,
    # var=1 -> y = x * s + bias * s.
    # TODO(synk): plumb real trained gamma/beta/running stats into this fold.
    s = 1.0 / math.sqrt(1.0 + EPS)

    # conv1: tap-packed rows ((dy*3+dx)*cin + ci), BN1 scale folded.
    w1 = jnp.zeros((9 * cin, CA), jnp.float32).at[:, :a].set(
        (raw["w1"] * s).reshape(9 * cin, a))
    # identity 1x1 conv lives in the centre-tap rows of the packed layout.
    wid = jnp.zeros((9 * cin, CPAD), jnp.float32).at[4 * cin:5 * cin, :allf].set(
        raw["wi"][0, 0] * s)
    # conv2: slab-local (CA -> CB), BN2 scale folded.
    w2 = jnp.zeros((3, 3, CA, CB), jnp.float32).at[:, :, :a, :b].set(raw["w2"] * s)
    # conv3: output directly in concat cols [a+b, allf); centre tap augmented
    # with an identity that places o2 into concat cols [a, a+b).
    w3 = jnp.zeros((3, 3, CB, CPAD), jnp.float32).at[:, :, :b, a + b:allf].set(
        raw["w3"] * s)
    w3 = w3.at[1, 1, jnp.arange(b), a + jnp.arange(b)].add(1.0)

    b1 = jnp.zeros((1, CA), jnp.float32).at[0, :a].set(raw["b1"] * s)
    b2 = jnp.zeros((1, CB), jnp.float32).at[0, :b].set(raw["b2"] * s)
    bf = jnp.zeros((1, CPAD), jnp.float32)
    bf = bf.at[0, a + b:allf].add(raw["b3"] * s)      # folded bn3 bias
    bf = bf.at[0, :allf].add(raw["bi"] * s)           # folded identity-bn bias

    return {"w1": w1.astype(jnp.bfloat16), "w2": w2.astype(jnp.bfloat16),
            "w3": w3.astype(jnp.bfloat16), "wid": wid.astype(jnp.bfloat16),
            "b1": b1, "b2": b2, "bf": bf}


# ------------------------------- reference -------------------------------------

def reference_block(x_nhwc, raw):
    """Pure-JAX f32 reference (eval-mode BN fold) for validation."""
    s = 1.0 / math.sqrt(1.0 + EPS)

    def conv_bn(x, w, bias, pad):
        y = jax.lax.conv_general_dilated(
            x, w, window_strides=(1, 1), padding=[(pad, pad), (pad, pad)],
            dimension_numbers=("NHWC", "HWIO", "NHWC"),
            precision=jax.lax.Precision.HIGHEST)
        return (y + bias) * s

    iden = conv_bn(x_nhwc, raw["wi"], raw["bi"], 0)
    o1 = jax.nn.relu(conv_bn(x_nhwc, raw["w1"], raw["b1"], 1))
    o2 = jax.nn.relu(conv_bn(o1, raw["w2"], raw["b2"], 1))
    o3 = conv_bn(o2, raw["w3"], raw["b3"], 1)
    return jax.nn.relu(jnp.concatenate([o1, o2, o3], axis=-1) + iden)


# ------------------------------- main -------------------------------------------

if __name__ == "__main__":
    key = jax.random.PRNGKey(0)
    kx, kp = jax.random.split(key)

    N, C, H, W = 2, 4, 16, 16
    REF_FILTERS = 32
    a, b, c, allf = filternum_multiresBlock(REF_FILTERS)

    x = jax.random.normal(kx, (N, C, H, W), jnp.float32)
    raw = init_raw_params(kp, C, REF_FILTERS)
    params = pack_params(raw, C, REF_FILTERS)

    out = multires_bottleneck(x, params, allf=allf, row_tile=32)
    out = jax.block_until_ready(out)

    assert out.shape == (N, allf, H, W), out.shape
    assert bool(jnp.all(jnp.isfinite(out)))

    # validate against an f32 XLA reference (bf16 MXU inputs / bf16 output
    # store -> loose absolute tolerance; values are O(1)).
    ref = reference_block(jnp.transpose(x, (0, 2, 3, 1)), raw)
    ref = jnp.transpose(ref, (0, 3, 1, 2))
    err = float(jnp.max(jnp.abs(out - ref)))
    assert err < 0.2, f"max abs error vs reference: {err}"

    print("KERNEL_OK")
</pallas_src>

<mosaic_0001>
module attributes {stable_mosaic.version = 11 : i64} {
  func.func @_block_kernel(%arg0: i32, %arg1: i32, %arg2: memref<1x1x20x16x36xbf16, #tpu.memory_space<vmem>>, %arg3: memref<36x128xbf16, #tpu.memory_space<vmem>>, %arg4: memref<3x3x128x128xbf16, #tpu.memory_space<vmem>>, %arg5: memref<3x3x128x128xbf16, #tpu.memory_space<vmem>>, %arg6: memref<36x128xbf16, #tpu.memory_space<vmem>>, %arg7: memref<1x128xf32, #tpu.memory_space<vmem>>, %arg8: memref<1x128xf32, #tpu.memory_space<vmem>>, %arg9: memref<1x128xf32, #tpu.memory_space<vmem>>, %arg10: memref<1x16x16x128xbf16, #tpu.memory_space<vmem>>) attributes {dimension_semantics = [#tpu.dimension_semantics<parallel>, #tpu.dimension_semantics<parallel>], iteration_bounds = array<i64: 2, 1>, scalar_prefetch = 0 : i64, scratch_operands = 0 : i64, tpu.core_type = #tpu.core_type<tc>, window_params = [{transform_indices = @transform_0, window_bounds = array<i64: 1, 1, 20, 16, 36>}, {pipeline_mode = #tpu.pipeline_mode<synchronous>, transform_indices = @transform_1, window_bounds = array<i64: 36, 128>}, {pipeline_mode = #tpu.pipeline_mode<synchronous>, transform_indices = @transform_2, window_bounds = array<i64: 3, 3, 128, 128>}, {pipeline_mode = #tpu.pipeline_mode<synchronous>, transform_indices = @transform_3, window_bounds = array<i64: 3, 3, 128, 128>}, {pipeline_mode = #tpu.pipeline_mode<synchronous>, transform_indices = @transform_4, window_bounds = array<i64: 36, 128>}, {pipeline_mode = #tpu.pipeline_mode<synchronous>, transform_indices = @transform_5, window_bounds = array<i64: 1, 128>}, {pipeline_mode = #tpu.pipeline_mode<synchronous>, transform_indices = @transform_6, window_bounds = array<i64: 1, 128>}, {pipeline_mode = #tpu.pipeline_mode<synchronous>, transform_indices = @transform_7, window_bounds = array<i64: 1, 128>}, {transform_indices = @transform_8, window_bounds = array<i64: 1, 16, 16, 128>}]} {
    %c16_i32 = arith.constant 16 : i32
    %0 = arith.muli %arg1, %c16_i32 : i32
    %c0 = arith.constant 0 : index
    %c0_0 = arith.constant 0 : index
    %c0_1 = arith.constant 0 : index
    %c0_2 = arith.constant 0 : index
    %c0_3 = arith.constant 0 : index
    %1 = vector.load %arg2[%c0, %c0_0, %c0_1, %c0_2, %c0_3] : memref<1x1x20x16x36xbf16, #tpu.memory_space<vmem>>, vector<1x1x20x16x36xbf16>
    %2 = vector.shape_cast %1 : vector<1x1x20x16x36xbf16> to vector<20x16x36xbf16>
    %3 = vector.shape_cast %2 : vector<20x16x36xbf16> to vector<320x36xbf16>
    %c0_4 = arith.constant 0 : index
    %c0_5 = arith.constant 0 : index
    %4 = vector.load %arg3[%c0_4, %c0_5] : memref<36x128xbf16, #tpu.memory_space<vmem>>, vector<36x128xbf16>
    %cst = arith.constant dense<0.000000e+00> : vector<320x128xf32>
    %5 = tpu.matmul %3, %4, %cst {dimension_numbers = #tpu.dot_dimension_numbers<[1], [0], [0], [1], [0, 0, 1, 1], [], []>} : vector<320x36xbf16>, vector<36x128xbf16>, vector<320x128xf32> -> vector<320x128xf32>
    %c0_6 = arith.constant 0 : index
    %c0_7 = arith.constant 0 : index
    %6 = vector.load %arg7[%c0_6, %c0_7] : memref<1x128xf32, #tpu.memory_space<vmem>>, vector<1x128xf32>
    %7 = vector.broadcast %6 : vector<1x128xf32> to vector<320x128xf32>
    %8 = arith.addf %5, %7 : vector<320x128xf32>
    %cst_8 = arith.constant 0.000000e+00 : f32
    %9 = vector.broadcast %cst_8 : f32 to vector<320x128xf32>
    %10 = arith.maximumf %8, %9 : vector<320x128xf32>
    %11 = vector.shape_cast %10 : vector<320x128xf32> to vector<20x16x128xf32>
    %12 = tpu.iota {dimensions = array<i32: 0>} : vector<20x16x128xi32>
    %c2_i32 = arith.constant 2 : i32
    %13 = arith.subi %0, %c2_i32 : i32
    %14 = vector.broadcast %13 : i32 to vector<20x16x128xi32>
    %15 = arith.addi %12, %14 : vector<20x16x128xi32>
    %c0_i32 = arith.constant 0 : i32
    %16 = vector.broadcast %c0_i32 : i32 to vector<20x16x128xi32>
    %17 = arith.cmpi sge, %15, %16 : vector<20x16x128xi32>
    %c16_i32_9 = arith.constant 16 : i32
    %18 = vector.broadcast %c16_i32_9 : i32 to vector<20x16x128xi32>
    %19 = arith.cmpi slt, %15, %18 : vector<20x16x128xi32>
    %20 = arith.andi %17, %19 : vector<20x16x128xi1>
    %cst_10 = arith.constant 0.000000e+00 : f32
    %21 = vector.broadcast %cst_10 : f32 to vector<20x16x128xf32>
    %22 = arith.select %20, %11, %21 : vector<20x16x128xi1>, vector<20x16x128xf32>
    %23 = arith.truncf %22 : vector<20x16x128xf32> to vector<20x16x128xbf16>
    %cst_11 = arith.constant 0.000000e+00 : bf16
    %24 = vector.broadcast %cst_11 : bf16 to vector<20x1x128xbf16>
    %25 = vector.extract_strided_slice %23 {offsets = [0, 0, 0], sizes = [20, 15, 128], strides = [1, 1, 1]} : vector<20x16x128xbf16> to vector<20x15x128xbf16>
    %26 = tpu.concatenate %24, %25 in 1 : vector<20x1x128xbf16>, vector<20x15x128xbf16> -> vector<20x16x128xbf16>
    %27 = vector.shape_cast %26 : vector<20x16x128xbf16> to vector<320x128xbf16>
    %28 = vector.shape_cast %23 : vector<20x16x128xbf16> to vector<320x128xbf16>
    %29 = vector.extract_strided_slice %23 {offsets = [0, 1, 0], sizes = [20, 15, 128], strides = [1, 1, 1]} : vector<20x16x128xbf16> to vector<20x15x128xbf16>
    %30 = tpu.concatenate %29, %24 in 1 : vector<20x15x128xbf16>, vector<20x1x128xbf16> -> vector<20x16x128xbf16>
    %31 = vector.shape_cast %30 : vector<20x16x128xbf16> to vector<320x128xbf16>
    %32 = vector.extract_strided_slice %27 {offsets = [0, 0], sizes = [288, 128], strides = [1, 1]} : vector<320x128xbf16> to vector<288x128xbf16>
    %c0_12 = arith.constant 0 : index
    %c0_13 = arith.constant 0 : index
    %c0_14 = arith.constant 0 : index
    %c0_15 = arith.constant 0 : index
    %33 = vector.load %arg4[%c0_12, %c0_13, %c0_14, %c0_15] : memref<3x3x128x128xbf16, #tpu.memory_space<vmem>>, vector<1x1x128x128xbf16>
    %34 = vector.shape_cast %33 : vector<1x1x128x128xbf16> to vector<128x128xbf16>
    %cst_16 = arith.constant dense<0.000000e+00> : vector<288x128xf32>
    %35 = tpu.matmul %32, %34, %cst_16 {dimension_numbers = #tpu.dot_dimension_numbers<[1], [0], [0], [1], [0, 0, 1, 1], [], []>} : vector<288x128xbf16>, vector<128x128xbf16>, vector<288x128xf32> -> vector<288x128xf32>
    %36 = vector.extract_strided_slice %28 {offsets = [0, 0], sizes = [288, 128], strides = [1, 1]} : vector<320x128xbf16> to vector<288x128xbf16>
    %c0_17 = arith.constant 0 : index
    %c1 = arith.constant 1 : index
    %c0_18 = arith.constant 0 : index
    %c0_19 = arith.constant 0 : index
    %37 = vector.load %arg4[%c0_17, %c1, %c0_18, %c0_19] : memref<3x3x128x128xbf16, #tpu.memory_space<vmem>>, vector<1x1x128x128xbf16>
    %38 = vector.shape_cast %37 : vector<1x1x128x128xbf16> to vector<128x128xbf16>
    %cst_20 = arith.constant dense<0.000000e+00> : vector<288x128xf32>
    %39 = tpu.matmul %36, %38, %cst_20 {dimension_numbers = #tpu.dot_dimension_numbers<[1], [0], [0], [1], [0, 0, 1, 1], [], []>} : vector<288x128xbf16>, vector<128x128xbf16>, vector<288x128xf32> -> vector<288x128xf32>
    %40 = arith.addf %35, %39 : vector<288x128xf32>
    %41 = vector.extract_strided_slice %31 {offsets = [0, 0], sizes = [288, 128], strides = [1, 1]} : vector<320x128xbf16> to vector<288x128xbf16>
    %c0_21 = arith.constant 0 : index
    %c2 = arith.constant 2 : index
    %c0_22 = arith.constant 0 : index
    %c0_23 = arith.constant 0 : index
    %42 = vector.load %arg4[%c0_21, %c2, %c0_22, %c0_23] : memref<3x3x128x128xbf16, #tpu.memory_space<vmem>>, vector<1x1x128x128xbf16>
    %43 = vector.shape_cast %42 : vector<1x1x128x128xbf16> to vector<128x128xbf16>
    %cst_24 = arith.constant dense<0.000000e+00> : vector<288x128xf32>
    %44 = tpu.matmul %41, %43, %cst_24 {dimension_numbers = #tpu.dot_dimension_numbers<[1], [0], [0], [1], [0, 0, 1, 1], [], []>} : vector<288x128xbf16>, vector<128x128xbf16>, vector<288x128xf32> -> vector<288x128xf32>
    %45 = arith.addf %40, %44 : vector<288x128xf32>
    %46 = vector.extract_strided_slice %27 {offsets = [16, 0], sizes = [288, 128], strides = [1, 1]} : vector<320x128xbf16> to vector<288x128xbf16>
    %c1_25 = arith.constant 1 : index
    %c0_26 = arith.constant 0 : index
    %c0_27 = arith.constant 0 : index
    %c0_28 = arith.constant 0 : index
    %47 = vector.load %arg4[%c1_25, %c0_26, %c0_27, %c0_28] : memref<3x3x128x128xbf16, #tpu.memory_space<vmem>>, vector<1x1x128x128xbf16>
    %48 = vector.shape_cast %47 : vector<1x1x128x128xbf16> to vector<128x128xbf16>
    %cst_29 = arith.constant dense<0.000000e+00> : vector<288x128xf32>
    %49 = tpu.matmul %46, %48, %cst_29 {dimension_numbers = #tpu.dot_dimension_numbers<[1], [0], [0], [1], [0, 0, 1, 1], [], []>} : vector<288x128xbf16>, vector<128x128xbf16>, vector<288x128xf32> -> vector<288x128xf32>
    %50 = arith.addf %45, %49 : vector<288x128xf32>
    %51 = vector.extract_strided_slice %28 {offsets = [16, 0], sizes = [288, 128], strides = [1, 1]} : vector<320x128xbf16> to vector<288x128xbf16>
    %c1_30 = arith.constant 1 : index
    %c1_31 = arith.constant 1 : index
    %c0_32 = arith.constant 0 : index
    %c0_33 = arith.constant 0 : index
    %52 = vector.load %arg4[%c1_30, %c1_31, %c0_32, %c0_33] : memref<3x3x128x128xbf16, #tpu.memory_space<vmem>>, vector<1x1x128x128xbf16>
    %53 = vector.shape_cast %52 : vector<1x1x128x128xbf16> to vector<128x128xbf16>
    %cst_34 = arith.constant dense<0.000000e+00> : vector<288x128xf32>
    %54 = tpu.matmul %51, %53, %cst_34 {dimension_numbers = #tpu.dot_dimension_numbers<[1], [0], [0], [1], [0, 0, 1, 1], [], []>} : vector<288x128xbf16>, vector<128x128xbf16>, vector<288x128xf32> -> vector<288x128xf32>
    %55 = arith.addf %50, %54 : vector<288x128xf32>
    %56 = vector.extract_strided_slice %31 {offsets = [16, 0], sizes = [288, 128], strides = [1, 1]} : vector<320x128xbf16> to vector<288x128xbf16>
    %c1_35 = arith.constant 1 : index
    %c2_36 = arith.constant 2 : index
    %c0_37 = arith.constant 0 : index
    %c0_38 = arith.constant 0 : index
    %57 = vector.load %arg4[%c1_35, %c2_36, %c0_37, %c0_38] : memref<3x3x128x128xbf16, #tpu.memory_space<vmem>>, vector<1x1x128x128xbf16>
    %58 = vector.shape_cast %57 : vector<1x1x128x128xbf16> to vector<128x128xbf16>
    %cst_39 = arith.constant dense<0.000000e+00> : vector<288x128xf32>
    %59 = tpu.matmul %56, %58, %cst_39 {dimension_numbers = #tpu.dot_dimension_numbers<[1], [0], [0], [1], [0, 0, 1, 1], [], []>} : vector<288x128xbf16>, vector<128x128xbf16>, vector<288x128xf32> -> vector<288x128xf32>
    %60 = arith.addf %55, %59 : vector<288x128xf32>
    %61 = vector.extract_strided_slice %27 {offsets = [32, 0], sizes = [288, 128], strides = [1, 1]} : vector<320x128xbf16> to vector<288x128xbf16>
    %c2_40 = arith.constant 2 : index
    %c0_41 = arith.constant 0 : index
    %c0_42 = arith.constant 0 : index
    %c0_43 = arith.constant 0 : index
    %62 = vector.load %arg4[%c2_40, %c0_41, %c0_42, %c0_43] : memref<3x3x128x128xbf16, #tpu.memory_space<vmem>>, vector<1x1x128x128xbf16>
    %63 = vector.shape_cast %62 : vector<1x1x128x128xbf16> to vector<128x128xbf16>
    %cst_44 = arith.constant dense<0.000000e+00> : vector<288x128xf32>
    %64 = tpu.matmul %61, %63, %cst_44 {dimension_numbers = #tpu.dot_dimension_numbers<[1], [0], [0], [1], [0, 0, 1, 1], [], []>} : vector<288x128xbf16>, vector<128x128xbf16>, vector<288x128xf32> -> vector<288x128xf32>
    %65 = arith.addf %60, %64 : vector<288x128xf32>
    %66 = vector.extract_strided_slice %28 {offsets = [32, 0], sizes = [288, 128], strides = [1, 1]} : vector<320x128xbf16> to vector<288x128xbf16>
    %c2_45 = arith.constant 2 : index
    %c1_46 = arith.constant 1 : index
    %c0_47 = arith.constant 0 : index
    %c0_48 = arith.constant 0 : index
    %67 = vector.load %arg4[%c2_45, %c1_46, %c0_47, %c0_48] : memref<3x3x128x128xbf16, #tpu.memory_space<vmem>>, vector<1x1x128x128xbf16>
    %68 = vector.shape_cast %67 : vector<1x1x128x128xbf16> to vector<128x128xbf16>
    %cst_49 = arith.constant dense<0.000000e+00> : vector<288x128xf32>
    %69 = tpu.matmul %66, %68, %cst_49 {dimension_numbers = #tpu.dot_dimension_numbers<[1], [0], [0], [1], [0, 0, 1, 1], [], []>} : vector<288x128xbf16>, vector<128x128xbf16>, vector<288x128xf32> -> vector<288x128xf32>
    %70 = arith.addf %65, %69 : vector<288x128xf32>
    %71 = vector.extract_strided_slice %31 {offsets = [32, 0], sizes = [288, 128], strides = [1, 1]} : vector<320x128xbf16> to vector<288x128xbf16>
    %c2_50 = arith.constant 2 : index
    %c2_51 = arith.constant 2 : index
    %c0_52 = arith.constant 0 : index
    %c0_53 = arith.constant 0 : index
    %72 = vector.load %arg4[%c2_50, %c2_51, %c0_52, %c0_53] : memref<3x3x128x128xbf16, #tpu.memory_space<vmem>>, vector<1x1x128x128xbf16>
    %73 = vector.shape_cast %72 : vector<1x1x128x128xbf16> to vector<128x128xbf16>
    %cst_54 = arith.constant dense<0.000000e+00> : vector<288x128xf32>
    %74 = tpu.matmul %71, %73, %cst_54 {dimension_numbers = #tpu.dot_dimension_numbers<[1], [0], [0], [1], [0, 0, 1, 1], [], []>} : vector<288x128xbf16>, vector<128x128xbf16>, vector<288x128xf32> -> vector<288x128xf32>
    %75 = arith.addf %70, %74 : vector<288x128xf32>
    %c0_55 = arith.constant 0 : index
    %c0_56 = arith.constant 0 : index
    %76 = vector.load %arg8[%c0_55, %c0_56] : memref<1x128xf32, #tpu.memory_space<vmem>>, vector<1x128xf32>
    %77 = vector.broadcast %76 : vector<1x128xf32> to vector<288x128xf32>
    %78 = arith.addf %75, %77 : vector<288x128xf32>
    %cst_57 = arith.constant 0.000000e+00 : f32
    %79 = vector.broadcast %cst_57 : f32 to vector<288x128xf32>
    %80 = arith.maximumf %78, %79 : vector<288x128xf32>
    %81 = vector.shape_cast %80 : vector<288x128xf32> to vector<18x16x128xf32>
    %82 = tpu.iota {dimensions = array<i32: 0>} : vector<18x16x128xi32>
    %c1_i32 = arith.constant 1 : i32
    %83 = arith.subi %0, %c1_i32 : i32
    %84 = vector.broadcast %83 : i32 to vector<18x16x128xi32>
    %85 = arith.addi %82, %84 : vector<18x16x128xi32>
    %c0_i32_58 = arith.constant 0 : i32
    %86 = vector.broadcast %c0_i32_58 : i32 to vector<18x16x128xi32>
    %87 = arith.cmpi sge, %85, %86 : vector<18x16x128xi32>
    %c16_i32_59 = arith.constant 16 : i32
    %88 = vector.broadcast %c16_i32_59 : i32 to vector<18x16x128xi32>
    %89 = arith.cmpi slt, %85, %88 : vector<18x16x128xi32>
    %90 = arith.andi %87, %89 : vector<18x16x128xi1>
    %cst_60 = arith.constant 0.000000e+00 : f32
    %91 = vector.broadcast %cst_60 : f32 to vector<18x16x128xf32>
    %92 = arith.select %90, %81, %91 : vector<18x16x128xi1>, vector<18x16x128xf32>
    %93 = arith.truncf %92 : vector<18x16x128xf32> to vector<18x16x128xbf16>
    %cst_61 = arith.constant 0.000000e+00 : bf16
    %94 = vector.broadcast %cst_61 : bf16 to vector<18x1x128xbf16>
    %95 = vector.extract_strided_slice %93 {offsets = [0, 0, 0], sizes = [18, 15, 128], strides = [1, 1, 1]} : vector<18x16x128xbf16> to vector<18x15x128xbf16>
    %96 = tpu.concatenate %94, %95 in 1 : vector<18x1x128xbf16>, vector<18x15x128xbf16> -> vector<18x16x128xbf16>
    %97 = vector.shape_cast %96 : vector<18x16x128xbf16> to vector<288x128xbf16>
    %98 = vector.shape_cast %93 : vector<18x16x128xbf16> to vector<288x128xbf16>
    %99 = vector.extract_strided_slice %93 {offsets = [0, 1, 0], sizes = [18, 15, 128], strides = [1, 1, 1]} : vector<18x16x128xbf16> to vector<18x15x128xbf16>
    %100 = tpu.concatenate %99, %94 in 1 : vector<18x15x128xbf16>, vector<18x1x128xbf16> -> vector<18x16x128xbf16>
    %101 = vector.shape_cast %100 : vector<18x16x128xbf16> to vector<288x128xbf16>
    %102 = vector.extract_strided_slice %97 {offsets = [0, 0], sizes = [256, 128], strides = [1, 1]} : vector<288x128xbf16> to vector<256x128xbf16>
    %c0_62 = arith.constant 0 : index
    %c0_63 = arith.constant 0 : index
    %c0_64 = arith.constant 0 : index
    %c0_65 = arith.constant 0 : index
    %103 = vector.load %arg5[%c0_62, %c0_63, %c0_64, %c0_65] : memref<3x3x128x128xbf16, #tpu.memory_space<vmem>>, vector<1x1x128x128xbf16>
    %104 = vector.shape_cast %103 : vector<1x1x128x128xbf16> to vector<128x128xbf16>
    %cst_66 = arith.constant dense<0.000000e+00> : vector<256x128xf32>
    %105 = tpu.matmul %102, %104, %cst_66 {dimension_numbers = #tpu.dot_dimension_numbers<[1], [0], [0], [1], [0, 0, 1, 1], [], []>} : vector<256x128xbf16>, vector<128x128xbf16>, vector<256x128xf32> -> vector<256x128xf32>
    %106 = vector.extract_strided_slice %98 {offsets = [0, 0], sizes = [256, 128], strides = [1, 1]} : vector<288x128xbf16> to vector<256x128xbf16>
    %c0_67 = arith.constant 0 : index
    %c1_68 = arith.constant 1 : index
    %c0_69 = arith.constant 0 : index
    %c0_70 = arith.constant 0 : index
    %107 = vector.load %arg5[%c0_67, %c1_68, %c0_69, %c0_70] : memref<3x3x128x128xbf16, #tpu.memory_space<vmem>>, vector<1x1x128x128xbf16>
    %108 = vector.shape_cast %107 : vector<1x1x128x128xbf16> to vector<128x128xbf16>
    %cst_71 = arith.constant dense<0.000000e+00> : vector<256x128xf32>
    %109 = tpu.matmul %106, %108, %cst_71 {dimension_numbers = #tpu.dot_dimension_numbers<[1], [0], [0], [1], [0, 0, 1, 1], [], []>} : vector<256x128xbf16>, vector<128x128xbf16>, vector<256x128xf32> -> vector<256x128xf32>
    %110 = arith.addf %105, %109 : vector<256x128xf32>
    %111 = vector.extract_strided_slice %101 {offsets = [0, 0], sizes = [256, 128], strides = [1, 1]} : vector<288x128xbf16> to vector<256x128xbf16>
    %c0_72 = arith.constant 0 : index
    %c2_73 = arith.constant 2 : index
    %c0_74 = arith.constant 0 : index
    %c0_75 = arith.constant 0 : index
    %112 = vector.load %arg5[%c0_72, %c2_73, %c0_74, %c0_75] : memref<3x3x128x128xbf16, #tpu.memory_space<vmem>>, vector<1x1x128x128xbf16>
    %113 = vector.shape_cast %112 : vector<1x1x128x128xbf16> to vector<128x128xbf16>
    %cst_76 = arith.constant dense<0.000000e+00> : vector<256x128xf32>
    %114 = tpu.matmul %111, %113, %cst_76 {dimension_numbers = #tpu.dot_dimension_numbers<[1], [0], [0], [1], [0, 0, 1, 1], [], []>} : vector<256x128xbf16>, vector<128x128xbf16>, vector<256x128xf32> -> vector<256x128xf32>
    %115 = arith.addf %110, %114 : vector<256x128xf32>
    %116 = vector.extract_strided_slice %97 {offsets = [16, 0], sizes = [256, 128], strides = [1, 1]} : vector<288x128xbf16> to vector<256x128xbf16>
    %c1_77 = arith.constant 1 : index
    %c0_78 = arith.constant 0 : index
    %c0_79 = arith.constant 0 : index
    %c0_80 = arith.constant 0 : index
    %117 = vector.load %arg5[%c1_77, %c0_78, %c0_79, %c0_80] : memref<3x3x128x128xbf16, #tpu.memory_space<vmem>>, vector<1x1x128x128xbf16>
    %118 = vector.shape_cast %117 : vector<1x1x128x128xbf16> to vector<128x128xbf16>
    %cst_81 = arith.constant dense<0.000000e+00> : vector<256x128xf32>
    %119 = tpu.matmul %116, %118, %cst_81 {dimension_numbers = #tpu.dot_dimension_numbers<[1], [0], [0], [1], [0, 0, 1, 1], [], []>} : vector<256x128xbf16>, vector<128x128xbf16>, vector<256x128xf32> -> vector<256x128xf32>
    %120 = arith.addf %115, %119 : vector<256x128xf32>
    %121 = vector.extract_strided_slice %98 {offsets = [16, 0], sizes = [256, 128], strides = [1, 1]} : vector<288x128xbf16> to vector<256x128xbf16>
    %c1_82 = arith.constant 1 : index
    %c1_83 = arith.constant 1 : index
    %c0_84 = arith.constant 0 : index
    %c0_85 = arith.constant 0 : index
    %122 = vector.load %arg5[%c1_82, %c1_83, %c0_84, %c0_85] : memref<3x3x128x128xbf16, #tpu.memory_space<vmem>>, vector<1x1x128x128xbf16>
    %123 = vector.shape_cast %122 : vector<1x1x128x128xbf16> to vector<128x128xbf16>
    %cst_86 = arith.constant dense<0.000000e+00> : vector<256x128xf32>
    %124 = tpu.matmul %121, %123, %cst_86 {dimension_numbers = #tpu.dot_dimension_numbers<[1], [0], [0], [1], [0, 0, 1, 1], [], []>} : vector<256x128xbf16>, vector<128x128xbf16>, vector<256x128xf32> -> vector<256x128xf32>
    %125 = arith.addf %120, %124 : vector<256x128xf32>
    %126 = vector.extract_strided_slice %101 {offsets = [16, 0], sizes = [256, 128], strides = [1, 1]} : vector<288x128xbf16> to vector<256x128xbf16>
    %c1_87 = arith.constant 1 : index
    %c2_88 = arith.constant 2 : index
    %c0_89 = arith.constant 0 : index
    %c0_90 = arith.constant 0 : index
    %127 = vector.load %arg5[%c1_87, %c2_88, %c0_89, %c0_90] : memref<3x3x128x128xbf16, #tpu.memory_space<vmem>>, vector<1x1x128x128xbf16>
    %128 = vector.shape_cast %127 : vector<1x1x128x128xbf16> to vector<128x128xbf16>
    %cst_91 = arith.constant dense<0.000000e+00> : vector<256x128xf32>
    %129 = tpu.matmul %126, %128, %cst_91 {dimension_numbers = #tpu.dot_dimension_numbers<[1], [0], [0], [1], [0, 0, 1, 1], [], []>} : vector<256x128xbf16>, vector<128x128xbf16>, vector<256x128xf32> -> vector<256x128xf32>
    %130 = arith.addf %125, %129 : vector<256x128xf32>
    %131 = vector.extract_strided_slice %97 {offsets = [32, 0], sizes = [256, 128], strides = [1, 1]} : vector<288x128xbf16> to vector<256x128xbf16>
    %c2_92 = arith.constant 2 : index
    %c0_93 = arith.constant 0 : index
    %c0_94 = arith.constant 0 : index
    %c0_95 = arith.constant 0 : index
    %132 = vector.load %arg5[%c2_92, %c0_93, %c0_94, %c0_95] : memref<3x3x128x128xbf16, #tpu.memory_space<vmem>>, vector<1x1x128x128xbf16>
    %133 = vector.shape_cast %132 : vector<1x1x128x128xbf16> to vector<128x128xbf16>
    %cst_96 = arith.constant dense<0.000000e+00> : vector<256x128xf32>
    %134 = tpu.matmul %131, %133, %cst_96 {dimension_numbers = #tpu.dot_dimension_numbers<[1], [0], [0], [1], [0, 0, 1, 1], [], []>} : vector<256x128xbf16>, vector<128x128xbf16>, vector<256x128xf32> -> vector<256x128xf32>
    %135 = arith.addf %130, %134 : vector<256x128xf32>
    %136 = vector.extract_strided_slice %98 {offsets = [32, 0], sizes = [256, 128], strides = [1, 1]} : vector<288x128xbf16> to vector<256x128xbf16>
    %c2_97 = arith.constant 2 : index
    %c1_98 = arith.constant 1 : index
    %c0_99 = arith.constant 0 : index
    %c0_100 = arith.constant 0 : index
    %137 = vector.load %arg5[%c2_97, %c1_98, %c0_99, %c0_100] : memref<3x3x128x128xbf16, #tpu.memory_space<vmem>>, vector<1x1x128x128xbf16>
    %138 = vector.shape_cast %137 : vector<1x1x128x128xbf16> to vector<128x128xbf16>
    %cst_101 = arith.constant dense<0.000000e+00> : vector<256x128xf32>
    %139 = tpu.matmul %136, %138, %cst_101 {dimension_numbers = #tpu.dot_dimension_numbers<[1], [0], [0], [1], [0, 0, 1, 1], [], []>} : vector<256x128xbf16>, vector<128x128xbf16>, vector<256x128xf32> -> vector<256x128xf32>
    %140 = arith.addf %135, %139 : vector<256x128xf32>
    %141 = vector.extract_strided_slice %101 {offsets = [32, 0], sizes = [256, 128], strides = [1, 1]} : vector<288x128xbf16> to vector<256x128xbf16>
    %c2_102 = arith.constant 2 : index
    %c2_103 = arith.constant 2 : index
    %c0_104 = arith.constant 0 : index
    %c0_105 = arith.constant 0 : index
    %142 = vector.load %arg5[%c2_102, %c2_103, %c0_104, %c0_105] : memref<3x3x128x128xbf16, #tpu.memory_space<vmem>>, vector<1x1x128x128xbf16>
    %143 = vector.shape_cast %142 : vector<1x1x128x128xbf16> to vector<128x128xbf16>
    %cst_106 = arith.constant dense<0.000000e+00> : vector<256x128xf32>
    %144 = tpu.matmul %141, %143, %cst_106 {dimension_numbers = #tpu.dot_dimension_numbers<[1], [0], [0], [1], [0, 0, 1, 1], [], []>} : vector<256x128xbf16>, vector<128x128xbf16>, vector<256x128xf32> -> vector<256x128xf32>
    %145 = arith.addf %140, %144 : vector<256x128xf32>
    %c0_107 = arith.constant 0 : index
    %c0_108 = arith.constant 0 : index
    %c2_109 = arith.constant 2 : index
    %c0_110 = arith.constant 0 : index
    %c0_111 = arith.constant 0 : index
    %146 = vector.load %arg2[%c0_107, %c0_108, %c2_109, %c0_110, %c0_111] : memref<1x1x20x16x36xbf16, #tpu.memory_space<vmem>>, vector<1x1x16x16x36xbf16>
    %147 = vector.shape_cast %146 : vector<1x1x16x16x36xbf16> to vector<16x16x36xbf16>
    %148 = vector.shape_cast %147 : vector<16x16x36xbf16> to vector<256x36xbf16>
    %c0_112 = arith.constant 0 : index
    %c0_113 = arith.constant 0 : index
    %149 = vector.load %arg6[%c0_112, %c0_113] : memref<36x128xbf16, #tpu.memory_space<vmem>>, vector<36x128xbf16>
    %cst_114 = arith.constant dense<0.000000e+00> : vector<256x128xf32>
    %150 = tpu.matmul %148, %149, %cst_114 {dimension_numbers = #tpu.dot_dimension_numbers<[1], [0], [0], [1], [0, 0, 1, 1], [], []>} : vector<256x36xbf16>, vector<36x128xbf16>, vector<256x128xf32> -> vector<256x128xf32>
    %151 = arith.addf %145, %150 : vector<256x128xf32>
    %c0_115 = arith.constant 0 : index
    %c0_116 = arith.constant 0 : index
    %152 = vector.load %arg9[%c0_115, %c0_116] : memref<1x128xf32, #tpu.memory_space<vmem>>, vector<1x128xf32>
    %153 = vector.broadcast %152 : vector<1x128xf32> to vector<256x128xf32>
    %154 = arith.addf %151, %153 : vector<256x128xf32>
    %155 = vector.shape_cast %23 : vector<20x16x128xbf16> to vector<320x128xbf16>
    %156 = vector.extract_strided_slice %155 {offsets = [32, 0], sizes = [256, 128], strides = [1, 1]} : vector<320x128xbf16> to vector<256x128xbf16>
    %157 = arith.extf %156 : vector<256x128xbf16> to vector<256x128xf32>
    %158 = arith.addf %154, %157 : vector<256x128xf32>
    %cst_117 = arith.constant 0.000000e+00 : f32
    %159 = vector.broadcast %cst_117 : f32 to vector<256x128xf32>
    %160 = arith.maximumf %158, %159 : vector<256x128xf32>
    %161 = vector.shape_cast %160 : vector<256x128xf32> to vector<16x16x128xf32>
    %162 = arith.truncf %161 : vector<16x16x128xf32> to vector<16x16x128xbf16>
    %c0_118 = arith.constant 0 : index
    %c0_119 = arith.constant 0 : index
    %c0_120 = arith.constant 0 : index
    %c0_121 = arith.constant 0 : index
    %163 = vector.load %arg10[%c0_118, %c0_119, %c0_120, %c0_121] : memref<1x16x16x128xbf16, #tpu.memory_space<vmem>>, vector<1x16x16x128xbf16>
    %164 = vector.shape_cast %163 : vector<1x16x16x128xbf16> to vector<16x16x128xbf16>
    %165 = vector.shape_cast %162 : vector<16x16x128xbf16> to vector<1x16x16x128xbf16>
    tpu.vector_store %arg10[%c0_118, %c0_119, %c0_120, %c0_121], %165 {strides = array<i32>} : memref<1x16x16x128xbf16, #tpu.memory_space<vmem>>, vector<1x16x16x128xbf16>,
    return
  }
  func.func @transform_0(%arg0: i32, %arg1: i32) -> (i32, i32, i32, i32, i32) {
    %c0_i32 = arith.constant 0 : i32
    %c0_i32_0 = arith.constant 0 : i32
    %c0_i32_1 = arith.constant 0 : i32
    %c0_i32_2 = arith.constant 0 : i32
    return %arg0, %arg1, %c0_i32, %c0_i32_0, %c0_i32_1 : i32, i32, i32, i32, i32
  }
  func.func @transform_1(%arg0: i32, %arg1: i32) -> (i32, i32) {
    %c0_i32 = arith.constant 0 : i32
    %c0_i32_0 = arith.constant 0 : i32
    %c0_i32_1 = arith.constant 0 : i32
    return %c0_i32, %c0_i32_0 : i32, i32
  }
  func.func @transform_2(%arg0: i32, %arg1: i32) -> (i32, i32, i32, i32) {
    %c0_i32 = arith.constant 0 : i32
    %c0_i32_0 = arith.constant 0 : i32
    %c0_i32_1 = arith.constant 0 : i32
    %c0_i32_2 = arith.constant 0 : i32
    %c0_i32_3 = arith.constant 0 : i32
    return %c0_i32, %c0_i32_0, %c0_i32_1, %c0_i32_2 : i32, i32, i32, i32
  }
  func.func @transform_3(%arg0: i32, %arg1: i32) -> (i32, i32, i32, i32) {
    %c0_i32 = arith.constant 0 : i32
    %c0_i32_0 = arith.constant 0 : i32
    %c0_i32_1 = arith.constant 0 : i32
    %c0_i32_2 = arith.constant 0 : i32
    %c0_i32_3 = arith.constant 0 : i32
    return %c0_i32, %c0_i32_0, %c0_i32_1, %c0_i32_2 : i32, i32, i32, i32
  }
  func.func @transform_4(%arg0: i32, %arg1: i32) -> (i32, i32) {
    %c0_i32 = arith.constant 0 : i32
    %c0_i32_0 = arith.constant 0 : i32
    %c0_i32_1 = arith.constant 0 : i32
    return %c0_i32, %c0_i32_0 : i32, i32
  }
  func.func @transform_5(%arg0: i32, %arg1: i32) -> (i32, i32) {
    %c0_i32 = arith.constant 0 : i32
    %c0_i32_0 = arith.constant 0 : i32
    %c0_i32_1 = arith.constant 0 : i32
    return %c0_i32, %c0_i32_0 : i32, i32
  }
  func.func @transform_6(%arg0: i32, %arg1: i32) -> (i32, i32) {
    %c0_i32 = arith.constant 0 : i32
    %c0_i32_0 = arith.constant 0 : i32
    %c0_i32_1 = arith.constant 0 : i32
    return %c0_i32, %c0_i32_0 : i32, i32
  }
  func.func @transform_7(%arg0: i32, %arg1: i32) -> (i32, i32) {
    %c0_i32 = arith.constant 0 : i32
    %c0_i32_0 = arith.constant 0 : i32
    %c0_i32_1 = arith.constant 0 : i32
    return %c0_i32, %c0_i32_0 : i32, i32
  }
  func.func @transform_8(%arg0: i32, %arg1: i32) -> (i32, i32, i32, i32) {
    %c0_i32 = arith.constant 0 : i32
    %c0_i32_0 = arith.constant 0 : i32
    %c0_i32_1 = arith.constant 0 : i32
    return %arg0, %arg1, %c0_i32, %c0_i32_0 : i32, i32, i32, i32
  }
}

</mosaic_0001>

<llo_original>
// kernel: multires_bottleneck.1
$region0: #{multires_bottleneck.1}
  #allocation0 [shape = 'u32[]', space=smem, size = 0x4, offset = 0x4, fixed_abs, tag = 'smem constant byte address 0x4 - core index']
  #allocation1 [shape = 'u32[72,128]{1,0:T(1,128)}', space=vmem, size = 0x9000, scoped, tag = 'internal scratch']
  %s0 = inlined_call_operand.vmem [shape: bf16[2,1,20,16,36], index: 0, kind: input, shape index: {}]
  %s1 = inlined_call_operand.vmem [shape: bf16[36,128], index: 1, kind: input, shape index: {}]
  %s2 = inlined_call_operand.vmem [shape: bf16[3,3,128,128], index: 2, kind: input, shape index: {}]
  %s3 = inlined_call_operand.vmem [shape: bf16[3,3,128,128], index: 3, kind: input, shape index: {}]
  %s4 = inlined_call_operand.vmem [shape: bf16[36,128], index: 4, kind: input, shape index: {}]
  %s5 = inlined_call_operand.vmem [shape: f32[1,128], index: 5, kind: input, shape index: {}]
  %s6 = inlined_call_operand.vmem [shape: f32[1,128], index: 6, kind: input, shape index: {}]
  %s7 = inlined_call_operand.vmem [shape: f32[1,128], index: 7, kind: input, shape index: {}]
  %s8 = inlined_call_operand.vmem [shape: bf16[2,16,16,128], index: 8, kind: output, shape index: {}]
  %s9 = sld [smem:[#allocation0]]
  $region65: #{multires_bottleneck.1} parent=0
    _
  %s11 = ssub.s32 1, %s9
  %s12 = scalar_select 0, %s11, %s9
  loop: start=0, step=1, limit=4
  $region2: #{multires_bottleneck.1} parent=0 // loop_pre_header
    _
  $region3: #{multires_bottleneck.1} parent=0 // loop_header
    %s14 = sphi 0, %s18
    %p15 = scmp.ge.s32.totalorder %s14, 4
    %s21 = sphi 0, %s33
    %s22 = sphi 0, %s29
    %s23 = sphi 0, %s21
    %s24 = sphi 0, %s22
    %s25 = sphi 0, %s23
    %s26 = sphi 0, %s24
    %s38 = sphi 0, %s40
    %s41 = sphi 0, %s38
    %s42 = sphi 0, %s41
    %s58 = sphi 0, %s42
    %s62 = sphi 0, %s62
    %s64 = sphi 0, %s62
    %s65 = sphi 0, %s64
    %s79 = sphi 0, %s65
    %s83 = sphi 0, %s83
    %s85 = sphi 0, %s83
    %s86 = sphi 0, %s85
    %s100 = sphi 0, %s86
    %s104 = sphi 0, %s104
    %s106 = sphi 0, %s104
    %s107 = sphi 0, %s106
    %s121 = sphi 0, %s107
    %s125 = sphi 0, %s125
    %s127 = sphi 0, %s125
    %s128 = sphi 0, %s127
    %s142 = sphi 0, %s128
    %s146 = sphi 0, %s146
    %s148 = sphi 0, %s146
    %s149 = sphi 0, %s148
    %s163 = sphi 0, %s149
    %s167 = sphi 0, %s167
    %s169 = sphi 0, %s167
    %s170 = sphi 0, %s169
    %s184 = sphi 0, %s170
    %s188 = sphi 0, %s188
    %s190 = sphi 0, %s188
    %s191 = sphi 0, %s190
    %s205 = sphi 0, %s191
    %s213 = sphi 0, %s215
    %s216 = sphi 0, %s213
    %s217 = sphi 0, %s216
    %s233 = sphi 0, %s217
  $region4: #{multires_bottleneck.1} parent=0 // loop_header_branch
    %17 = sbr.rel (%p15) target = $region8
  $region5: #{multires_bottleneck.1} parent=0 // loop_body
    %s19 = ssub.s32 %s14, 1
    %s20 = ssub.s32 %s14, 2
    %s27 = sadd.s32 1, %s22
    %p28 = scmp.ge.s32.totalorder %s27, 1
    %s29 = scalar_select %p28, 0, %s27
    %s30 = sadd.s32 1, %s21
    %s31 = scalar_select %p28, %s30, %s21
    %p32 = scmp.ge.s32.totalorder %s31, 2
    %s33 = scalar_select %p32, 0, %s31
    %s34 = ssub.s32 %s21, %s33
    %s35 = ssub.s32 %s22, %s29
    %s36 = sor.u32 %s34, %s35
    %p37 = scmp.eq.s32.totalorder %s36, 0
    %s39 = sadd.s32 %s38, 1
    %s40 = scalar_select %p37, %s38, %s39
    %p43 = pneg %p37
    %p44 = scmp.eq.s32.totalorder %s14, 1
    %p45 = por %p43, %p44
    %p46 = scmp.ne.s32.totalorder %s38, %s41
    %p47 = scmp.eq.s32.totalorder %s14, 0
    %p48 = por %p46, %p47
    %p49 = scmp.ne.s32.totalorder %s38, %s41
    %p50 = scmp.eq.s32.totalorder %s19, 1
    %p51 = por %p49, %p50
    %p52 = scmp.ne.s32.totalorder %s41, %s42
    %p53 = scmp.eq.s32.totalorder %s19, 0
    %p54 = por %p52, %p53
    %p55 = scmp.ne.s32.totalorder %s41, %s42
    %p56 = scmp.eq.s32.totalorder %s20, 1
    %p57 = por %p55, %p56
    %p59 = scmp.ne.s32.totalorder %s42, %s58
    %p60 = scmp.eq.s32.totalorder %s20, 0
    %p61 = por %p59, %p60
    %s63 = sadd.s32 %s62, 1
    %p66 = scmp.eq.s32.totalorder %s14, 1
    %p67 = scmp.ne.s32.totalorder %s62, %s64
    %p68 = scmp.eq.s32.totalorder %s14, 0
    %p69 = por %p67, %p68
    %p70 = scmp.ne.s32.totalorder %s62, %s64
    %p71 = scmp.eq.s32.totalorder %s19, 1
    %p72 = por %p70, %p71
    %p73 = scmp.ne.s32.totalorder %s64, %s65
    %p74 = scmp.eq.s32.totalorder %s19, 0
    %p75 = por %p73, %p74
    %p76 = scmp.ne.s32.totalorder %s64, %s65
    %p77 = scmp.eq.s32.totalorder %s20, 1
    %p78 = por %p76, %p77
    %p80 = scmp.ne.s32.totalorder %s65, %s79
    %p81 = scmp.eq.s32.totalorder %s20, 0
    %p82 = por %p80, %p81
    %s84 = sadd.s32 %s83, 1
    %p87 = scmp.eq.s32.totalorder %s14, 1
    %p88 = scmp.ne.s32.totalorder %s83, %s85
    %p89 = scmp.eq.s32.totalorder %s14, 0
    %p90 = por %p88, %p89
    %p91 = scmp.ne.s32.totalorder %s83, %s85
    %p92 = scmp.eq.s32.totalorder %s19, 1
    %p93 = por %p91, %p92
    %p94 = scmp.ne.s32.totalorder %s85, %s86
    %p95 = scmp.eq.s32.totalorder %s19, 0
    %p96 = por %p94, %p95
    %p97 = scmp.ne.s32.totalorder %s85, %s86
    %p98 = scmp.eq.s32.totalorder %s20, 1
    %p99 = por %p97, %p98
    %p101 = scmp.ne.s32.totalorder %s86, %s100
    %p102 = scmp.eq.s32.totalorder %s20, 0
    %p103 = por %p101, %p102
    %s105 = sadd.s32 %s104, 1
    %p108 = scmp.eq.s32.totalorder %s14, 1
    %p109 = scmp.ne.s32.totalorder %s104, %s106
    %p110 = scmp.eq.s32.totalorder %s14, 0
    %p111 = por %p109, %p110
    %p112 = scmp.ne.s32.totalorder %s104, %s106
    %p113 = scmp.eq.s32.totalorder %s19, 1
    %p114 = por %p112, %p113
    %p115 = scmp.ne.s32.totalorder %s106, %s107
    %p116 = scmp.eq.s32.totalorder %s19, 0
    %p117 = por %p115, %p116
    %p118 = scmp.ne.s32.totalorder %s106, %s107
    %p119 = scmp.eq.s32.totalorder %s20, 1
    %p120 = por %p118, %p119
    %p122 = scmp.ne.s32.totalorder %s107, %s121
    %p123 = scmp.eq.s32.totalorder %s20, 0
    %p124 = por %p122, %p123
    %s126 = sadd.s32 %s125, 1
    %p129 = scmp.eq.s32.totalorder %s14, 1
    %p130 = scmp.ne.s32.totalorder %s125, %s127
    %p131 = scmp.eq.s32.totalorder %s14, 0
    %p132 = por %p130, %p131
    %p133 = scmp.ne.s32.totalorder %s125, %s127
    %p134 = scmp.eq.s32.totalorder %s19, 1
    %p135 = por %p133, %p134
    %p136 = scmp.ne.s32.totalorder %s127, %s128
    %p137 = scmp.eq.s32.totalorder %s19, 0
    %p138 = por %p136, %p137
    %p139 = scmp.ne.s32.totalorder %s127, %s128
    %p140 = scmp.eq.s32.totalorder %s20, 1
    %p141 = por %p139, %p140
    %p143 = scmp.ne.s32.totalorder %s128, %s142
    %p144 = scmp.eq.s32.totalorder %s20, 0
    %p145 = por %p143, %p144
    %s147 = sadd.s32 %s146, 1
    %p150 = scmp.eq.s32.totalorder %s14, 1
    %p151 = scmp.ne.s32.totalorder %s146, %s148
    %p152 = scmp.eq.s32.totalorder %s14, 0
    %p153 = por %p151, %p152
    %p154 = scmp.ne.s32.totalorder %s146, %s148
    %p155 = scmp.eq.s32.totalorder %s19, 1
    %p156 = por %p154, %p155
    %p157 = scmp.ne.s32.totalorder %s148, %s149
    %p158 = scmp.eq.s32.totalorder %s19, 0
    %p159 = por %p157, %p158
    %p160 = scmp.ne.s32.totalorder %s148, %s149
    %p161 = scmp.eq.s32.totalorder %s20, 1
    %p162 = por %p160, %p161
    %p164 = scmp.ne.s32.totalorder %s149, %s163
    %p165 = scmp.eq.s32.totalorder %s20, 0
    %p166 = por %p164, %p165
    %s168 = sadd.s32 %s167, 1
    %p171 = scmp.eq.s32.totalorder %s14, 1
    %p172 = scmp.ne.s32.totalorder %s167, %s169
    %p173 = scmp.eq.s32.totalorder %s14, 0
    %p174 = por %p172, %p173
    %p175 = scmp.ne.s32.totalorder %s167, %s169
    %p176 = scmp.eq.s32.totalorder %s19, 1
    %p177 = por %p175, %p176
    %p178 = scmp.ne.s32.totalorder %s169, %s170
    %p179 = scmp.eq.s32.totalorder %s19, 0
    %p180 = por %p178, %p179
    %p181 = scmp.ne.s32.totalorder %s169, %s170
    %p182 = scmp.eq.s32.totalorder %s20, 1
    %p183 = por %p181, %p182
    %p185 = scmp.ne.s32.totalorder %s170, %s184
    %p186 = scmp.eq.s32.totalorder %s20, 0
    %p187 = por %p185, %p186
    %s189 = sadd.s32 %s188, 1
    %p192 = scmp.eq.s32.totalorder %s14, 1
    %p193 = scmp.ne.s32.totalorder %s188, %s190
    %p194 = scmp.eq.s32.totalorder %s14, 0
    %p195 = por %p193, %p194
    %p196 = scmp.ne.s32.totalorder %s188, %s190
    %p197 = scmp.eq.s32.totalorder %s19, 1
    %p198 = por %p196, %p197
    %p199 = scmp.ne.s32.totalorder %s190, %s191
    %p200 = scmp.eq.s32.totalorder %s19, 0
    %p201 = por %p199, %p200
    %p202 = scmp.ne.s32.totalorder %s190, %s191
    %p203 = scmp.eq.s32.totalorder %s20, 1
    %p204 = por %p202, %p203
    %p206 = scmp.ne.s32.totalorder %s191, %s205
    %p207 = scmp.eq.s32.totalorder %s20, 0
    %p208 = por %p206, %p207
    %s209 = ssub.s32 %s21, %s33
    %s210 = ssub.s32 %s22, %s29
    %s211 = sor.u32 %s209, %s210
    %p212 = scmp.eq.s32.totalorder %s211, 0
    %s214 = sadd.s32 %s213, 1
    %s215 = scalar_select %p212, %s213, %s214
    %p218 = pneg %p212
    %p219 = scmp.eq.s32.totalorder %s14, 1
    %p220 = por %p218, %p219
    %p221 = scmp.ne.s32.totalorder %s213, %s216
    %p222 = scmp.eq.s32.totalorder %s14, 0
    %p223 = por %p221, %p222
    %p224 = scmp.ne.s32.totalorder %s213, %s216
    %p225 = scmp.eq.s32.totalorder %s19, 1
    %p226 = por %p224, %p225
    %p227 = scmp.ne.s32.totalorder %s216, %s217
    %p228 = scmp.eq.s32.totalorder %s19, 0
    %p229 = por %p227, %p228
    %p230 = scmp.ne.s32.totalorder %s216, %s217
    %p231 = scmp.eq.s32.totalorder %s20, 1
    %p232 = por %p230, %p231
    %p234 = scmp.ne.s32.totalorder %s217, %s233
    %p235 = scmp.eq.s32.totalorder %s20, 0
    %p236 = por %p234, %p235
    %p237 = scmp.le.s32.totalorder 1, %s14
    %p238 = scmp.lt.s32.totalorder %s14, 3
    %p239 = pnand %p237, %p238
    %p240 = pneg %p239
    // Predicated region
    $region9: #{multires_bottleneck.1} parent=5 // pred_check
      _
    $region10: #{multires_bottleneck.1} parent=5 // pred_check_branch
      %242 = sbr.rel (%p239) target = $region12
    $region11: #{multires_bottleneck.1} parent=5 // pred_region
      %s243 = ssub.s32 %s14, 1
      // Predicated region
      $region13: #{multires_bottleneck.1} parent=11 // pred_check
        %p244 = pneg %p75
      $region14: #{multires_bottleneck.1} parent=11 // pred_check_branch
        %246 = sbr.rel (%p244) target = $region16
      $region15: #{multires_bottleneck.1} parent=11 // pred_region
        _
      $region16: #{multires_bottleneck.1} parent=11 // pred_fallthru
        _
      // Predicated region
      $region17: #{multires_bottleneck.1} parent=11 // pred_check
        %p247 = pneg %p96
      $region18: #{multires_bottleneck.1} parent=11 // pred_check_branch
        %249 = sbr.rel (%p247) target = $region20
      $region19: #{multires_bottleneck.1} parent=11 // pred_region
        _
      $region20: #{multires_bottleneck.1} parent=11 // pred_fallthru
        _
      // Predicated region
      $region21: #{multires_bottleneck.1} parent=11 // pred_check
        %p250 = pneg %p117
      $region22: #{multires_bottleneck.1} parent=11 // pred_check_branch
        %252 = sbr.rel (%p250) target = $region24
      $region23: #{multires_bottleneck.1} parent=11 // pred_region
        _
      $region24: #{multires_bottleneck.1} parent=11 // pred_fallthru
        _
      // Predicated region
      $region25: #{multires_bottleneck.1} parent=11 // pred_check
        %p253 = pneg %p138
      $region26: #{multires_bottleneck.1} parent=11 // pred_check_branch
        %255 = sbr.rel (%p253) target = $region28
      $region27: #{multires_bottleneck.1} parent=11 // pred_region
        _
      $region28: #{multires_bottleneck.1} parent=11 // pred_fallthru
        _
      // Predicated region
      $region29: #{multires_bottleneck.1} parent=11 // pred_check
        %p256 = pneg %p159
      $region30: #{multires_bottleneck.1} parent=11 // pred_check_branch
        %258 = sbr.rel (%p256) target = $region32
      $region31: #{multires_bottleneck.1} parent=11 // pred_region
        _
      $region32: #{multires_bottleneck.1} parent=11 // pred_fallthru
        _
      // Predicated region
      $region33: #{multires_bottleneck.1} parent=11 // pred_check
        %p259 = pneg %p180
      $region34: #{multires_bottleneck.1} parent=11 // pred_check_branch
        %261 = sbr.rel (%p259) target = $region36
      $region35: #{multires_bottleneck.1} parent=11 // pred_region
        _
      $region36: #{multires_bottleneck.1} parent=11 // pred_fallthru
        _
      // Predicated region
      $region37: #{multires_bottleneck.1} parent=11 // pred_check
        %p262 = pneg %p201
      $region38: #{multires_bottleneck.1} parent=11 // pred_check_branch
        %264 = sbr.rel (%p262) target = $region40
      $region39: #{multires_bottleneck.1} parent=11 // pred_region
        _
      $region40: #{multires_bottleneck.1} parent=11 // pred_fallthru
        _
    $region12: #{multires_bottleneck.1} parent=5 // pred_fallthru
      _
    %p265 = scmp.lt.s32.totalorder %s14, 2
    // Predicated region
    $region41: #{multires_bottleneck.1} parent=5 // pred_check
      %p266 = pneg %p265
    $region42: #{multires_bottleneck.1} parent=5 // pred_check_branch
      %268 = sbr.rel (%p266) target = $region44
    $region43: #{multires_bottleneck.1} parent=5 // pred_region
      // Predicated region
      $region45: #{multires_bottleneck.1} parent=43 // pred_check
        %p269 = pneg %p48
      $region46: #{multires_bottleneck.1} parent=43 // pred_check_branch
        %271 = sbr.rel (%p269) target = $region48
      $region47: #{multires_bottleneck.1} parent=43 // pred_region
        %p272 = scmp.lt.s32.totalorder %s21, 1
        %s273 = scalar_select %p272, %s21, 1
        %p274 = scmp.lt.s32.totalorder %s22, 0
        %s275 = scalar_select %p274, %s22, 0
        %s276 = smul.addr %s275, 40
        %s277 = smul.addr %s273, 40
        %s278 = sadd.s32 %s276, %s277
        %s279 = smul.addr %s278, 4
        %s280 = scalar_lea.vmem %s0, %s279
      $region48: #{multires_bottleneck.1} parent=43 // pred_fallthru
        _
    $region44: #{multires_bottleneck.1} parent=5 // pred_fallthru
      _
    %p281 = scmp.le.s32.totalorder 1, %s14
    %p282 = scmp.lt.s32.totalorder %s14, 3
    %p283 = pnand %p281, %p282
    %p284 = pneg %p283
    // Predicated region
    $region49: #{multires_bottleneck.1} parent=5 // pred_check
      _
    $region50: #{multires_bottleneck.1} parent=5 // pred_check_branch
      %286 = sbr.rel (%p283) target = $region52
    $region51: #{multires_bottleneck.1} parent=5 // pred_region
      %s287 = ssub.s32 %s14, 1
      %p288 = scmp.lt.s32.totalorder %s23, 1
      %s289 = scalar_select %p288, %s23, 1
      %p290 = scmp.lt.s32.totalorder %s24, 0
      %s291 = scalar_select %p290, %s24, 0
      %s292 = smul.addr %s291, 40
      %s293 = smul.addr %s289, 40
      %s294 = sadd.s32 %s292, %s293
      %s295 = smul.addr %s294, 4
      %s296 = scalar_lea.vmem %s0, %s295
      %p297 = pneg %p54
      %p298 = pneg %p51
      %p299 = pneg %p75
      %p300 = pneg %p72
      %p301 = pneg %p96
      %p302 = pneg %p93
      %p303 = pneg %p117
      %p304 = pneg %p114
      %p305 = pneg %p138
      %p306 = pneg %p135
      %p307 = pneg %p159
      %p308 = pneg %p156
      %p309 = pneg %p180
      %p310 = pneg %p177
      %p311 = pneg %p201
      %p312 = pneg %p198
      %p313 = pneg %p229
      %p314 = pneg %p226
      %s315 = smul.u32 16, %s24
      %p316 = scmp.lt.s32.totalorder %s23, 1
      %s317 = scalar_select %p316, %s23, 1
      %p318 = scmp.lt.s32.totalorder %s315, 15
      %s319 = scalar_select %p318, %s315, 15
      %s320 = smul.addr %s319, 2
      %s321 = smul.addr %s317, 32
      %s322 = sadd.s32 %s320, %s321
      %s323 = smul.addr %s322, 4
      %s324 = scalar_lea.vmem %s8, %s323
      %p325 = scmp.lt.s32.totalorder %s23, 1
      %s326 = scalar_select %p325, %s23, 1
      %p327 = scmp.lt.s32.totalorder %s24, 0
      %s328 = scalar_select %p327, %s24, 0
      %s329 = smul.addr %s328, 40
      %s330 = smul.addr %s326, 40
      %s331 = sadd.s32 %s329, %s330
      %s332 = smul.addr %s331, 4
      %s333 = scalar_lea.vmem %s0, %s332
      %s334 = smul.u32 16, %s24
      %p335 = scmp.lt.s32.totalorder %s23, 1
      %s336 = scalar_select %p335, %s23, 1
      %p337 = scmp.lt.s32.totalorder %s334, 15
      %s338 = scalar_select %p337, %s334, 15
      %s339 = smul.addr %s338, 2
      %s340 = smul.addr %s336, 32
      %s341 = sadd.s32 %s339, %s340
      %s342 = smul.addr %s341, 4
      %s343 = scalar_lea.vmem %s8, %s342
      %s344 = smul.u32 16, %s24
      %s346 = smul.u32 %s24, 16
      %v347 = vld [vmem:[%s333] sm:$0xf]
      %v348 = vld [vmem:[%s333 + $0x4] sm:$0xf]
      %v349 = vld [vmem:[%s333 + $0x8] sm:$0xf]
      %v350 = vld [vmem:[%s333 + $0xc] sm:$0xf]
      %v351 = vld [vmem:[%s333 + $0x10] sm:$0xf]
      %v352 = vld [vmem:[%s333 + $0x14] sm:$0xf]
      %v353 = vld [vmem:[%s333 + $0x18] sm:$0xf]
      %v354 = vld [vmem:[%s333 + $0x1c] sm:$0xf]
      %v355 = vld [vmem:[%s333 + $0x20] sm:$0xf]
      %v356 = vld [vmem:[%s333 + $0x24] sm:$0xf]
      %v357 = vld [vmem:[%s333 + $0x28] sm:$0xf]
      %v358 = vld [vmem:[%s333 + $0x2c] sm:$0xf]
      %v359 = vld [vmem:[%s333 + $0x30] sm:$0xf]
      %v360 = vld [vmem:[%s333 + $0x34] sm:$0xf]
      %v361 = vld [vmem:[%s333 + $0x38] sm:$0xf]
      %v362 = vld [vmem:[%s333 + $0x3c] sm:$0xf]
      %v363 = vld [vmem:[%s333 + $0x40] sm:$0xf]
      %v364 = vld [vmem:[%s333 + $0x44] sm:$0xf]
      %v365 = vld [vmem:[%s333 + $0x48] sm:$0xf]
      %v366 = vld [vmem:[%s333 + $0x4c] sm:$0xf]
      %v367 = vld [vmem:[%s333 + $0x50] sm:$0xf]
      %v368 = vld [vmem:[%s333 + $0x54] sm:$0xf]
      %v369 = vld [vmem:[%s333 + $0x58] sm:$0xf]
      %v370 = vld [vmem:[%s333 + $0x5c] sm:$0xf]
      %v371 = vld [vmem:[%s333 + $0x60] sm:$0xf]
      %v372 = vld [vmem:[%s333 + $0x64] sm:$0xf]
      %v373 = vld [vmem:[%s333 + $0x68] sm:$0xf]
      %v374 = vld [vmem:[%s333 + $0x6c] sm:$0xf]
      %v375 = vld [vmem:[%s333 + $0x70] sm:$0xf]
      %v376 = vld [vmem:[%s333 + $0x74] sm:$0xf]
      %v377 = vld [vmem:[%s333 + $0x78] sm:$0xf]
      %v378 = vld [vmem:[%s333 + $0x7c] sm:$0xf]
      %v379 = vld [vmem:[%s333 + $0x80] sm:$0xf]
      %v380 = vld [vmem:[%s333 + $0x84] sm:$0xf]
      %v381 = vld [vmem:[%s333 + $0x88] sm:$0xf]
      %v382 = vld [vmem:[%s333 + $0x8c] sm:$0xf]
      %v383 = vld [vmem:[%s333 + $0x90] sm:$0xf]
      %v384 = vld [vmem:[%s333 + $0x94] sm:$0xf]
      %v385 = vld [vmem:[%s333 + $0x98] sm:$0xf]
      %v386 = vld [vmem:[%s333 + $0x9c] sm:$0xf]
      %v387 = vld [vmem:[%s1] sm:$0xf]
      %v388 = vld [vmem:[%s1 + $0x4] sm:$0xf]
      %v389 = vld [vmem:[%s1 + $0x8] sm:$0xf]
      %v390 = vld [vmem:[%s1 + $0xc] sm:$0xf]
      %v391 = vld [vmem:[%s1 + $0x10] sm:$0x3]
      %v392 = vld [vmem:[%s5] sm:$0x1]
      %v394 = vperm.slane %v392, 0
      %v436 = vunpack.c.l.b16 %v347
      %v437 = vunpack.c.l.b16 %v348
      %v438 = vunpack.c.l.b16 %v349
      %v439 = vunpack.c.l.b16 %v350
      %v440 = vunpack.c.l.b16 %v351
      %v441 = vunpack.c.l.b16 %v352
      %v442 = vunpack.c.l.b16 %v353
      %v443 = vunpack.c.l.b16 %v354
      %v444 = vunpack.c.l.b16 %v355
      %v445 = vunpack.c.l.b16 %v356
      %v446 = vunpack.c.l.b16 %v357
      %v447 = vunpack.c.l.b16 %v358
      %v448 = vunpack.c.l.b16 %v359
      %v449 = vunpack.c.l.b16 %v360
      %v450 = vunpack.c.l.b16 %v361
      %v451 = vunpack.c.l.b16 %v362
      %v452 = vunpack.c.l.b16 %v363
      %v453 = vunpack.c.l.b16 %v364
      %v454 = vunpack.c.l.b16 %v365
      %v455 = vunpack.c.l.b16 %v366
      %v456 = vunpack.c.l.b16 %v367
      %v457 = vunpack.c.l.b16 %v368
      %v458 = vunpack.c.l.b16 %v369
      %v459 = vunpack.c.l.b16 %v370
      %v460 = vunpack.c.l.b16 %v371
      %v461 = vunpack.c.l.b16 %v372
      %v462 = vunpack.c.l.b16 %v373
      %v463 = vunpack.c.l.b16 %v374
      %v464 = vunpack.c.l.b16 %v375
      %v465 = vunpack.c.l.b16 %v376
      %v466 = vunpack.c.l.b16 %v377
      %v467 = vunpack.c.l.b16 %v378
      %v468 = vunpack.c.l.b16 %v379
      %v469 = vunpack.c.l.b16 %v380
      %v470 = vunpack.c.l.b16 %v381
      %v471 = vunpack.c.l.b16 %v382
      %v472 = vunpack.c.l.b16 %v383
      %v473 = vunpack.c.l.b16 %v384
      %v474 = vunpack.c.l.b16 %v385
      %v475 = vunpack.c.l.b16 %v386
      %v476 = vpack.c.b16 %v437, %v436
      %v477 = vpack.c.b16 %v439, %v438
      %v478 = vpack.c.b16 %v441, %v440
      %v479 = vpack.c.b16 %v443, %v442
      %v480 = vpack.c.b16 %v445, %v444
      %v481 = vpack.c.b16 %v447, %v446
      %v482 = vpack.c.b16 %v449, %v448
      %v483 = vpack.c.b16 %v451, %v450
      %v484 = vpack.c.b16 %v453, %v452
      %v485 = vpack.c.b16 %v455, %v454
      %v486 = vpack.c.b16 %v457, %v456
      %v487 = vpack.c.b16 %v459, %v458
      %v488 = vpack.c.b16 %v461, %v460
      %v489 = vpack.c.b16 %v463, %v462
      %v490 = vpack.c.b16 %v465, %v464
      %v491 = vpack.c.b16 %v467, %v466
      %v492 = vpack.c.b16 %v469, %v468
      %v493 = vpack.c.b16 %v471, %v470
      %v494 = vpack.c.b16 %v473, %v472
      %v495 = vpack.c.b16 %v475, %v474
      %v501 = vunpack.c.l.b16 %v387
      %v502 = vunpack.c.l.b16 %v388
      %v503 = vunpack.c.l.b16 %v389
      %v504 = vunpack.c.l.b16 %v390
      %v505 = vunpack.c.l.b16 %v391
      %v506 = vpack.c.b16 %v502, %v501
      %v507 = vpack.c.b16 %v504, %v503
      %v508 = vpack.c.b16 %v505, %v505
      %vm511 = vcmask 293888
      %v513 = vsel %vm511, %v476, 0
      %v516 = vsel %vm511, %v477, 0
      %v519 = vsel %vm511, %v478, 0
      %v522 = vsel %vm511, %v479, 0
      %v525 = vsel %vm511, %v480, 0
      %v528 = vsel %vm511, %v481, 0
      %v531 = vsel %vm511, %v482, 0
      %v534 = vsel %vm511, %v483, 0
      %v537 = vsel %vm511, %v484, 0
      %v540 = vsel %vm511, %v485, 0
      %v543 = vsel %vm511, %v486, 0
      %v546 = vsel %vm511, %v487, 0
      %v549 = vsel %vm511, %v488, 0
      %v552 = vsel %vm511, %v489, 0
      %v555 = vsel %vm511, %v490, 0
      %v558 = vsel %vm511, %v491, 0
      %v561 = vsel %vm511, %v492, 0
      %v564 = vsel %vm511, %v493, 0
      %v567 = vsel %vm511, %v494, 0
      %v570 = vsel %vm511, %v495, 0
      %vm572 = vcmask 1041408
      %v574 = vsel %vm572, %v508, 0
      %576 = vmatpush.bf16.msra.mxu0 0
      %577 = vmatpush.bf16.msra.mxu0 0
      %578 = vmatpush.bf16.msra.mxu0 0
      %579 = vmatpush.bf16.msra.mxu0 0
      %580 = vmatpush.bf16.msra.mxu0 0
      %581 = vmatpush.bf16.msra.mxu0 %v574
      %582 = vmatpush.bf16.msra.mxu0 %v507
      %583 = vmatpush.bf16.msra.mxu0 %v506
      %584 = vmatmul.bf16.gmra.mxu0 %v513
      %v585 = vpop.f32.mrf.mxu0
      %v586 = vadd.f32 %v394, %v585
      %v587 = vpop.f32.mrf.mxu0
      %v588 = vadd.f32 %v394, %v587
      %589 = vmatmul.bf16.gmra.mxu0 %v516
      %v590 = vpop.f32.mrf.mxu0
      %v591 = vadd.f32 %v394, %v590
      %v592 = vpop.f32.mrf.mxu0
      %v593 = vadd.f32 %v394, %v592
      %594 = vmatmul.bf16.gmra.mxu0 %v519
      %v595 = vpop.f32.mrf.mxu0
      %v596 = vadd.f32 %v394, %v595
      %v597 = vpop.f32.mrf.mxu0
      %v598 = vadd.f32 %v394, %v597
      %599 = vmatmul.bf16.gmra.mxu0 %v522
      %v600 = vpop.f32.mrf.mxu0
      %v601 = vadd.f32 %v394, %v600
      %v602 = vpop.f32.mrf.mxu0
      %v603 = vadd.f32 %v394, %v602
      %604 = vmatmul.bf16.gmra.mxu0 %v525
      %v605 = vpop.f32.mrf.mxu0
      %v606 = vadd.f32 %v394, %v605
      %v607 = vpop.f32.mrf.mxu0
      %v608 = vadd.f32 %v394, %v607
      %609 = vmatmul.bf16.gmra.mxu0 %v528
      %v610 = vpop.f32.mrf.mxu0
      %v611 = vadd.f32 %v394, %v610
      %v612 = vpop.f32.mrf.mxu0
      %v613 = vadd.f32 %v394, %v612
      %614 = vmatmul.bf16.gmra.mxu0 %v531
      %v615 = vpop.f32.mrf.mxu0
      %v616 = vadd.f32 %v394, %v615
      %v617 = vpop.f32.mrf.mxu0
      %v618 = vadd.f32 %v394, %v617
      %619 = vmatmul.bf16.gmra.mxu0 %v534
      %v620 = vpop.f32.mrf.mxu0
      %v621 = vadd.f32 %v394, %v620
      %v622 = vpop.f32.mrf.mxu0
      %v623 = vadd.f32 %v394, %v622
      %624 = vmatmul.bf16.gmra.mxu0 %v537
      %v625 = vpop.f32.mrf.mxu0
      %v626 = vadd.f32 %v394, %v625
      %v627 = vpop.f32.mrf.mxu0
      %v628 = vadd.f32 %v394, %v627
      %629 = vmatmul.bf16.gmra.mxu0 %v540
      %v630 = vpop.f32.mrf.mxu0
      %v631 = vadd.f32 %v394, %v630
      %v632 = vpop.f32.mrf.mxu0
      %v633 = vadd.f32 %v394, %v632
      %634 = vmatmul.bf16.gmra.mxu0 %v543
      %v635 = vpop.f32.mrf.mxu0
      %v636 = vadd.f32 %v394, %v635
      %v637 = vpop.f32.mrf.mxu0
      %v638 = vadd.f32 %v394, %v637
      %639 = vmatmul.bf16.gmra.mxu0 %v546
      %v640 = vpop.f32.mrf.mxu0
      %v641 = vadd.f32 %v394, %v640
      %v642 = vpop.f32.mrf.mxu0
      %v643 = vadd.f32 %v394, %v642
      %644 = vmatmul.bf16.gmra.mxu0 %v549
      %v645 = vpop.f32.mrf.mxu0
      %v646 = vadd.f32 %v394, %v645
      %v647 = vpop.f32.mrf.mxu0
      %v648 = vadd.f32 %v394, %v647
      %649 = vmatmul.bf16.gmra.mxu0 %v552
      %v650 = vpop.f32.mrf.mxu0
      %v651 = vadd.f32 %v394, %v650
      %v652 = vpop.f32.mrf.mxu0
      %v653 = vadd.f32 %v394, %v652
      %654 = vmatmul.bf16.gmra.mxu0 %v555
      %v655 = vpop.f32.mrf.mxu0
      %v656 = vadd.f32 %v394, %v655
      %v657 = vpop.f32.mrf.mxu0
      %v658 = vadd.f32 %v394, %v657
      %659 = vmatmul.bf16.gmra.mxu0 %v558
      %v660 = vpop.f32.mrf.mxu0
      %v661 = vadd.f32 %v394, %v660
      %v662 = vpop.f32.mrf.mxu0
      %v663 = vadd.f32 %v394, %v662
      %664 = vmatmul.bf16.gmra.mxu0 %v561
      %v665 = vpop.f32.mrf.mxu0
      %v666 = vadd.f32 %v394, %v665
      %v667 = vpop.f32.mrf.mxu0
      %v668 = vadd.f32 %v394, %v667
      %669 = vmatmul.bf16.gmra.mxu0 %v564
      %v670 = vpop.f32.mrf.mxu0
      %v671 = vadd.f32 %v394, %v670
      %v672 = vpop.f32.mrf.mxu0
      %v673 = vadd.f32 %v394, %v672
      %674 = vmatmul.bf16.gmra.mxu0 %v567
      %v675 = vpop.f32.mrf.mxu0
      %v676 = vadd.f32 %v394, %v675
      %v677 = vpop.f32.mrf.mxu0
      %v678 = vadd.f32 %v394, %v677
      %679 = vmatmul.bf16.gmra.mxu0 %v570
      %v680 = vpop.f32.mrf.mxu0
      %v681 = vadd.f32 %v394, %v680
      %v682 = vpop.f32.mrf.mxu0
      %v683 = vadd.f32 %v394, %v682
      %684 = vdwg.mxu0
      %v685 = vmax.f32 %v586, 0.0
      %v686 = vmax.f32 %v588, 0.0
      %v687 = vmax.f32 %v591, 0.0
      %v688 = vmax.f32 %v593, 0.0
      %v689 = vmax.f32 %v596, 0.0
      %v690 = vmax.f32 %v598, 0.0
      %v691 = vmax.f32 %v601, 0.0
      %v692 = vmax.f32 %v603, 0.0
      %v693 = vmax.f32 %v606, 0.0
      %v694 = vmax.f32 %v608, 0.0
      %v695 = vmax.f32 %v611, 0.0
      %v696 = vmax.f32 %v613, 0.0
      %v697 = vmax.f32 %v616, 0.0
      %v698 = vmax.f32 %v618, 0.0
      %v699 = vmax.f32 %v621, 0.0
      %v700 = vmax.f32 %v623, 0.0
      %v701 = vmax.f32 %v626, 0.0
      %v702 = vmax.f32 %v628, 0.0
      %v703 = vmax.f32 %v631, 0.0
      %v704 = vmax.f32 %v633, 0.0
      %v705 = vmax.f32 %v636, 0.0
      %v706 = vmax.f32 %v638, 0.0
      %v707 = vmax.f32 %v641, 0.0
      %v708 = vmax.f32 %v643, 0.0
      %v709 = vmax.f32 %v646, 0.0
      %v710 = vmax.f32 %v648, 0.0
      %v711 = vmax.f32 %v651, 0.0
      %v712 = vmax.f32 %v653, 0.0
      %v713 = vmax.f32 %v656, 0.0
      %v714 = vmax.f32 %v658, 0.0
      %v715 = vmax.f32 %v661, 0.0
      %v716 = vmax.f32 %v663, 0.0
      %v717 = vmax.f32 %v666, 0.0
      %v718 = vmax.f32 %v668, 0.0
      %v719 = vmax.f32 %v671, 0.0
      %v720 = vmax.f32 %v673, 0.0
      %v721 = vmax.f32 %v676, 0.0
      %v722 = vmax.f32 %v678, 0.0
      %v723 = vmax.f32 %v681, 0.0
      %v724 = vmax.f32 %v683, 0.0
      %s725 = ssub.s32 %s346, 2
      %v726 = vstv %s725
      %v727 = vadd.s32 %v726, 1
      %v728 = vadd.s32 %v726, 2
      %v729 = vadd.s32 %v726, 3
      %v730 = vadd.s32 %v726, 4
      %v731 = vadd.s32 %v726, 5
      %v732 = vadd.s32 %v726, 6
      %v733 = vadd.s32 %v726, 7
      %v734 = vadd.s32 %v726, 8
      %v735 = vadd.s32 %v726, 9
      %v736 = vadd.s32 %v726, 10
      %v737 = vadd.s32 %v726, 11
      %v738 = vadd.s32 %v726, 12
      %v739 = vadd.s32 %v726, 13
      %v740 = vadd.s32 %v726, 14
      %v741 = vadd.s32 %v726, 15
      %v742 = vadd.s32 %v726, 16
      %v743 = vadd.s32 %v726, 17
      %v744 = vadd.s32 %v726, 18
      %v745 = vadd.s32 %v726, 19
      %vm746 = vcmp.ge.s32.totalorder %v726, 0
      %vm747 = vcmp.ge.s32.totalorder %v727, 0
      %vm748 = vcmp.ge.s32.totalorder %v728, 0
      %vm749 = vcmp.ge.s32.totalorder %v729, 0
      %vm750 = vcmp.ge.s32.totalorder %v730, 0
      %vm751 = vcmp.ge.s32.totalorder %v731, 0
      %vm752 = vcmp.ge.s32.totalorder %v732, 0
      %vm753 = vcmp.ge.s32.totalorder %v733, 0
      %vm754 = vcmp.ge.s32.totalorder %v734, 0
      %vm755 = vcmp.ge.s32.totalorder %v735, 0
      %vm756 = vcmp.ge.s32.totalorder %v736, 0
      %vm757 = vcmp.ge.s32.totalorder %v737, 0
      %vm758 = vcmp.ge.s32.totalorder %v738, 0
      %vm759 = vcmp.ge.s32.totalorder %v739, 0
      %vm760 = vcmp.ge.s32.totalorder %v740, 0
      %vm761 = vcmp.ge.s32.totalorder %v741, 0
      %vm762 = vcmp.ge.s32.totalorder %v742, 0
      %vm763 = vcmp.ge.s32.totalorder %v743, 0
      %vm764 = vcmp.ge.s32.totalorder %v744, 0
      %vm765 = vcmp.ge.s32.totalorder %v745, 0
      %vm766 = vcmp.lt.s32.totalorder %v726, 16
      %vm767 = vcmp.lt.s32.totalorder %v727, 16
      %vm768 = vcmp.lt.s32.totalorder %v728, 16
      %vm769 = vcmp.lt.s32.totalorder %v729, 16
      %vm770 = vcmp.lt.s32.totalorder %v730, 16
      %vm771 = vcmp.lt.s32.totalorder %v731, 16
      %vm772 = vcmp.lt.s32.totalorder %v732, 16
      %vm773 = vcmp.lt.s32.totalorder %v733, 16
      %vm774 = vcmp.lt.s32.totalorder %v734, 16
      %vm775 = vcmp.lt.s32.totalorder %v735, 16
      %vm776 = vcmp.lt.s32.totalorder %v736, 16
      %vm777 = vcmp.lt.s32.totalorder %v737, 16
      %vm778 = vcmp.lt.s32.totalorder %v738, 16
      %vm779 = vcmp.lt.s32.totalorder %v739, 16
      %vm780 = vcmp.lt.s32.totalorder %v740, 16
      %vm781 = vcmp.lt.s32.totalorder %v741, 16
      %vm782 = vcmp.lt.s32.totalorder %v742, 16
      %vm783 = vcmp.lt.s32.totalorder %v743, 16
      %vm784 = vcmp.lt.s32.totalorder %v744, 16
      %vm785 = vcmp.lt.s32.totalorder %v745, 16
      %vm786 = vmand %vm746, %vm766
      %vm787 = vmand %vm747, %vm767
      %vm788 = vmand %vm748, %vm768
      %vm789 = vmand %vm749, %vm769
      %vm790 = vmand %vm750, %vm770
      %vm791 = vmand %vm751, %vm771
      %vm792 = vmand %vm752, %vm772
      %vm793 = vmand %vm753, %vm773
      %vm794 = vmand %vm754, %vm774
      %vm795 = vmand %vm755, %vm775
      %vm796 = vmand %vm756, %vm776
      %vm797 = vmand %vm757, %vm777
      %vm798 = vmand %vm758, %vm778
      %vm799 = vmand %vm759, %vm779
      %vm800 = vmand %vm760, %vm780
      %vm801 = vmand %vm761, %vm781
      %vm802 = vmand %vm762, %vm782
      %vm803 = vmand %vm763, %vm783
      %vm804 = vmand %vm764, %vm784
      %vm805 = vmand %vm765, %vm785
      %v806 = vsel %vm786, %v685, 0.0
      %v807 = vsel %vm786, %v686, 0.0
      %v808 = vsel %vm787, %v687, 0.0
      %v809 = vsel %vm787, %v688, 0.0
      %v810 = vsel %vm788, %v689, 0.0
      %v811 = vsel %vm788, %v690, 0.0
      %v812 = vsel %vm789, %v691, 0.0
      %v813 = vsel %vm789, %v692, 0.0
      %v814 = vsel %vm790, %v693, 0.0
      %v815 = vsel %vm790, %v694, 0.0
      %v816 = vsel %vm791, %v695, 0.0
      %v817 = vsel %vm791, %v696, 0.0
      %v818 = vsel %vm792, %v697, 0.0
      %v819 = vsel %vm792, %v698, 0.0
      %v820 = vsel %vm793, %v699, 0.0
      %v821 = vsel %vm793, %v700, 0.0
      %v822 = vsel %vm794, %v701, 0.0
      %v823 = vsel %vm794, %v702, 0.0
      %v824 = vsel %vm795, %v703, 0.0
      %v825 = vsel %vm795, %v704, 0.0
      %v826 = vsel %vm796, %v705, 0.0
      %v827 = vsel %vm796, %v706, 0.0
      %v828 = vsel %vm797, %v707, 0.0
      %v829 = vsel %vm797, %v708, 0.0
      %v830 = vsel %vm798, %v709, 0.0
      %v831 = vsel %vm798, %v710, 0.0
      %v832 = vsel %vm799, %v711, 0.0
      %v833 = vsel %vm799, %v712, 0.0
      %v834 = vsel %vm800, %v713, 0.0
      %v835 = vsel %vm800, %v714, 0.0
      %v836 = vsel %vm801, %v715, 0.0
      %v837 = vsel %vm801, %v716, 0.0
      %v838 = vsel %vm802, %v717, 0.0
      %v839 = vsel %vm802, %v718, 0.0
      %v840 = vsel %vm803, %v719, 0.0
      %v841 = vsel %vm803, %v720, 0.0
      %v842 = vsel %vm804, %v721, 0.0
      %v843 = vsel %vm804, %v722, 0.0
      %v844 = vsel %vm805, %v723, 0.0
      %v845 = vsel %vm805, %v724, 0.0
      %v846 = vpack.c.bf16 %v806, %v806
      %v847 = vpack.c.bf16 %v807, %v807
      %v848 = vpack.c.bf16 %v808, %v808
      %v849 = vpack.c.bf16 %v809, %v809
      %v850 = vpack.c.bf16 %v810, %v810
      %v851 = vpack.c.bf16 %v811, %v811
      %v852 = vpack.c.bf16 %v812, %v812
      %v853 = vpack.c.bf16 %v813, %v813
      %v854 = vpack.c.bf16 %v814, %v814
      %v855 = vpack.c.bf16 %v815, %v815
      %v856 = vpack.c.bf16 %v816, %v816
      %v857 = vpack.c.bf16 %v817, %v817
      %v858 = vpack.c.bf16 %v818, %v818
      %v859 = vpack.c.bf16 %v819, %v819
      %v860 = vpack.c.bf16 %v820, %v820
      %v861 = vpack.c.bf16 %v821, %v821
      %v862 = vpack.c.bf16 %v822, %v822
      %v863 = vpack.c.bf16 %v823, %v823
      %v864 = vpack.c.bf16 %v824, %v824
      %v865 = vpack.c.bf16 %v825, %v825
      %v866 = vpack.c.bf16 %v826, %v826
      %v867 = vpack.c.bf16 %v827, %v827
      %v868 = vpack.c.bf16 %v828, %v828
      %v869 = vpack.c.bf16 %v829, %v829
      %v870 = vpack.c.bf16 %v830, %v830
      %v871 = vpack.c.bf16 %v831, %v831
      %v872 = vpack.c.bf16 %v832, %v832
      %v873 = vpack.c.bf16 %v833, %v833
      %v874 = vpack.c.bf16 %v834, %v834
      %v875 = vpack.c.bf16 %v835, %v835
      %v876 = vpack.c.bf16 %v836, %v836
      %v877 = vpack.c.bf16 %v837, %v837
      %v878 = vpack.c.bf16 %v838, %v838
      %v879 = vpack.c.bf16 %v839, %v839
      %v880 = vpack.c.bf16 %v840, %v840
      %v881 = vpack.c.bf16 %v841, %v841
      %v882 = vpack.c.bf16 %v842, %v842
      %v883 = vpack.c.bf16 %v843, %v843
      %v884 = vpack.c.bf16 %v844, %v844
      %v885 = vpack.c.bf16 %v845, %v845
      %v926 = vunpack.c.l.b16 %v846
      %v927 = vunpack.c.l.b16 %v847
      %v928 = vunpack.c.l.b16 %v848
      %v929 = vunpack.c.l.b16 %v849
      %v930 = vunpack.c.l.b16 %v850
      %v931 = vunpack.c.l.b16 %v851
      %v932 = vunpack.c.l.b16 %v852
      %v933 = vunpack.c.l.b16 %v853
      %v934 = vunpack.c.l.b16 %v854
      %v935 = vunpack.c.l.b16 %v855
      %v936 = vunpack.c.l.b16 %v856
      %v937 = vunpack.c.l.b16 %v857
      %v938 = vunpack.c.l.b16 %v858
      %v939 = vunpack.c.l.b16 %v859
      %v940 = vunpack.c.l.b16 %v860
      %v941 = vunpack.c.l.b16 %v861
      %v942 = vunpack.c.l.b16 %v862
      %v943 = vunpack.c.l.b16 %v863
      %v944 = vunpack.c.l.b16 %v864
      %v945 = vunpack.c.l.b16 %v865
      %v946 = vunpack.c.l.b16 %v866
      %v947 = vunpack.c.l.b16 %v867
      %v948 = vunpack.c.l.b16 %v868
      %v949 = vunpack.c.l.b16 %v869
      %v950 = vunpack.c.l.b16 %v870
      %v951 = vunpack.c.l.b16 %v871
      %v952 = vunpack.c.l.b16 %v872
      %v953 = vunpack.c.l.b16 %v873
      %v954 = vunpack.c.l.b16 %v874
      %v955 = vunpack.c.l.b16 %v875
      %v956 = vunpack.c.l.b16 %v876
      %v957 = vunpack.c.l.b16 %v877
      %v958 = vunpack.c.l.b16 %v878
      %v959 = vunpack.c.l.b16 %v879
      %v960 = vunpack.c.l.b16 %v880
      %v961 = vunpack.c.l.b16 %v881
      %v962 = vunpack.c.l.b16 %v882
      %v963 = vunpack.c.l.b16 %v883
      %v964 = vunpack.c.l.b16 %v884
      %v965 = vunpack.c.l.b16 %v885
      %v966 = vpack.c.b16 %v927, %v926
      %v967 = vpack.c.b16 %v929, %v928
      %v968 = vpack.c.b16 %v931, %v930
      %v969 = vpack.c.b16 %v933, %v932
      %v970 = vpack.c.b16 %v935, %v934
      %v971 = vpack.c.b16 %v937, %v936
      %v972 = vpack.c.b16 %v939, %v938
      %v973 = vpack.c.b16 %v941, %v940
      %v974 = vpack.c.b16 %v943, %v942
      %v975 = vpack.c.b16 %v945, %v944
      %v976 = vpack.c.b16 %v947, %v946
      %v977 = vpack.c.b16 %v949, %v948
      %v978 = vpack.c.b16 %v951, %v950
      %v979 = vpack.c.b16 %v953, %v952
      %v980 = vpack.c.b16 %v955, %v954
      %v981 = vpack.c.b16 %v957, %v956
      %v982 = vpack.c.b16 %v959, %v958
      %v983 = vpack.c.b16 %v961, %v960
      %v984 = vpack.c.b16 %v963, %v962
      %v985 = vpack.c.b16 %v965, %v964
      %v987 = vshrl.u32 %v966, 16
      %v989 = vrot.slane %v987, 7
      %v990 = vshll.u32 %v966, 16
      %v992 = vor.u32 %v989, %v990
      %v994 = vshrl.u32 %v967, 16
      %v996 = vrot.slane %v994, 7
      %v997 = vshll.u32 %v967, 16
      %v999 = vor.u32 %v996, %v997
      %v1001 = vshrl.u32 %v968, 16
      %v1003 = vrot.slane %v1001, 7
      %v1004 = vshll.u32 %v968, 16
      %v1006 = vor.u32 %v1003, %v1004
      %v1008 = vshrl.u32 %v969, 16
      %v1010 = vrot.slane %v1008, 7
      %v1011 = vshll.u32 %v969, 16
      %v1013 = vor.u32 %v1010, %v1011
      %v1015 = vshrl.u32 %v970, 16
      %v1017 = vrot.slane %v1015, 7
      %v1018 = vshll.u32 %v970, 16
      %v1020 = vor.u32 %v1017, %v1018
      %v1022 = vshrl.u32 %v971, 16
      %v1024 = vrot.slane %v1022, 7
      %v1025 = vshll.u32 %v971, 16
      %v1027 = vor.u32 %v1024, %v1025
      %v1029 = vshrl.u32 %v972, 16
      %v1031 = vrot.slane %v1029, 7
      %v1032 = vshll.u32 %v972, 16
      %v1034 = vor.u32 %v1031, %v1032
      %v1036 = vshrl.u32 %v973, 16
      %v1038 = vrot.slane %v1036, 7
      %v1039 = vshll.u32 %v973, 16
      %v1041 = vor.u32 %v1038, %v1039
      %v1043 = vshrl.u32 %v974, 16
      %v1045 = vrot.slane %v1043, 7
      %v1046 = vshll.u32 %v974, 16
      %v1048 = vor.u32 %v1045, %v1046
      %v1050 = vshrl.u32 %v975, 16
      %v1052 = vrot.slane %v1050, 7
      %v1053 = vshll.u32 %v975, 16
      %v1055 = vor.u32 %v1052, %v1053
      %v1057 = vshrl.u32 %v976, 16
      %v1059 = vrot.slane %v1057, 7
      %v1060 = vshll.u32 %v976, 16
      %v1062 = vor.u32 %v1059, %v1060
      %v1064 = vshrl.u32 %v977, 16
      %v1066 = vrot.slane %v1064, 7
      %v1067 = vshll.u32 %v977, 16
      %v1069 = vor.u32 %v1066, %v1067
      %v1071 = vshrl.u32 %v978, 16
      %v1073 = vrot.slane %v1071, 7
      %v1074 = vshll.u32 %v978, 16
      %v1076 = vor.u32 %v1073, %v1074
      %v1078 = vshrl.u32 %v979, 16
      %v1080 = vrot.slane %v1078, 7
      %v1081 = vshll.u32 %v979, 16
      %v1083 = vor.u32 %v1080, %v1081
      %v1085 = vshrl.u32 %v980, 16
      %v1087 = vrot.slane %v1085, 7
      %v1088 = vshll.u32 %v980, 16
      %v1090 = vor.u32 %v1087, %v1088
      %v1092 = vshrl.u32 %v981, 16
      %v1094 = vrot.slane %v1092, 7
      %v1095 = vshll.u32 %v981, 16
      %v1097 = vor.u32 %v1094, %v1095
      %v1099 = vshrl.u32 %v982, 16
      %v1101 = vrot.slane %v1099, 7
      %v1102 = vshll.u32 %v982, 16
      %v1104 = vor.u32 %v1101, %v1102
      %v1106 = vshrl.u32 %v983, 16
      %v1108 = vrot.slane %v1106, 7
      %v1109 = vshll.u32 %v983, 16
      %v1111 = vor.u32 %v1108, %v1109
      %v1113 = vshrl.u32 %v984, 16
      %v1115 = vrot.slane %v1113, 7
      %v1116 = vshll.u32 %v984, 16
      %v1118 = vor.u32 %v1115, %v1116
      %v1120 = vshrl.u32 %v985, 16
      %v1122 = vrot.slane %v1120, 7
      %v1123 = vshll.u32 %v985, 16
      %v1125 = vor.u32 %v1122, %v1123
      %vm1146 = vcmask 1040384
      %vm1147 = vsmask.f32 256
      %vm1148 = vmand %vm1146, %vm1147
      %v1149 = vsel %vm1148, 0, %v992
      %v1150 = vsel %vm1148, 0, %v999
      %v1151 = vsel %vm1148, 0, %v1006
      %v1152 = vsel %vm1148, 0, %v1013
      %v1153 = vsel %vm1148, 0, %v1020
      %v1154 = vsel %vm1148, 0, %v1027
      %v1155 = vsel %vm1148, 0, %v1034
      %v1156 = vsel %vm1148, 0, %v1041
      %v1157 = vsel %vm1148, 0, %v1048
      %v1158 = vsel %vm1148, 0, %v1055
      %v1159 = vsel %vm1148, 0, %v1062
      %v1160 = vsel %vm1148, 0, %v1069
      %v1161 = vsel %vm1148, 0, %v1076
      %v1162 = vsel %vm1148, 0, %v1083
      %v1163 = vsel %vm1148, 0, %v1090
      %v1164 = vsel %vm1148, 0, %v1097
      %v1165 = vsel %vm1148, 0, %v1104
      %v1166 = vsel %vm1148, 0, %v1111
      %v1167 = vsel %vm1148, 0, %v1118
      %v1168 = vsel %vm1148, 0, %v1125
      %v1169 = vrot.slane %v990, 1
      %v1170 = vor.u32 %v987, %v1169
      %v1171 = vrot.slane %v997, 1
      %v1172 = vor.u32 %v994, %v1171
      %v1173 = vrot.slane %v1004, 1
      %v1174 = vor.u32 %v1001, %v1173
      %v1175 = vrot.slane %v1011, 1
      %v1176 = vor.u32 %v1008, %v1175
      %v1177 = vrot.slane %v1018, 1
      %v1178 = vor.u32 %v1015, %v1177
      %v1179 = vrot.slane %v1025, 1
      %v1180 = vor.u32 %v1022, %v1179
      %v1181 = vrot.slane %v1032, 1
      %v1182 = vor.u32 %v1029, %v1181
      %v1183 = vrot.slane %v1039, 1
      %v1184 = vor.u32 %v1036, %v1183
      %v1185 = vrot.slane %v1046, 1
      %v1186 = vor.u32 %v1043, %v1185
      %v1187 = vrot.slane %v1053, 1
      %v1188 = vor.u32 %v1050, %v1187
      %v1189 = vrot.slane %v1060, 1
      %v1190 = vor.u32 %v1057, %v1189
      %v1191 = vrot.slane %v1067, 1
      %v1192 = vor.u32 %v1064, %v1191
      %v1193 = vrot.slane %v1074, 1
      %v1194 = vor.u32 %v1071, %v1193
      %v1195 = vrot.slane %v1081, 1
      %v1196 = vor.u32 %v1078, %v1195
      %v1197 = vrot.slane %v1088, 1
      %v1198 = vor.u32 %v1085, %v1197
      %v1199 = vrot.slane %v1095, 1
      %v1200 = vor.u32 %v1092, %v1199
      %v1201 = vrot.slane %v1102, 1
      %v1202 = vor.u32 %v1099, %v1201
      %v1203 = vrot.slane %v1109, 1
      %v1204 = vor.u32 %v1106, %v1203
      %v1205 = vrot.slane %v1116, 1
      %v1206 = vor.u32 %v1113, %v1205
      %v1207 = vrot.slane %v1123, 1
      %v1208 = vor.u32 %v1120, %v1207
      %vm1229 = vcmask 1047552
      %vm1230 = vsmask.f32 7424
      %vm1231 = vmand %vm1229, %vm1230
      %v1232 = vsel %vm1231, %v1170, 0
      %v1233 = vsel %vm1231, %v1172, 0
      %v1234 = vsel %vm1231, %v1174, 0
      %v1235 = vsel %vm1231, %v1176, 0
      %v1236 = vsel %vm1231, %v1178, 0
      %v1237 = vsel %vm1231, %v1180, 0
      %v1238 = vsel %vm1231, %v1182, 0
      %v1239 = vsel %vm1231, %v1184, 0
      %v1240 = vsel %vm1231, %v1186, 0
      %v1241 = vsel %vm1231, %v1188, 0
      %v1242 = vsel %vm1231, %v1190, 0
      %v1243 = vsel %vm1231, %v1192, 0
      %v1244 = vsel %vm1231, %v1194, 0
      %v1245 = vsel %vm1231, %v1196, 0
      %v1246 = vsel %vm1231, %v1198, 0
      %v1247 = vsel %vm1231, %v1200, 0
      %v1248 = vsel %vm1231, %v1202, 0
      %v1249 = vsel %vm1231, %v1204, 0
      %v1250 = vsel %vm1231, %v1206, 0
      %v1251 = vsel %vm1231, %v1208, 0
      %v1252 = vld [vmem:[%s2] sm:$0xf]
      %v1253 = vld [vmem:[%s2 + $0x4] sm:$0xf]
      %v1254 = vld [vmem:[%s2 + $0x8] sm:$0xf]
      %v1255 = vld [vmem:[%s2 + $0xc] sm:$0xf]
      %v1256 = vld [vmem:[%s2 + $0x10] sm:$0xf]
      %v1257 = vld [vmem:[%s2 + $0x14] sm:$0xf]
      %v1258 = vld [vmem:[%s2 + $0x18] sm:$0xf]
      %v1259 = vld [vmem:[%s2 + $0x1c] sm:$0xf]
      %v1260 = vld [vmem:[%s2 + $0x20] sm:$0xf]
      %v1261 = vld [vmem:[%s2 + $0x24] sm:$0xf]
      %v1262 = vld [vmem:[%s2 + $0x28] sm:$0xf]
      %v1263 = vld [vmem:[%s2 + $0x2c] sm:$0xf]
      %v1264 = vld [vmem:[%s2 + $0x30] sm:$0xf]
      %v1265 = vld [vmem:[%s2 + $0x34] sm:$0xf]
      %v1266 = vld [vmem:[%s2 + $0x38] sm:$0xf]
      %v1267 = vld [vmem:[%s2 + $0x3c] sm:$0xf]
      %s1268 = scalar_lea.vmem %s2, 64
      %v1269 = vld [vmem:[%s1268] sm:$0xf]
      %v1270 = vld [vmem:[%s1268 + $0x4] sm:$0xf]
      %v1271 = vld [vmem:[%s1268 + $0x8] sm:$0xf]
      %v1272 = vld [vmem:[%s1268 + $0xc] sm:$0xf]
      %v1273 = vld [vmem:[%s1268 + $0x10] sm:$0xf]
      %v1274 = vld [vmem:[%s1268 + $0x14] sm:$0xf]
      %v1275 = vld [vmem:[%s1268 + $0x18] sm:$0xf]
      %v1276 = vld [vmem:[%s1268 + $0x1c] sm:$0xf]
      %v1277 = vld [vmem:[%s1268 + $0x20] sm:$0xf]
      %v1278 = vld [vmem:[%s1268 + $0x24] sm:$0xf]
      %v1279 = vld [vmem:[%s1268 + $0x28] sm:$0xf]
      %v1280 = vld [vmem:[%s1268 + $0x2c] sm:$0xf]
      %v1281 = vld [vmem:[%s1268 + $0x30] sm:$0xf]
      %v1282 = vld [vmem:[%s1268 + $0x34] sm:$0xf]
      %v1283 = vld [vmem:[%s1268 + $0x38] sm:$0xf]
      %v1284 = vld [vmem:[%s1268 + $0x3c] sm:$0xf]
      %v1319 = vunpack.c.l.b16 %v1269
      %v1320 = vunpack.c.l.b16 %v1270
      %v1321 = vunpack.c.l.b16 %v1271
      %v1322 = vunpack.c.l.b16 %v1272
      %v1323 = vunpack.c.l.b16 %v1273
      %v1324 = vunpack.c.l.b16 %v1274
      %v1325 = vunpack.c.l.b16 %v1275
      %v1326 = vunpack.c.l.b16 %v1276
      %v1327 = vunpack.c.l.b16 %v1277
      %v1328 = vunpack.c.l.b16 %v1278
      %v1329 = vunpack.c.l.b16 %v1279
      %v1330 = vunpack.c.l.b16 %v1280
      %v1331 = vunpack.c.l.b16 %v1281
      %v1332 = vunpack.c.l.b16 %v1282
      %v1333 = vunpack.c.l.b16 %v1283
      %v1334 = vunpack.c.l.b16 %v1284
      %v1335 = vpack.c.b16 %v1320, %v1319
      %v1336 = vpack.c.b16 %v1322, %v1321
      %v1337 = vpack.c.b16 %v1324, %v1323
      %v1338 = vpack.c.b16 %v1326, %v1325
      %v1339 = vpack.c.b16 %v1328, %v1327
      %v1340 = vpack.c.b16 %v1330, %v1329
      %v1341 = vpack.c.b16 %v1332, %v1331
      %v1342 = vpack.c.b16 %v1334, %v1333
      %1351 = vmatpush.bf16.msra.mxu0 %v1342
      %1352 = vmatpush.bf16.msra.mxu0 %v1341
      %1353 = vmatpush.bf16.msra.mxu0 %v1340
      %1354 = vmatpush.bf16.msra.mxu0 %v1339
      %1355 = vmatpush.bf16.msra.mxu0 %v1338
      %1356 = vmatpush.bf16.msra.mxu0 %v1337
      %1357 = vmatpush.bf16.msra.mxu0 %v1336
      %1358 = vmatpush.bf16.msra.mxu0 %v1335
      %1359 = vmatmul.bf16.gmra.mxu0 %v966
      %v1360 = vpop.f32.mrf.mxu0
      %v1361 = vadd.f32 0.0, %v1360
      %v1362 = vpop.f32.mrf.mxu0
      %v1363 = vadd.f32 0.0, %v1362
      %1364 = vmatmul.bf16.gmra.mxu0 %v967
      %v1365 = vpop.f32.mrf.mxu0
      %v1366 = vadd.f32 0.0, %v1365
      %v1367 = vpop.f32.mrf.mxu0
      %v1368 = vadd.f32 0.0, %v1367
      %1369 = vmatmul.bf16.gmra.mxu0 %v968
      %v1370 = vpop.f32.mrf.mxu0
      %v1371 = vadd.f32 0.0, %v1370
      %v1372 = vpop.f32.mrf.mxu0
      %v1373 = vadd.f32 0.0, %v1372
      %1374 = vmatmul.bf16.gmra.mxu0 %v969
      %v1375 = vpop.f32.mrf.mxu0
      %v1376 = vadd.f32 0.0, %v1375
      %v1377 = vpop.f32.mrf.mxu0
      %v1378 = vadd.f32 0.0, %v1377
      %1379 = vmatmul.bf16.gmra.mxu0 %v970
      %v1380 = vpop.f32.mrf.mxu0
      %v1381 = vadd.f32 0.0, %v1380
      %v1382 = vpop.f32.mrf.mxu0
      %v1383 = vadd.f32 0.0, %v1382
      %1384 = vmatmul.bf16.gmra.mxu0 %v971
      %v1385 = vpop.f32.mrf.mxu0
      %v1386 = vadd.f32 0.0, %v1385
      %v1387 = vpop.f32.mrf.mxu0
      %v1388 = vadd.f32 0.0, %v1387
      %1389 = vmatmul.bf16.gmra.mxu0 %v972
      %v1390 = vpop.f32.mrf.mxu0
      %v1391 = vadd.f32 0.0, %v1390
      %v1392 = vpop.f32.mrf.mxu0
      %v1393 = vadd.f32 0.0, %v1392
      %1394 = vmatmul.bf16.gmra.mxu0 %v973
      %v1395 = vpop.f32.mrf.mxu0
      %v1396 = vadd.f32 0.0, %v1395
      %v1397 = vpop.f32.mrf.mxu0
      %v1398 = vadd.f32 0.0, %v1397
      %1399 = vmatmul.bf16.gmra.mxu0 %v974
      %v1400 = vpop.f32.mrf.mxu0
      %v1401 = vadd.f32 0.0, %v1400
      %v1402 = vpop.f32.mrf.mxu0
      %v1403 = vadd.f32 0.0, %v1402
      %1404 = vmatmul.bf16.gmra.mxu0 %v975
      %v1405 = vpop.f32.mrf.mxu0
      %v1406 = vadd.f32 0.0, %v1405
      %v1407 = vpop.f32.mrf.mxu0
      %v1408 = vadd.f32 0.0, %v1407
      %1409 = vmatmul.bf16.gmra.mxu0 %v976
      %v1410 = vpop.f32.mrf.mxu0
      %v1411 = vadd.f32 0.0, %v1410
      %v1412 = vpop.f32.mrf.mxu0
      %v1413 = vadd.f32 0.0, %v1412
      %1414 = vmatmul.bf16.gmra.mxu0 %v977
      %v1415 = vpop.f32.mrf.mxu0
      %v1416 = vadd.f32 0.0, %v1415
      %v1417 = vpop.f32.mrf.mxu0
      %v1418 = vadd.f32 0.0, %v1417
      %1419 = vmatmul.bf16.gmra.mxu0 %v978
      %v1420 = vpop.f32.mrf.mxu0
      %v1421 = vadd.f32 0.0, %v1420
      %v1422 = vpop.f32.mrf.mxu0
      %v1423 = vadd.f32 0.0, %v1422
      %1424 = vmatmul.bf16.gmra.mxu0 %v979
      %v1425 = vpop.f32.mrf.mxu0
      %v1426 = vadd.f32 0.0, %v1425
      %v1427 = vpop.f32.mrf.mxu0
      %v1428 = vadd.f32 0.0, %v1427
      %1429 = vmatmul.bf16.gmra.mxu0 %v980
      %v1430 = vpop.f32.mrf.mxu0
      %v1431 = vadd.f32 0.0, %v1430
      %v1432 = vpop.f32.mrf.mxu0
      %v1433 = vadd.f32 0.0, %v1432
      %1434 = vmatmul.bf16.gmra.mxu0 %v981
      %v1435 = vpop.f32.mrf.mxu0
      %v1436 = vadd.f32 0.0, %v1435
      %v1437 = vpop.f32.mrf.mxu0
      %v1438 = vadd.f32 0.0, %v1437
      %1439 = vmatmul.bf16.gmra.mxu0 %v982
      %v1440 = vpop.f32.mrf.mxu0
      %v1441 = vadd.f32 0.0, %v1440
      %v1442 = vpop.f32.mrf.mxu0
      %v1443 = vadd.f32 0.0, %v1442
      %1444 = vmatmul.bf16.gmra.mxu0 %v983
      %v1445 = vpop.f32.mrf.mxu0
      %v1446 = vadd.f32 0.0, %v1445
      %v1447 = vpop.f32.mrf.mxu0
      %v1448 = vadd.f32 0.0, %v1447
      %1449 = vdwg.mxu0
      %v1466 = vunpack.c.l.b16 %v1252
      %v1467 = vunpack.c.l.b16 %v1253
      %v1468 = vunpack.c.l.b16 %v1254
      %v1469 = vunpack.c.l.b16 %v1255
      %v1470 = vunpack.c.l.b16 %v1256
      %v1471 = vunpack.c.l.b16 %v1257
      %v1472 = vunpack.c.l.b16 %v1258
      %v1473 = vunpack.c.l.b16 %v1259
      %v1474 = vunpack.c.l.b16 %v1260
      %v1475 = vunpack.c.l.b16 %v1261
      %v1476 = vunpack.c.l.b16 %v1262
      %v1477 = vunpack.c.l.b16 %v1263
      %v1478 = vunpack.c.l.b16 %v1264
      %v1479 = vunpack.c.l.b16 %v1265
      %v1480 = vunpack.c.l.b16 %v1266
      %v1481 = vunpack.c.l.b16 %v1267
      %v1482 = vpack.c.b16 %v1467, %v1466
      %v1483 = vpack.c.b16 %v1469, %v1468
      %v1484 = vpack.c.b16 %v1471, %v1470
      %v1485 = vpack.c.b16 %v1473, %v1472
      %v1486 = vpack.c.b16 %v1475, %v1474
      %v1487 = vpack.c.b16 %v1477, %v1476
      %v1488 = vpack.c.b16 %v1479, %v1478
      %v1489 = vpack.c.b16 %v1481, %v1480
      %1498 = vmatpush.bf16.msra.mxu0 %v1489
      %1499 = vmatpush.bf16.msra.mxu0 %v1488
      %1500 = vmatpush.bf16.msra.mxu0 %v1487
      %1501 = vmatpush.bf16.msra.mxu0 %v1486
      %1502 = vmatpush.bf16.msra.mxu0 %v1485
      %1503 = vmatpush.bf16.msra.mxu0 %v1484
      %1504 = vmatpush.bf16.msra.mxu0 %v1483
      %1505 = vmatpush.bf16.msra.mxu0 %v1482
      %1506 = vmatmul.bf16.gmra.mxu0 %v1149
      %v1507 = vpop.f32.mrf.mxu0
      %v1508 = vadd.f32 %v1361, %v1507
      %v1509 = vpop.f32.mrf.mxu0
      %v1510 = vadd.f32 %v1363, %v1509
      %1511 = vmatmul.bf16.gmra.mxu0 %v1150
      %v1512 = vpop.f32.mrf.mxu0
      %v1513 = vadd.f32 %v1366, %v1512
      %v1514 = vpop.f32.mrf.mxu0
      %v1515 = vadd.f32 %v1368, %v1514
      %1516 = vmatmul.bf16.gmra.mxu0 %v1151
      %v1517 = vpop.f32.mrf.mxu0
      %v1518 = vadd.f32 %v1371, %v1517
      %v1519 = vpop.f32.mrf.mxu0
      %v1520 = vadd.f32 %v1373, %v1519
      %1521 = vmatmul.bf16.gmra.mxu0 %v1152
      %v1522 = vpop.f32.mrf.mxu0
      %v1523 = vadd.f32 %v1376, %v1522
      %v1524 = vpop.f32.mrf.mxu0
      %v1525 = vadd.f32 %v1378, %v1524
      %1526 = vmatmul.bf16.gmra.mxu0 %v1153
      %v1527 = vpop.f32.mrf.mxu0
      %v1528 = vadd.f32 %v1381, %v1527
      %v1529 = vpop.f32.mrf.mxu0
      %v1530 = vadd.f32 %v1383, %v1529
      %1531 = vmatmul.bf16.gmra.mxu0 %v1154
      %v1532 = vpop.f32.mrf.mxu0
      %v1533 = vadd.f32 %v1386, %v1532
      %v1534 = vpop.f32.mrf.mxu0
      %v1535 = vadd.f32 %v1388, %v1534
      %1536 = vmatmul.bf16.gmra.mxu0 %v1155
      %v1537 = vpop.f32.mrf.mxu0
      %v1538 = vadd.f32 %v1391, %v1537
      %v1539 = vpop.f32.mrf.mxu0
      %v1540 = vadd.f32 %v1393, %v1539
      %1541 = vmatmul.bf16.gmra.mxu0 %v1156
      %v1542 = vpop.f32.mrf.mxu0
      %v1543 = vadd.f32 %v1396, %v1542
      %v1544 = vpop.f32.mrf.mxu0
      %v1545 = vadd.f32 %v1398, %v1544
      %1546 = vmatmul.bf16.gmra.mxu0 %v1157
      %v1547 = vpop.f32.mrf.mxu0
      %v1548 = vadd.f32 %v1401, %v1547
      %v1549 = vpop.f32.mrf.mxu0
      %v1550 = vadd.f32 %v1403, %v1549
      %1551 = vmatmul.bf16.gmra.mxu0 %v1158
      %v1552 = vpop.f32.mrf.mxu0
      %v1553 = vadd.f32 %v1406, %v1552
      %v1554 = vpop.f32.mrf.mxu0
      %v1555 = vadd.f32 %v1408, %v1554
      %1556 = vmatmul.bf16.gmra.mxu0 %v1159
      %v1557 = vpop.f32.mrf.mxu0
      %v1558 = vadd.f32 %v1411, %v1557
      %v1559 = vpop.f32.mrf.mxu0
      %v1560 = vadd.f32 %v1413, %v1559
      %1561 = vmatmul.bf16.gmra.mxu0 %v1160
      %v1562 = vpop.f32.mrf.mxu0
      %v1563 = vadd.f32 %v1416, %v1562
      %v1564 = vpop.f32.mrf.mxu0
      %v1565 = vadd.f32 %v1418, %v1564
      %1566 = vmatmul.bf16.gmra.mxu0 %v1161
      %v1567 = vpop.f32.mrf.mxu0
      %v1568 = vadd.f32 %v1421, %v1567
      %v1569 = vpop.f32.mrf.mxu0
      %v1570 = vadd.f32 %v1423, %v1569
      %1571 = vmatmul.bf16.gmra.mxu0 %v1162
      %v1572 = vpop.f32.mrf.mxu0
      %v1573 = vadd.f32 %v1426, %v1572
      %v1574 = vpop.f32.mrf.mxu0
      %v1575 = vadd.f32 %v1428, %v1574
      %1576 = vmatmul.bf16.gmra.mxu0 %v1163
      %v1577 = vpop.f32.mrf.mxu0
      %v1578 = vadd.f32 %v1431, %v1577
      %v1579 = vpop.f32.mrf.mxu0
      %v1580 = vadd.f32 %v1433, %v1579
      %1581 = vmatmul.bf16.gmra.mxu0 %v1164
      %v1582 = vpop.f32.mrf.mxu0
      %v1583 = vadd.f32 %v1436, %v1582
      %v1584 = vpop.f32.mrf.mxu0
      %v1585 = vadd.f32 %v1438, %v1584
      %1586 = vmatmul.bf16.gmra.mxu0 %v1165
      %v1587 = vpop.f32.mrf.mxu0
      %v1588 = vadd.f32 %v1441, %v1587
      %v1589 = vpop.f32.mrf.mxu0
      %v1590 = vadd.f32 %v1443, %v1589
      %1591 = vmatmul.bf16.gmra.mxu0 %v1166
      %v1592 = vpop.f32.mrf.mxu0
      %v1593 = vadd.f32 %v1446, %v1592
      %v1594 = vpop.f32.mrf.mxu0
      %v1595 = vadd.f32 %v1448, %v1594
      %1596 = vdwg.mxu0
      %s1597 = scalar_lea.vmem %s2, 128
      %v1598 = vld [vmem:[%s1597] sm:$0xf]
      %v1599 = vld [vmem:[%s1597 + $0x4] sm:$0xf]
      %v1600 = vld [vmem:[%s1597 + $0x8] sm:$0xf]
      %v1601 = vld [vmem:[%s1597 + $0xc] sm:$0xf]
      %v1602 = vld [vmem:[%s1597 + $0x10] sm:$0xf]
      %v1603 = vld [vmem:[%s1597 + $0x14] sm:$0xf]
      %v1604 = vld [vmem:[%s1597 + $0x18] sm:$0xf]
      %v1605 = vld [vmem:[%s1597 + $0x1c] sm:$0xf]
      %v1606 = vld [vmem:[%s1597 + $0x20] sm:$0xf]
      %v1607 = vld [vmem:[%s1597 + $0x24] sm:$0xf]
      %v1608 = vld [vmem:[%s1597 + $0x28] sm:$0xf]
      %v1609 = vld [vmem:[%s1597 + $0x2c] sm:$0xf]
      %v1610 = vld [vmem:[%s1597 + $0x30] sm:$0xf]
      %v1611 = vld [vmem:[%s1597 + $0x34] sm:$0xf]
      %v1612 = vld [vmem:[%s1597 + $0x38] sm:$0xf]
      %v1613 = vld [vmem:[%s1597 + $0x3c] sm:$0xf]
      %v1630 = vunpack.c.l.b16 %v1598
      %v1631 = vunpack.c.l.b16 %v1599
      %v1632 = vunpack.c.l.b16 %v1600
      %v1633 = vunpack.c.l.b16 %v1601
      %v1634 = vunpack.c.l.b16 %v1602
      %v1635 = vunpack.c.l.b16 %v1603
      %v1636 = vunpack.c.l.b16 %v1604
      %v1637 = vunpack.c.l.b16 %v1605
      %v1638 = vunpack.c.l.b16 %v1606
      %v1639 = vunpack.c.l.b16 %v1607
      %v1640 = vunpack.c.l.b16 %v1608
      %v1641 = vunpack.c.l.b16 %v1609
      %v1642 = vunpack.c.l.b16 %v1610
      %v1643 = vunpack.c.l.b16 %v1611
      %v1644 = vunpack.c.l.b16 %v1612
      %v1645 = vunpack.c.l.b16 %v1613
      %v1646 = vpack.c.b16 %v1631, %v1630
      %v1647 = vpack.c.b16 %v1633, %v1632
      %v1648 = vpack.c.b16 %v1635, %v1634
      %v1649 = vpack.c.b16 %v1637, %v1636
      %v1650 = vpack.c.b16 %v1639, %v1638
      %v1651 = vpack.c.b16 %v1641, %v1640
      %v1652 = vpack.c.b16 %v1643, %v1642
      %v1653 = vpack.c.b16 %v1645, %v1644
      %1662 = vmatpush.bf16.msra.mxu0 %v1653
      %1663 = vmatpush.bf16.msra.mxu0 %v1652
      %1664 = vmatpush.bf16.msra.mxu0 %v1651
      %1665 = vmatpush.bf16.msra.mxu0 %v1650
      %1666 = vmatpush.bf16.msra.mxu0 %v1649
      %1667 = vmatpush.bf16.msra.mxu0 %v1648
      %1668 = vmatpush.bf16.msra.mxu0 %v1647
      %1669 = vmatpush.bf16.msra.mxu0 %v1646
      %1670 = vmatmul.bf16.gmra.mxu0 %v1232
      %v1671 = vpop.f32.mrf.mxu0
      %v1672 = vadd.f32 0.0, %v1671
      %v1673 = vpop.f32.mrf.mxu0
      %v1674 = vadd.f32 0.0, %v1673
      %1675 = vmatmul.bf16.gmra.mxu0 %v1233
      %v1676 = vpop.f32.mrf.mxu0
      %v1677 = vadd.f32 0.0, %v1676
      %v1678 = vpop.f32.mrf.mxu0
      %v1679 = vadd.f32 0.0, %v1678
      %1680 = vmatmul.bf16.gmra.mxu0 %v1234
      %v1681 = vpop.f32.mrf.mxu0
      %v1682 = vadd.f32 0.0, %v1681
      %v1683 = vpop.f32.mrf.mxu0
      %v1684 = vadd.f32 0.0, %v1683
      %1685 = vmatmul.bf16.gmra.mxu0 %v1235
      %v1686 = vpop.f32.mrf.mxu0
      %v1687 = vadd.f32 0.0, %v1686
      %v1688 = vpop.f32.mrf.mxu0
      %v1689 = vadd.f32 0.0, %v1688
      %1690 = vmatmul.bf16.gmra.mxu0 %v1236
      %v1691 = vpop.f32.mrf.mxu0
      %v1692 = vadd.f32 0.0, %v1691
      %v1693 = vpop.f32.mrf.mxu0
      %v1694 = vadd.f32 0.0, %v1693
      %1695 = vmatmul.bf16.gmra.mxu0 %v1237
      %v1696 = vpop.f32.mrf.mxu0
      %v1697 = vadd.f32 0.0, %v1696
      %v1698 = vpop.f32.mrf.mxu0
      %v1699 = vadd.f32 0.0, %v1698
      %1700 = vmatmul.bf16.gmra.mxu0 %v1238
      %v1701 = vpop.f32.mrf.mxu0
      %v1702 = vadd.f32 0.0, %v1701
      %v1703 = vpop.f32.mrf.mxu0
      %v1704 = vadd.f32 0.0, %v1703
      %1705 = vmatmul.bf16.gmra.mxu0 %v1239
      %v1706 = vpop.f32.mrf.mxu0
      %v1707 = vadd.f32 0.0, %v1706
      %v1708 = vpop.f32.mrf.mxu0
      %v1709 = vadd.f32 0.0, %v1708
      %1710 = vmatmul.bf16.gmra.mxu0 %v1240
      %v1711 = vpop.f32.mrf.mxu0
      %v1712 = vadd.f32 0.0, %v1711
      %v1713 = vpop.f32.mrf.mxu0
      %v1714 = vadd.f32 0.0, %v1713
      %1715 = vmatmul.bf16.gmra.mxu0 %v1241
      %v1716 = vpop.f32.mrf.mxu0
      %v1717 = vadd.f32 0.0, %v1716
      %v1718 = vpop.f32.mrf.mxu0
      %v1719 = vadd.f32 0.0, %v1718
      %1720 = vmatmul.bf16.gmra.mxu0 %v1242
      %v1721 = vpop.f32.mrf.mxu0
      %v1722 = vadd.f32 0.0, %v1721
      %v1723 = vpop.f32.mrf.mxu0
      %v1724 = vadd.f32 0.0, %v1723
      %1725 = vmatmul.bf16.gmra.mxu0 %v1243
      %v1726 = vpop.f32.mrf.mxu0
      %v1727 = vadd.f32 0.0, %v1726
      %v1728 = vpop.f32.mrf.mxu0
      %v1729 = vadd.f32 0.0, %v1728
      %1730 = vmatmul.bf16.gmra.mxu0 %v1244
      %v1731 = vpop.f32.mrf.mxu0
      %v1732 = vadd.f32 0.0, %v1731
      %v1733 = vpop.f32.mrf.mxu0
      %v1734 = vadd.f32 0.0, %v1733
      %1735 = vmatmul.bf16.gmra.mxu0 %v1245
      %v1736 = vpop.f32.mrf.mxu0
      %v1737 = vadd.f32 0.0, %v1736
      %v1738 = vpop.f32.mrf.mxu0
      %v1739 = vadd.f32 0.0, %v1738
      %1740 = vmatmul.bf16.gmra.mxu0 %v1246
      %v1741 = vpop.f32.mrf.mxu0
      %v1742 = vadd.f32 0.0, %v1741
      %v1743 = vpop.f32.mrf.mxu0
      %v1744 = vadd.f32 0.0, %v1743
      %1745 = vmatmul.bf16.gmra.mxu0 %v1247
      %v1746 = vpop.f32.mrf.mxu0
      %v1747 = vadd.f32 0.0, %v1746
      %v1748 = vpop.f32.mrf.mxu0
      %v1749 = vadd.f32 0.0, %v1748
      %1750 = vmatmul.bf16.gmra.mxu0 %v1248
      %v1751 = vpop.f32.mrf.mxu0
      %v1752 = vadd.f32 0.0, %v1751
      %v1753 = vpop.f32.mrf.mxu0
      %v1754 = vadd.f32 0.0, %v1753
      %1755 = vmatmul.bf16.gmra.mxu0 %v1249
      %v1756 = vpop.f32.mrf.mxu0
      %v1757 = vadd.f32 0.0, %v1756
      %v1758 = vpop.f32.mrf.mxu0
      %v1759 = vadd.f32 0.0, %v1758
      %1760 = vdwg.mxu0
      %v1761 = vadd.f32 %v1508, %v1672
      %v1762 = vadd.f32 %v1510, %v1674
      %v1763 = vadd.f32 %v1513, %v1677
      %v1764 = vadd.f32 %v1515, %v1679
      %v1765 = vadd.f32 %v1518, %v1682
      %v1766 = vadd.f32 %v1520, %v1684
      %v1767 = vadd.f32 %v1523, %v1687
      %v1768 = vadd.f32 %v1525, %v1689
      %v1769 = vadd.f32 %v1528, %v1692
      %v1770 = vadd.f32 %v1530, %v1694
      %v1771 = vadd.f32 %v1533, %v1697
      %v1772 = vadd.f32 %v1535, %v1699
      %v1773 = vadd.f32 %v1538, %v1702
      %v1774 = vadd.f32 %v1540, %v1704
      %v1775 = vadd.f32 %v1543, %v1707
      %v1776 = vadd.f32 %v1545, %v1709
      %v1777 = vadd.f32 %v1548, %v1712
      %v1778 = vadd.f32 %v1550, %v1714
      %v1779 = vadd.f32 %v1553, %v1717
      %v1780 = vadd.f32 %v1555, %v1719
      %v1781 = vadd.f32 %v1558, %v1722
      %v1782 = vadd.f32 %v1560, %v1724
      %v1783 = vadd.f32 %v1563, %v1727
      %v1784 = vadd.f32 %v1565, %v1729
      %v1785 = vadd.f32 %v1568, %v1732
      %v1786 = vadd.f32 %v1570, %v1734
      %v1787 = vadd.f32 %v1573, %v1737
      %v1788 = vadd.f32 %v1575, %v1739
      %v1789 = vadd.f32 %v1578, %v1742
      %v1790 = vadd.f32 %v1580, %v1744
      %v1791 = vadd.f32 %v1583, %v1747
      %v1792 = vadd.f32 %v1585, %v1749
      %v1793 = vadd.f32 %v1588, %v1752
      %v1794 = vadd.f32 %v1590, %v1754
      %v1795 = vadd.f32 %v1593, %v1757
      %v1796 = vadd.f32 %v1595, %v1759
      %s1797 = scalar_lea.vmem %s2, 192
      %v1798 = vld [vmem:[%s1797] sm:$0xf]
      %v1799 = vld [vmem:[%s1797 + $0x4] sm:$0xf]
      %v1800 = vld [vmem:[%s1797 + $0x8] sm:$0xf]
      %v1801 = vld [vmem:[%s1797 + $0xc] sm:$0xf]
      %v1802 = vld [vmem:[%s1797 + $0x10] sm:$0xf]
      %v1803 = vld [vmem:[%s1797 + $0x14] sm:$0xf]
      %v1804 = vld [vmem:[%s1797 + $0x18] sm:$0xf]
      %v1805 = vld [vmem:[%s1797 + $0x1c] sm:$0xf]
      %v1806 = vld [vmem:[%s1797 + $0x20] sm:$0xf]
      %v1807 = vld [vmem:[%s1797 + $0x24] sm:$0xf]
      %v1808 = vld [vmem:[%s1797 + $0x28] sm:$0xf]
      %v1809 = vld [vmem:[%s1797 + $0x2c] sm:$0xf]
      %v1810 = vld [vmem:[%s1797 + $0x30] sm:$0xf]
      %v1811 = vld [vmem:[%s1797 + $0x34] sm:$0xf]
      %v1812 = vld [vmem:[%s1797 + $0x38] sm:$0xf]
      %v1813 = vld [vmem:[%s1797 + $0x3c] sm:$0xf]
      %v1830 = vunpack.c.l.b16 %v1798
      %v1831 = vunpack.c.l.b16 %v1799
      %v1832 = vunpack.c.l.b16 %v1800
      %v1833 = vunpack.c.l.b16 %v1801
      %v1834 = vunpack.c.l.b16 %v1802
      %v1835 = vunpack.c.l.b16 %v1803
      %v1836 = vunpack.c.l.b16 %v1804
      %v1837 = vunpack.c.l.b16 %v1805
      %v1838 = vunpack.c.l.b16 %v1806
      %v1839 = vunpack.c.l.b16 %v1807
      %v1840 = vunpack.c.l.b16 %v1808
      %v1841 = vunpack.c.l.b16 %v1809
      %v1842 = vunpack.c.l.b16 %v1810
      %v1843 = vunpack.c.l.b16 %v1811
      %v1844 = vunpack.c.l.b16 %v1812
      %v1845 = vunpack.c.l.b16 %v1813
      %v1846 = vpack.c.b16 %v1831, %v1830
      %v1847 = vpack.c.b16 %v1833, %v1832
      %v1848 = vpack.c.b16 %v1835, %v1834
      %v1849 = vpack.c.b16 %v1837, %v1836
      %v1850 = vpack.c.b16 %v1839, %v1838
      %v1851 = vpack.c.b16 %v1841, %v1840
      %v1852 = vpack.c.b16 %v1843, %v1842
      %v1853 = vpack.c.b16 %v1845, %v1844
      %1862 = vmatpush.bf16.msra.mxu0 %v1853
      %1863 = vmatpush.bf16.msra.mxu0 %v1852
      %1864 = vmatpush.bf16.msra.mxu0 %v1851
      %1865 = vmatpush.bf16.msra.mxu0 %v1850
      %1866 = vmatpush.bf16.msra.mxu0 %v1849
      %1867 = vmatpush.bf16.msra.mxu0 %v1848
      %1868 = vmatpush.bf16.msra.mxu0 %v1847
      %1869 = vmatpush.bf16.msra.mxu0 %v1846
      %1870 = vmatmul.bf16.gmra.mxu0 %v1150
      %v1871 = vpop.f32.mrf.mxu0
      %v1872 = vadd.f32 0.0, %v1871
      %v1873 = vpop.f32.mrf.mxu0
      %v1874 = vadd.f32 0.0, %v1873
      %1875 = vmatmul.bf16.gmra.mxu0 %v1151
      %v1876 = vpop.f32.mrf.mxu0
      %v1877 = vadd.f32 0.0, %v1876
      %v1878 = vpop.f32.mrf.mxu0
      %v1879 = vadd.f32 0.0, %v1878
      %1880 = vmatmul.bf16.gmra.mxu0 %v1152
      %v1881 = vpop.f32.mrf.mxu0
      %v1882 = vadd.f32 0.0, %v1881
      %v1883 = vpop.f32.mrf.mxu0
      %v1884 = vadd.f32 0.0, %v1883
      %1885 = vmatmul.bf16.gmra.mxu0 %v1153
      %v1886 = vpop.f32.mrf.mxu0
      %v1887 = vadd.f32 0.0, %v1886
      %v1888 = vpop.f32.mrf.mxu0
      %v1889 = vadd.f32 0.0, %v1888
      %1890 = vmatmul.bf16.gmra.mxu0 %v1154
      %v1891 = vpop.f32.mrf.mxu0
      %v1892 = vadd.f32 0.0, %v1891
      %v1893 = vpop.f32.mrf.mxu0
      %v1894 = vadd.f32 0.0, %v1893
      %1895 = vmatmul.bf16.gmra.mxu0 %v1155
      %v1896 = vpop.f32.mrf.mxu0
      %v1897 = vadd.f32 0.0, %v1896
      %v1898 = vpop.f32.mrf.mxu0
      %v1899 = vadd.f32 0.0, %v1898
      %1900 = vmatmul.bf16.gmra.mxu0 %v1156
      %v1901 = vpop.f32.mrf.mxu0
      %v1902 = vadd.f32 0.0, %v1901
      %v1903 = vpop.f32.mrf.mxu0
      %v1904 = vadd.f32 0.0, %v1903
      %1905 = vmatmul.bf16.gmra.mxu0 %v1157
      %v1906 = vpop.f32.mrf.mxu0
      %v1907 = vadd.f32 0.0, %v1906
      %v1908 = vpop.f32.mrf.mxu0
      %v1909 = vadd.f32 0.0, %v1908
      %1910 = vmatmul.bf16.gmra.mxu0 %v1158
      %v1911 = vpop.f32.mrf.mxu0
      %v1912 = vadd.f32 0.0, %v1911
      %v1913 = vpop.f32.mrf.mxu0
      %v1914 = vadd.f32 0.0, %v1913
      %1915 = vmatmul.bf16.gmra.mxu0 %v1159
      %v1916 = vpop.f32.mrf.mxu0
      %v1917 = vadd.f32 0.0, %v1916
      %v1918 = vpop.f32.mrf.mxu0
      %v1919 = vadd.f32 0.0, %v1918
      %1920 = vmatmul.bf16.gmra.mxu0 %v1160
      %v1921 = vpop.f32.mrf.mxu0
      %v1922 = vadd.f32 0.0, %v1921
      %v1923 = vpop.f32.mrf.mxu0
      %v1924 = vadd.f32 0.0, %v1923
      %1925 = vmatmul.bf16.gmra.mxu0 %v1161
      %v1926 = vpop.f32.mrf.mxu0
      %v1927 = vadd.f32 0.0, %v1926
      %v1928 = vpop.f32.mrf.mxu0
      %v1929 = vadd.f32 0.0, %v1928
      %1930 = vmatmul.bf16.gmra.mxu0 %v1162
      %v1931 = vpop.f32.mrf.mxu0
      %v1932 = vadd.f32 0.0, %v1931
      %v1933 = vpop.f32.mrf.mxu0
      %v1934 = vadd.f32 0.0, %v1933
      %1935 = vmatmul.bf16.gmra.mxu0 %v1163
      %v1936 = vpop.f32.mrf.mxu0
      %v1937 = vadd.f32 0.0, %v1936
      %v1938 = vpop.f32.mrf.mxu0
      %v1939 = vadd.f32 0.0, %v1938
      %1940 = vmatmul.bf16.gmra.mxu0 %v1164
      %v1941 = vpop.f32.mrf.mxu0
      %v1942 = vadd.f32 0.0, %v1941
      %v1943 = vpop.f32.mrf.mxu0
      %v1944 = vadd.f32 0.0, %v1943
      %1945 = vmatmul.bf16.gmra.mxu0 %v1165
      %v1946 = vpop.f32.mrf.mxu0
      %v1947 = vadd.f32 0.0, %v1946
      %v1948 = vpop.f32.mrf.mxu0
      %v1949 = vadd.f32 0.0, %v1948
      %1950 = vmatmul.bf16.gmra.mxu0 %v1166
      %v1951 = vpop.f32.mrf.mxu0
      %v1952 = vadd.f32 0.0, %v1951
      %v1953 = vpop.f32.mrf.mxu0
      %v1954 = vadd.f32 0.0, %v1953
      %1955 = vmatmul.bf16.gmra.mxu0 %v1167
      %v1956 = vpop.f32.mrf.mxu0
      %v1957 = vadd.f32 0.0, %v1956
      %v1958 = vpop.f32.mrf.mxu0
      %v1959 = vadd.f32 0.0, %v1958
      %1960 = vdwg.mxu0
      %v1961 = vadd.f32 %v1761, %v1872
      %v1962 = vadd.f32 %v1762, %v1874
      %v1963 = vadd.f32 %v1763, %v1877
      %v1964 = vadd.f32 %v1764, %v1879
      %v1965 = vadd.f32 %v1765, %v1882
      %v1966 = vadd.f32 %v1766, %v1884
      %v1967 = vadd.f32 %v1767, %v1887
      %v1968 = vadd.f32 %v1768, %v1889
      %v1969 = vadd.f32 %v1769, %v1892
      %v1970 = vadd.f32 %v1770, %v1894
      %v1971 = vadd.f32 %v1771, %v1897
      %v1972 = vadd.f32 %v1772, %v1899
      %v1973 = vadd.f32 %v1773, %v1902
      %v1974 = vadd.f32 %v1774, %v1904
      %v1975 = vadd.f32 %v1775, %v1907
      %v1976 = vadd.f32 %v1776, %v1909
      %v1977 = vadd.f32 %v1777, %v1912
      %v1978 = vadd.f32 %v1778, %v1914
      %v1979 = vadd.f32 %v1779, %v1917
      %v1980 = vadd.f32 %v1780, %v1919
      %v1981 = vadd.f32 %v1781, %v1922
      %v1982 = vadd.f32 %v1782, %v1924
      %v1983 = vadd.f32 %v1783, %v1927
      %v1984 = vadd.f32 %v1784, %v1929
      %v1985 = vadd.f32 %v1785, %v1932
      %v1986 = vadd.f32 %v1786, %v1934
      %v1987 = vadd.f32 %v1787, %v1937
      %v1988 = vadd.f32 %v1788, %v1939
      %v1989 = vadd.f32 %v1789, %v1942
      %v1990 = vadd.f32 %v1790, %v1944
      %v1991 = vadd.f32 %v1791, %v1947
      %v1992 = vadd.f32 %v1792, %v1949
      %v1993 = vadd.f32 %v1793, %v1952
      %v1994 = vadd.f32 %v1794, %v1954
      %v1995 = vadd.f32 %v1795, %v1957
      %v1996 = vadd.f32 %v1796, %v1959
      %s1997 = scalar_lea.vmem %s2, 256
      %v1998 = vld [vmem:[%s1997] sm:$0xf]
      %v1999 = vld [vmem:[%s1997 + $0x4] sm:$0xf]
      %v2000 = vld [vmem:[%s1997 + $0x8] sm:$0xf]
      %v2001 = vld [vmem:[%s1997 + $0xc] sm:$0xf]
      %v2002 = vld [vmem:[%s1997 + $0x10] sm:$0xf]
      %v2003 = vld [vmem:[%s1997 + $0x14] sm:$0xf]
      %v2004 = vld [vmem:[%s1997 + $0x18] sm:$0xf]
      %v2005 = vld [vmem:[%s1997 + $0x1c] sm:$0xf]
      %v2006 = vld [vmem:[%s1997 + $0x20] sm:$0xf]
      %v2007 = vld [vmem:[%s1997 + $0x24] sm:$0xf]
      %v2008 = vld [vmem:[%s1997 + $0x28] sm:$0xf]
      %v2009 = vld [vmem:[%s1997 + $0x2c] sm:$0xf]
      %v2010 = vld [vmem:[%s1997 + $0x30] sm:$0xf]
      %v2011 = vld [vmem:[%s1997 + $0x34] sm:$0xf]
      %v2012 = vld [vmem:[%s1997 + $0x38] sm:$0xf]
      %v2013 = vld [vmem:[%s1997 + $0x3c] sm:$0xf]
      %v2031 = vunpack.c.l.b16 %v1998
      %v2032 = vunpack.c.l.b16 %v1999
      %v2033 = vunpack.c.l.b16 %v2000
      %v2034 = vunpack.c.l.b16 %v2001
      %v2035 = vunpack.c.l.b16 %v2002
      %v2036 = vunpack.c.l.b16 %v2003
      %v2037 = vunpack.c.l.b16 %v2004
      %v2038 = vunpack.c.l.b16 %v2005
      %v2039 = vunpack.c.l.b16 %v2006
      %v2040 = vunpack.c.l.b16 %v2007
      %v2041 = vunpack.c.l.b16 %v2008
      %v2042 = vunpack.c.l.b16 %v2009
      %v2043 = vunpack.c.l.b16 %v2010
      %v2044 = vunpack.c.l.b16 %v2011
      %v2045 = vunpack.c.l.b16 %v2012
      %v2046 = vunpack.c.l.b16 %v2013
      %v2047 = vpack.c.b16 %v2032, %v2031
      %v2048 = vpack.c.b16 %v2034, %v2033
      %v2049 = vpack.c.b16 %v2036, %v2035
      %v2050 = vpack.c.b16 %v2038, %v2037
      %v2051 = vpack.c.b16 %v2040, %v2039
      %v2052 = vpack.c.b16 %v2042, %v2041
      %v2053 = vpack.c.b16 %v2044, %v2043
      %v2054 = vpack.c.b16 %v2046, %v2045
      %2063 = vmatpush.bf16.msra.mxu0 %v2054
      %2064 = vmatpush.bf16.msra.mxu0 %v2053
      %2065 = vmatpush.bf16.msra.mxu0 %v2052
      %2066 = vmatpush.bf16.msra.mxu0 %v2051
      %2067 = vmatpush.bf16.msra.mxu0 %v2050
      %2068 = vmatpush.bf16.msra.mxu0 %v2049
      %2069 = vmatpush.bf16.msra.mxu0 %v2048
      %2070 = vmatpush.bf16.msra.mxu0 %v2047
      %2071 = vmatmul.bf16.gmra.mxu0 %v967
      %v2072 = vpop.f32.mrf.mxu0
      %v2073 = vadd.f32 0.0, %v2072
      %v2074 = vpop.f32.mrf.mxu0
      %v2075 = vadd.f32 0.0, %v2074
      %2076 = vmatmul.bf16.gmra.mxu0 %v968
      %v2077 = vpop.f32.mrf.mxu0
      %v2078 = vadd.f32 0.0, %v2077
      %v2079 = vpop.f32.mrf.mxu0
      %v2080 = vadd.f32 0.0, %v2079
      %2081 = vmatmul.bf16.gmra.mxu0 %v969
      %v2082 = vpop.f32.mrf.mxu0
      %v2083 = vadd.f32 0.0, %v2082
      %v2084 = vpop.f32.mrf.mxu0
      %v2085 = vadd.f32 0.0, %v2084
      %2086 = vmatmul.bf16.gmra.mxu0 %v970
      %v2087 = vpop.f32.mrf.mxu0
      %v2088 = vadd.f32 0.0, %v2087
      %v2089 = vpop.f32.mrf.mxu0
      %v2090 = vadd.f32 0.0, %v2089
      %2091 = vmatmul.bf16.gmra.mxu0 %v971
      %v2092 = vpop.f32.mrf.mxu0
      %v2093 = vadd.f32 0.0, %v2092
      %v2094 = vpop.f32.mrf.mxu0
      %v2095 = vadd.f32 0.0, %v2094
      %2096 = vmatmul.bf16.gmra.mxu0 %v972
      %v2097 = vpop.f32.mrf.mxu0
      %v2098 = vadd.f32 0.0, %v2097
      %v2099 = vpop.f32.mrf.mxu0
      %v2100 = vadd.f32 0.0, %v2099
      %2101 = vmatmul.bf16.gmra.mxu0 %v973
      %v2102 = vpop.f32.mrf.mxu0
      %v2103 = vadd.f32 0.0, %v2102
      %v2104 = vpop.f32.mrf.mxu0
      %v2105 = vadd.f32 0.0, %v2104
      %2106 = vmatmul.bf16.gmra.mxu0 %v974
      %v2107 = vpop.f32.mrf.mxu0
      %v2108 = vadd.f32 0.0, %v2107
      %v2109 = vpop.f32.mrf.mxu0
      %v2110 = vadd.f32 0.0, %v2109
      %2111 = vmatmul.bf16.gmra.mxu0 %v975
      %v2112 = vpop.f32.mrf.mxu0
      %v2113 = vadd.f32 0.0, %v2112
      %v2114 = vpop.f32.mrf.mxu0
      %v2115 = vadd.f32 0.0, %v2114
      %2116 = vmatmul.bf16.gmra.mxu0 %v976
      %v2117 = vpop.f32.mrf.mxu0
      %v2118 = vadd.f32 0.0, %v2117
      %v2119 = vpop.f32.mrf.mxu0
      %v2120 = vadd.f32 0.0, %v2119
      %2121 = vmatmul.bf16.gmra.mxu0 %v977
      %v2122 = vpop.f32.mrf.mxu0
      %v2123 = vadd.f32 0.0, %v2122
      %v2124 = vpop.f32.mrf.mxu0
      %v2125 = vadd.f32 0.0, %v2124
      %2126 = vmatmul.bf16.gmra.mxu0 %v978
      %v2127 = vpop.f32.mrf.mxu0
      %v2128 = vadd.f32 0.0, %v2127
      %v2129 = vpop.f32.mrf.mxu0
      %v2130 = vadd.f32 0.0, %v2129
      %2131 = vmatmul.bf16.gmra.mxu0 %v979
      %v2132 = vpop.f32.mrf.mxu0
      %v2133 = vadd.f32 0.0, %v2132
      %v2134 = vpop.f32.mrf.mxu0
      %v2135 = vadd.f32 0.0, %v2134
      %2136 = vmatmul.bf16.gmra.mxu0 %v980
      %v2137 = vpop.f32.mrf.mxu0
      %v2138 = vadd.f32 0.0, %v2137
      %v2139 = vpop.f32.mrf.mxu0
      %v2140 = vadd.f32 0.0, %v2139
      %2141 = vmatmul.bf16.gmra.mxu0 %v981
      %v2142 = vpop.f32.mrf.mxu0
      %v2143 = vadd.f32 0.0, %v2142
      %v2144 = vpop.f32.mrf.mxu0
      %v2145 = vadd.f32 0.0, %v2144
      %2146 = vmatmul.bf16.gmra.mxu0 %v982
      %v2147 = vpop.f32.mrf.mxu0
      %v2148 = vadd.f32 0.0, %v2147
      %v2149 = vpop.f32.mrf.mxu0
      %v2150 = vadd.f32 0.0, %v2149
      %2151 = vmatmul.bf16.gmra.mxu0 %v983
      %v2152 = vpop.f32.mrf.mxu0
      %v2153 = vadd.f32 0.0, %v2152
      %v2154 = vpop.f32.mrf.mxu0
      %v2155 = vadd.f32 0.0, %v2154
      %2156 = vmatmul.bf16.gmra.mxu0 %v984
      %v2157 = vpop.f32.mrf.mxu0
      %v2158 = vadd.f32 0.0, %v2157
      %v2159 = vpop.f32.mrf.mxu0
      %v2160 = vadd.f32 0.0, %v2159
      %2161 = vdwg.mxu0
      %v2162 = vadd.f32 %v1961, %v2073
      %v2163 = vadd.f32 %v1962, %v2075
      %v2164 = vadd.f32 %v1963, %v2078
      %v2165 = vadd.f32 %v1964, %v2080
      %v2166 = vadd.f32 %v1965, %v2083
      %v2167 = vadd.f32 %v1966, %v2085
      %v2168 = vadd.f32 %v1967, %v2088
      %v2169 = vadd.f32 %v1968, %v2090
      %v2170 = vadd.f32 %v1969, %v2093
      %v2171 = vadd.f32 %v1970, %v2095
      %v2172 = vadd.f32 %v1971, %v2098
      %v2173 = vadd.f32 %v1972, %v2100
      %v2174 = vadd.f32 %v1973, %v2103
      %v2175 = vadd.f32 %v1974, %v2105
      %v2176 = vadd.f32 %v1975, %v2108
      %v2177 = vadd.f32 %v1976, %v2110
      %v2178 = vadd.f32 %v1977, %v2113
      %v2179 = vadd.f32 %v1978, %v2115
      %v2180 = vadd.f32 %v1979, %v2118
      %v2181 = vadd.f32 %v1980, %v2120
      %v2182 = vadd.f32 %v1981, %v2123
      %v2183 = vadd.f32 %v1982, %v2125
      %v2184 = vadd.f32 %v1983, %v2128
      %v2185 = vadd.f32 %v1984, %v2130
      %v2186 = vadd.f32 %v1985, %v2133
      %v2187 = vadd.f32 %v1986, %v2135
      %v2188 = vadd.f32 %v1987, %v2138
      %v2189 = vadd.f32 %v1988, %v2140
      %v2190 = vadd.f32 %v1989, %v2143
      %v2191 = vadd.f32 %v1990, %v2145
      %v2192 = vadd.f32 %v1991, %v2148
      %v2193 = vadd.f32 %v1992, %v2150
      %v2194 = vadd.f32 %v1993, %v2153
      %v2195 = vadd.f32 %v1994, %v2155
      %v2196 = vadd.f32 %v1995, %v2158
      %v2197 = vadd.f32 %v1996, %v2160
      %s2198 = scalar_lea.vmem %s2, 320
      %v2199 = vld [vmem:[%s2198] sm:$0xf]
      %v2200 = vld [vmem:[%s2198 + $0x4] sm:$0xf]
      %v2201 = vld [vmem:[%s2198 + $0x8] sm:$0xf]
      %v2202 = vld [vmem:[%s2198 + $0xc] sm:$0xf]
      %v2203 = vld [vmem:[%s2198 + $0x10] sm:$0xf]
      %v2204 = vld [vmem:[%s2198 + $0x14] sm:$0xf]
      %v2205 = vld [vmem:[%s2198 + $0x18] sm:$0xf]
      %v2206 = vld [vmem:[%s2198 + $0x1c] sm:$0xf]
      %v2207 = vld [vmem:[%s2198 + $0x20] sm:$0xf]
      %v2208 = vld [vmem:[%s2198 + $0x24] sm:$0xf]
      %v2209 = vld [vmem:[%s2198 + $0x28] sm:$0xf]
      %v2210 = vld [vmem:[%s2198 + $0x2c] sm:$0xf]
      %v2211 = vld [vmem:[%s2198 + $0x30] sm:$0xf]
      %v2212 = vld [vmem:[%s2198 + $0x34] sm:$0xf]
      %v2213 = vld [vmem:[%s2198 + $0x38] sm:$0xf]
      %v2214 = vld [vmem:[%s2198 + $0x3c] sm:$0xf]
      %v2231 = vunpack.c.l.b16 %v2199
      %v2232 = vunpack.c.l.b16 %v2200
      %v2233 = vunpack.c.l.b16 %v2201
      %v2234 = vunpack.c.l.b16 %v2202
      %v2235 = vunpack.c.l.b16 %v2203
      %v2236 = vunpack.c.l.b16 %v2204
      %v2237 = vunpack.c.l.b16 %v2205
      %v2238 = vunpack.c.l.b16 %v2206
      %v2239 = vunpack.c.l.b16 %v2207
      %v2240 = vunpack.c.l.b16 %v2208
      %v2241 = vunpack.c.l.b16 %v2209
      %v2242 = vunpack.c.l.b16 %v2210
      %v2243 = vunpack.c.l.b16 %v2211
      %v2244 = vunpack.c.l.b16 %v2212
      %v2245 = vunpack.c.l.b16 %v2213
      %v2246 = vunpack.c.l.b16 %v2214
      %v2247 = vpack.c.b16 %v2232, %v2231
      %v2248 = vpack.c.b16 %v2234, %v2233
      %v2249 = vpack.c.b16 %v2236, %v2235
      %v2250 = vpack.c.b16 %v2238, %v2237
      %v2251 = vpack.c.b16 %v2240, %v2239
      %v2252 = vpack.c.b16 %v2242, %v2241
      %v2253 = vpack.c.b16 %v2244, %v2243
      %v2254 = vpack.c.b16 %v2246, %v2245
      %2263 = vmatpush.bf16.msra.mxu0 %v2254
      %2264 = vmatpush.bf16.msra.mxu0 %v2253
      %2265 = vmatpush.bf16.msra.mxu0 %v2252
      %2266 = vmatpush.bf16.msra.mxu0 %v2251
      %2267 = vmatpush.bf16.msra.mxu0 %v2250
      %2268 = vmatpush.bf16.msra.mxu0 %v2249
      %2269 = vmatpush.bf16.msra.mxu0 %v2248
      %2270 = vmatpush.bf16.msra.mxu0 %v2247
      %2271 = vmatmul.bf16.gmra.mxu0 %v1233
      %v2272 = vpop.f32.mrf.mxu0
      %v2273 = vadd.f32 0.0, %v2272
      %v2274 = vpop.f32.mrf.mxu0
      %v2275 = vadd.f32 0.0, %v2274
      %2276 = vmatmul.bf16.gmra.mxu0 %v1234
      %v2277 = vpop.f32.mrf.mxu0
      %v2278 = vadd.f32 0.0, %v2277
      %v2279 = vpop.f32.mrf.mxu0
      %v2280 = vadd.f32 0.0, %v2279
      %2281 = vmatmul.bf16.gmra.mxu0 %v1235
      %v2282 = vpop.f32.mrf.mxu0
      %v2283 = vadd.f32 0.0, %v2282
      %v2284 = vpop.f32.mrf.mxu0
      %v2285 = vadd.f32 0.0, %v2284
      %2286 = vmatmul.bf16.gmra.mxu0 %v1236
      %v2287 = vpop.f32.mrf.mxu0
      %v2288 = vadd.f32 0.0, %v2287
      %v2289 = vpop.f32.mrf.mxu0
      %v2290 = vadd.f32 0.0, %v2289
      %2291 = vmatmul.bf16.gmra.mxu0 %v1237
      %v2292 = vpop.f32.mrf.mxu0
      %v2293 = vadd.f32 0.0, %v2292
      %v2294 = vpop.f32.mrf.mxu0
      %v2295 = vadd.f32 0.0, %v2294
      %2296 = vmatmul.bf16.gmra.mxu0 %v1238
      %v2297 = vpop.f32.mrf.mxu0
      %v2298 = vadd.f32 0.0, %v2297
      %v2299 = vpop.f32.mrf.mxu0
      %v2300 = vadd.f32 0.0, %v2299
      %2301 = vmatmul.bf16.gmra.mxu0 %v1239
      %v2302 = vpop.f32.mrf.mxu0
      %v2303 = vadd.f32 0.0, %v2302
      %v2304 = vpop.f32.mrf.mxu0
      %v2305 = vadd.f32 0.0, %v2304
      %2306 = vmatmul.bf16.gmra.mxu0 %v1240
      %v2307 = vpop.f32.mrf.mxu0
      %v2308 = vadd.f32 0.0, %v2307
      %v2309 = vpop.f32.mrf.mxu0
      %v2310 = vadd.f32 0.0, %v2309
      %2311 = vmatmul.bf16.gmra.mxu0 %v1241
      %v2312 = vpop.f32.mrf.mxu0
      %v2313 = vadd.f32 0.0, %v2312
      %v2314 = vpop.f32.mrf.mxu0
      %v2315 = vadd.f32 0.0, %v2314
      %2316 = vmatmul.bf16.gmra.mxu0 %v1242
      %v2317 = vpop.f32.mrf.mxu0
      %v2318 = vadd.f32 0.0, %v2317
      %v2319 = vpop.f32.mrf.mxu0
      %v2320 = vadd.f32 0.0, %v2319
      %2321 = vmatmul.bf16.gmra.mxu0 %v1243
      %v2322 = vpop.f32.mrf.mxu0
      %v2323 = vadd.f32 0.0, %v2322
      %v2324 = vpop.f32.mrf.mxu0
      %v2325 = vadd.f32 0.0, %v2324
      %2326 = vmatmul.bf16.gmra.mxu0 %v1244
      %v2327 = vpop.f32.mrf.mxu0
      %v2328 = vadd.f32 0.0, %v2327
      %v2329 = vpop.f32.mrf.mxu0
      %v2330 = vadd.f32 0.0, %v2329
      %2331 = vmatmul.bf16.gmra.mxu0 %v1245
      %v2332 = vpop.f32.mrf.mxu0
      %v2333 = vadd.f32 0.0, %v2332
      %v2334 = vpop.f32.mrf.mxu0
      %v2335 = vadd.f32 0.0, %v2334
      %2336 = vmatmul.bf16.gmra.mxu0 %v1246
      %v2337 = vpop.f32.mrf.mxu0
      %v2338 = vadd.f32 0.0, %v2337
      %v2339 = vpop.f32.mrf.mxu0
      %v2340 = vadd.f32 0.0, %v2339
      %2341 = vmatmul.bf16.gmra.mxu0 %v1247
      %v2342 = vpop.f32.mrf.mxu0
      %v2343 = vadd.f32 0.0, %v2342
      %v2344 = vpop.f32.mrf.mxu0
      %v2345 = vadd.f32 0.0, %v2344
      %2346 = vmatmul.bf16.gmra.mxu0 %v1248
      %v2347 = vpop.f32.mrf.mxu0
      %v2348 = vadd.f32 0.0, %v2347
      %v2349 = vpop.f32.mrf.mxu0
      %v2350 = vadd.f32 0.0, %v2349
      %2351 = vmatmul.bf16.gmra.mxu0 %v1249
      %v2352 = vpop.f32.mrf.mxu0
      %v2353 = vadd.f32 0.0, %v2352
      %v2354 = vpop.f32.mrf.mxu0
      %v2355 = vadd.f32 0.0, %v2354
      %2356 = vmatmul.bf16.gmra.mxu0 %v1250
      %v2357 = vpop.f32.mrf.mxu0
      %v2358 = vadd.f32 0.0, %v2357
      %v2359 = vpop.f32.mrf.mxu0
      %v2360 = vadd.f32 0.0, %v2359
      %2361 = vdwg.mxu0
      %v2362 = vadd.f32 %v2162, %v2273
      %v2363 = vadd.f32 %v2163, %v2275
      %v2364 = vadd.f32 %v2164, %v2278
      %v2365 = vadd.f32 %v2165, %v2280
      %v2366 = vadd.f32 %v2166, %v2283
      %v2367 = vadd.f32 %v2167, %v2285
      %v2368 = vadd.f32 %v2168, %v2288
      %v2369 = vadd.f32 %v2169, %v2290
      %v2370 = vadd.f32 %v2170, %v2293
      %v2371 = vadd.f32 %v2171, %v2295
      %v2372 = vadd.f32 %v2172, %v2298
      %v2373 = vadd.f32 %v2173, %v2300
      %v2374 = vadd.f32 %v2174, %v2303
      %v2375 = vadd.f32 %v2175, %v2305
      %v2376 = vadd.f32 %v2176, %v2308
      %v2377 = vadd.f32 %v2177, %v2310
      %v2378 = vadd.f32 %v2178, %v2313
      %v2379 = vadd.f32 %v2179, %v2315
      %v2380 = vadd.f32 %v2180, %v2318
      %v2381 = vadd.f32 %v2181, %v2320
      %v2382 = vadd.f32 %v2182, %v2323
      %v2383 = vadd.f32 %v2183, %v2325
      %v2384 = vadd.f32 %v2184, %v2328
      %v2385 = vadd.f32 %v2185, %v2330
      %v2386 = vadd.f32 %v2186, %v2333
      %v2387 = vadd.f32 %v2187, %v2335
      %v2388 = vadd.f32 %v2188, %v2338
      %v2389 = vadd.f32 %v2189, %v2340
      %v2390 = vadd.f32 %v2190, %v2343
      %v2391 = vadd.f32 %v2191, %v2345
      %v2392 = vadd.f32 %v2192, %v2348
      %v2393 = vadd.f32 %v2193, %v2350
      %v2394 = vadd.f32 %v2194, %v2353
      %v2395 = vadd.f32 %v2195, %v2355
      %v2396 = vadd.f32 %v2196, %v2358
      %v2397 = vadd.f32 %v2197, %v2360
      %s2398 = scalar_lea.vmem %s2, 384
      %v2399 = vld [vmem:[%s2398] sm:$0xf]
      %v2400 = vld [vmem:[%s2398 + $0x4] sm:$0xf]
      %v2401 = vld [vmem:[%s2398 + $0x8] sm:$0xf]
      %v2402 = vld [vmem:[%s2398 + $0xc] sm:$0xf]
      %v2403 = vld [vmem:[%s2398 + $0x10] sm:$0xf]
      %v2404 = vld [vmem:[%s2398 + $0x14] sm:$0xf]
      %v2405 = vld [vmem:[%s2398 + $0x18] sm:$0xf]
      %v2406 = vld [vmem:[%s2398 + $0x1c] sm:$0xf]
      %v2407 = vld [vmem:[%s2398 + $0x20] sm:$0xf]
      %v2408 = vld [vmem:[%s2398 + $0x24] sm:$0xf]
      %v2409 = vld [vmem:[%s2398 + $0x28] sm:$0xf]
      %v2410 = vld [vmem:[%s2398 + $0x2c] sm:$0xf]
      %v2411 = vld [vmem:[%s2398 + $0x30] sm:$0xf]
      %v2412 = vld [vmem:[%s2398 + $0x34] sm:$0xf]
      %v2413 = vld [vmem:[%s2398 + $0x38] sm:$0xf]
      %v2414 = vld [vmem:[%s2398 + $0x3c] sm:$0xf]
      %v2431 = vunpack.c.l.b16 %v2399
      %v2432 = vunpack.c.l.b16 %v2400
      %v2433 = vunpack.c.l.b16 %v2401
      %v2434 = vunpack.c.l.b16 %v2402
      %v2435 = vunpack.c.l.b16 %v2403
      %v2436 = vunpack.c.l.b16 %v2404
      %v2437 = vunpack.c.l.b16 %v2405
      %v2438 = vunpack.c.l.b16 %v2406
      %v2439 = vunpack.c.l.b16 %v2407
      %v2440 = vunpack.c.l.b16 %v2408
      %v2441 = vunpack.c.l.b16 %v2409
      %v2442 = vunpack.c.l.b16 %v2410
      %v2443 = vunpack.c.l.b16 %v2411
      %v2444 = vunpack.c.l.b16 %v2412
      %v2445 = vunpack.c.l.b16 %v2413
      %v2446 = vunpack.c.l.b16 %v2414
      %v2447 = vpack.c.b16 %v2432, %v2431
      %v2448 = vpack.c.b16 %v2434, %v2433
      %v2449 = vpack.c.b16 %v2436, %v2435
      %v2450 = vpack.c.b16 %v2438, %v2437
      %v2451 = vpack.c.b16 %v2440, %v2439
      %v2452 = vpack.c.b16 %v2442, %v2441
      %v2453 = vpack.c.b16 %v2444, %v2443
      %v2454 = vpack.c.b16 %v2446, %v2445
      %2463 = vmatpush.bf16.msra.mxu0 %v2454
      %2464 = vmatpush.bf16.msra.mxu0 %v2453
      %2465 = vmatpush.bf16.msra.mxu0 %v2452
      %2466 = vmatpush.bf16.msra.mxu0 %v2451
      %2467 = vmatpush.bf16.msra.mxu0 %v2450
      %2468 = vmatpush.bf16.msra.mxu0 %v2449
      %2469 = vmatpush.bf16.msra.mxu0 %v2448
      %2470 = vmatpush.bf16.msra.mxu0 %v2447
      %2471 = vmatmul.bf16.gmra.mxu0 %v1151
      %v2472 = vpop.f32.mrf.mxu0
      %v2473 = vadd.f32 0.0, %v2472
      %v2474 = vpop.f32.mrf.mxu0
      %v2475 = vadd.f32 0.0, %v2474
      %2476 = vmatmul.bf16.gmra.mxu0 %v1152
      %v2477 = vpop.f32.mrf.mxu0
      %v2478 = vadd.f32 0.0, %v2477
      %v2479 = vpop.f32.mrf.mxu0
      %v2480 = vadd.f32 0.0, %v2479
      %2481 = vmatmul.bf16.gmra.mxu0 %v1153
      %v2482 = vpop.f32.mrf.mxu0
      %v2483 = vadd.f32 0.0, %v2482
      %v2484 = vpop.f32.mrf.mxu0
      %v2485 = vadd.f32 0.0, %v2484
      %2486 = vmatmul.bf16.gmra.mxu0 %v1154
      %v2487 = vpop.f32.mrf.mxu0
      %v2488 = vadd.f32 0.0, %v2487
      %v2489 = vpop.f32.mrf.mxu0
      %v2490 = vadd.f32 0.0, %v2489
      %2491 = vmatmul.bf16.gmra.mxu0 %v1155
      %v2492 = vpop.f32.mrf.mxu0
      %v2493 = vadd.f32 0.0, %v2492
      %v2494 = vpop.f32.mrf.mxu0
      %v2495 = vadd.f32 0.0, %v2494
      %2496 = vmatmul.bf16.gmra.mxu0 %v1156
      %v2497 = vpop.f32.mrf.mxu0
      %v2498 = vadd.f32 0.0, %v2497
      %v2499 = vpop.f32.mrf.mxu0
      %v2500 = vadd.f32 0.0, %v2499
      %2501 = vmatmul.bf16.gmra.mxu0 %v1157
      %v2502 = vpop.f32.mrf.mxu0
      %v2503 = vadd.f32 0.0, %v2502
      %v2504 = vpop.f32.mrf.mxu0
      %v2505 = vadd.f32 0.0, %v2504
      %2506 = vmatmul.bf16.gmra.mxu0 %v1158
      %v2507 = vpop.f32.mrf.mxu0
      %v2508 = vadd.f32 0.0, %v2507
      %v2509 = vpop.f32.mrf.mxu0
      %v2510 = vadd.f32 0.0, %v2509
      %2511 = vmatmul.bf16.gmra.mxu0 %v1159
      %v2512 = vpop.f32.mrf.mxu0
      %v2513 = vadd.f32 0.0, %v2512
      %v2514 = vpop.f32.mrf.mxu0
      %v2515 = vadd.f32 0.0, %v2514
      %2516 = vmatmul.bf16.gmra.mxu0 %v1160
      %v2517 = vpop.f32.mrf.mxu0
      %v2518 = vadd.f32 0.0, %v2517
      %v2519 = vpop.f32.mrf.mxu0
      %v2520 = vadd.f32 0.0, %v2519
      %2521 = vmatmul.bf16.gmra.mxu0 %v1161
      %v2522 = vpop.f32.mrf.mxu0
      %v2523 = vadd.f32 0.0, %v2522
      %v2524 = vpop.f32.mrf.mxu0
      %v2525 = vadd.f32 0.0, %v2524
      %2526 = vmatmul.bf16.gmra.mxu0 %v1162
      %v2527 = vpop.f32.mrf.mxu0
      %v2528 = vadd.f32 0.0, %v2527
      %v2529 = vpop.f32.mrf.mxu0
      %v2530 = vadd.f32 0.0, %v2529
      %2531 = vmatmul.bf16.gmra.mxu0 %v1163
      %v2532 = vpop.f32.mrf.mxu0
      %v2533 = vadd.f32 0.0, %v2532
      %v2534 = vpop.f32.mrf.mxu0
      %v2535 = vadd.f32 0.0, %v2534
      %2536 = vmatmul.bf16.gmra.mxu0 %v1164
      %v2537 = vpop.f32.mrf.mxu0
      %v2538 = vadd.f32 0.0, %v2537
      %v2539 = vpop.f32.mrf.mxu0
      %v2540 = vadd.f32 0.0, %v2539
      %2541 = vmatmul.bf16.gmra.mxu0 %v1165
      %v2542 = vpop.f32.mrf.mxu0
      %v2543 = vadd.f32 0.0, %v2542
      %v2544 = vpop.f32.mrf.mxu0
      %v2545 = vadd.f32 0.0, %v2544
      %2546 = vmatmul.bf16.gmra.mxu0 %v1166
      %v2547 = vpop.f32.mrf.mxu0
      %v2548 = vadd.f32 0.0, %v2547
      %v2549 = vpop.f32.mrf.mxu0
      %v2550 = vadd.f32 0.0, %v2549
      %2551 = vmatmul.bf16.gmra.mxu0 %v1167
      %v2552 = vpop.f32.mrf.mxu0
      %v2553 = vadd.f32 0.0, %v2552
      %v2554 = vpop.f32.mrf.mxu0
      %v2555 = vadd.f32 0.0, %v2554
      %2556 = vmatmul.bf16.gmra.mxu0 %v1168
      %v2557 = vpop.f32.mrf.mxu0
      %v2558 = vadd.f32 0.0, %v2557
      %v2559 = vpop.f32.mrf.mxu0
      %v2560 = vadd.f32 0.0, %v2559
      %2561 = vdwg.mxu0
      %v2562 = vadd.f32 %v2362, %v2473
      %v2563 = vadd.f32 %v2363, %v2475
      %v2564 = vadd.f32 %v2364, %v2478
      %v2565 = vadd.f32 %v2365, %v2480
      %v2566 = vadd.f32 %v2366, %v2483
      %v2567 = vadd.f32 %v2367, %v2485
      %v2568 = vadd.f32 %v2368, %v2488
      %v2569 = vadd.f32 %v2369, %v2490
      %v2570 = vadd.f32 %v2370, %v2493
      %v2571 = vadd.f32 %v2371, %v2495
      %v2572 = vadd.f32 %v2372, %v2498
      %v2573 = vadd.f32 %v2373, %v2500
      %v2574 = vadd.f32 %v2374, %v2503
      %v2575 = vadd.f32 %v2375, %v2505
      %v2576 = vadd.f32 %v2376, %v2508
      %v2577 = vadd.f32 %v2377, %v2510
      %v2578 = vadd.f32 %v2378, %v2513
      %v2579 = vadd.f32 %v2379, %v2515
      %v2580 = vadd.f32 %v2380, %v2518
      %v2581 = vadd.f32 %v2381, %v2520
      %v2582 = vadd.f32 %v2382, %v2523
      %v2583 = vadd.f32 %v2383, %v2525
      %v2584 = vadd.f32 %v2384, %v2528
      %v2585 = vadd.f32 %v2385, %v2530
      %v2586 = vadd.f32 %v2386, %v2533
      %v2587 = vadd.f32 %v2387, %v2535
      %v2588 = vadd.f32 %v2388, %v2538
      %v2589 = vadd.f32 %v2389, %v2540
      %v2590 = vadd.f32 %v2390, %v2543
      %v2591 = vadd.f32 %v2391, %v2545
      %v2592 = vadd.f32 %v2392, %v2548
      %v2593 = vadd.f32 %v2393, %v2550
      %v2594 = vadd.f32 %v2394, %v2553
      %v2595 = vadd.f32 %v2395, %v2555
      %v2596 = vadd.f32 %v2396, %v2558
      %v2597 = vadd.f32 %v2397, %v2560
      %s2598 = scalar_lea.vmem %s2, 448
      %v2599 = vld [vmem:[%s2598] sm:$0xf]
      %v2600 = vld [vmem:[%s2598 + $0x4] sm:$0xf]
      %v2601 = vld [vmem:[%s2598 + $0x8] sm:$0xf]
      %v2602 = vld [vmem:[%s2598 + $0xc] sm:$0xf]
      %v2603 = vld [vmem:[%s2598 + $0x10] sm:$0xf]
      %v2604 = vld [vmem:[%s2598 + $0x14] sm:$0xf]
      %v2605 = vld [vmem:[%s2598 + $0x18] sm:$0xf]
      %v2606 = vld [vmem:[%s2598 + $0x1c] sm:$0xf]
      %v2607 = vld [vmem:[%s2598 + $0x20] sm:$0xf]
      %v2608 = vld [vmem:[%s2598 + $0x24] sm:$0xf]
      %v2609 = vld [vmem:[%s2598 + $0x28] sm:$0xf]
      %v2610 = vld [vmem:[%s2598 + $0x2c] sm:$0xf]
      %v2611 = vld [vmem:[%s2598 + $0x30] sm:$0xf]
      %v2612 = vld [vmem:[%s2598 + $0x34] sm:$0xf]
      %v2613 = vld [vmem:[%s2598 + $0x38] sm:$0xf]
      %v2614 = vld [vmem:[%s2598 + $0x3c] sm:$0xf]
      %v2632 = vunpack.c.l.b16 %v2599
      %v2633 = vunpack.c.l.b16 %v2600
      %v2634 = vunpack.c.l.b16 %v2601
      %v2635 = vunpack.c.l.b16 %v2602
      %v2636 = vunpack.c.l.b16 %v2603
      %v2637 = vunpack.c.l.b16 %v2604
      %v2638 = vunpack.c.l.b16 %v2605
      %v2639 = vunpack.c.l.b16 %v2606
      %v2640 = vunpack.c.l.b16 %v2607
      %v2641 = vunpack.c.l.b16 %v2608
      %v2642 = vunpack.c.l.b16 %v2609
      %v2643 = vunpack.c.l.b16 %v2610
      %v2644 = vunpack.c.l.b16 %v2611
      %v2645 = vunpack.c.l.b16 %v2612
      %v2646 = vunpack.c.l.b16 %v2613
      %v2647 = vunpack.c.l.b16 %v2614
      %v2648 = vpack.c.b16 %v2633, %v2632
      %v2649 = vpack.c.b16 %v2635, %v2634
      %v2650 = vpack.c.b16 %v2637, %v2636
      %v2651 = vpack.c.b16 %v2639, %v2638
      %v2652 = vpack.c.b16 %v2641, %v2640
      %v2653 = vpack.c.b16 %v2643, %v2642
      %v2654 = vpack.c.b16 %v2645, %v2644
      %v2655 = vpack.c.b16 %v2647, %v2646
      %2664 = vmatpush.bf16.msra.mxu0 %v2655
      %2665 = vmatpush.bf16.msra.mxu0 %v2654
      %2666 = vmatpush.bf16.msra.mxu0 %v2653
      %2667 = vmatpush.bf16.msra.mxu0 %v2652
      %2668 = vmatpush.bf16.msra.mxu0 %v2651
      %2669 = vmatpush.bf16.msra.mxu0 %v2650
      %2670 = vmatpush.bf16.msra.mxu0 %v2649
      %2671 = vmatpush.bf16.msra.mxu0 %v2648
      %2672 = vmatmul.bf16.gmra.mxu0 %v968
      %v2673 = vpop.f32.mrf.mxu0
      %v2674 = vadd.f32 0.0, %v2673
      %v2675 = vpop.f32.mrf.mxu0
      %v2676 = vadd.f32 0.0, %v2675
      %2677 = vmatmul.bf16.gmra.mxu0 %v969
      %v2678 = vpop.f32.mrf.mxu0
      %v2679 = vadd.f32 0.0, %v2678
      %v2680 = vpop.f32.mrf.mxu0
      %v2681 = vadd.f32 0.0, %v2680
      %2682 = vmatmul.bf16.gmra.mxu0 %v970
      %v2683 = vpop.f32.mrf.mxu0
      %v2684 = vadd.f32 0.0, %v2683
      %v2685 = vpop.f32.mrf.mxu0
      %v2686 = vadd.f32 0.0, %v2685
      %2687 = vmatmul.bf16.gmra.mxu0 %v971
      %v2688 = vpop.f32.mrf.mxu0
      %v2689 = vadd.f32 0.0, %v2688
      %v2690 = vpop.f32.mrf.mxu0
      %v2691 = vadd.f32 0.0, %v2690
      %2692 = vmatmul.bf16.gmra.mxu0 %v972
      %v2693 = vpop.f32.mrf.mxu0
      %v2694 = vadd.f32 0.0, %v2693
      %v2695 = vpop.f32.mrf.mxu0
      %v2696 = vadd.f32 0.0, %v2695
      %2697 = vmatmul.bf16.gmra.mxu0 %v973
      %v2698 = vpop.f32.mrf.mxu0
      %v2699 = vadd.f32 0.0, %v2698
      %v2700 = vpop.f32.mrf.mxu0
      %v2701 = vadd.f32 0.0, %v2700
      %2702 = vmatmul.bf16.gmra.mxu0 %v974
      %v2703 = vpop.f32.mrf.mxu0
      %v2704 = vadd.f32 0.0, %v2703
      %v2705 = vpop.f32.mrf.mxu0
      %v2706 = vadd.f32 0.0, %v2705
      %2707 = vmatmul.bf16.gmra.mxu0 %v975
      %v2708 = vpop.f32.mrf.mxu0
      %v2709 = vadd.f32 0.0, %v2708
      %v2710 = vpop.f32.mrf.mxu0
      %v2711 = vadd.f32 0.0, %v2710
      %2712 = vmatmul.bf16.gmra.mxu0 %v976
      %v2713 = vpop.f32.mrf.mxu0
      %v2714 = vadd.f32 0.0, %v2713
      %v2715 = vpop.f32.mrf.mxu0
      %v2716 = vadd.f32 0.0, %v2715
      %2717 = vmatmul.bf16.gmra.mxu0 %v977
      %v2718 = vpop.f32.mrf.mxu0
      %v2719 = vadd.f32 0.0, %v2718
      %v2720 = vpop.f32.mrf.mxu0
      %v2721 = vadd.f32 0.0, %v2720
      %2722 = vmatmul.bf16.gmra.mxu0 %v978
      %v2723 = vpop.f32.mrf.mxu0
      %v2724 = vadd.f32 0.0, %v2723
      %v2725 = vpop.f32.mrf.mxu0
      %v2726 = vadd.f32 0.0, %v2725
      %2727 = vmatmul.bf16.gmra.mxu0 %v979
      %v2728 = vpop.f32.mrf.mxu0
      %v2729 = vadd.f32 0.0, %v2728
      %v2730 = vpop.f32.mrf.mxu0
      %v2731 = vadd.f32 0.0, %v2730
      %2732 = vmatmul.bf16.gmra.mxu0 %v980
      %v2733 = vpop.f32.mrf.mxu0
      %v2734 = vadd.f32 0.0, %v2733
      %v2735 = vpop.f32.mrf.mxu0
      %v2736 = vadd.f32 0.0, %v2735
      %2737 = vmatmul.bf16.gmra.mxu0 %v981
      %v2738 = vpop.f32.mrf.mxu0
      %v2739 = vadd.f32 0.0, %v2738
      %v2740 = vpop.f32.mrf.mxu0
      %v2741 = vadd.f32 0.0, %v2740
      %2742 = vmatmul.bf16.gmra.mxu0 %v982
      %v2743 = vpop.f32.mrf.mxu0
      %v2744 = vadd.f32 0.0, %v2743
      %v2745 = vpop.f32.mrf.mxu0
      %v2746 = vadd.f32 0.0, %v2745
      %2747 = vmatmul.bf16.gmra.mxu0 %v983
      %v2748 = vpop.f32.mrf.mxu0
      %v2749 = vadd.f32 0.0, %v2748
      %v2750 = vpop.f32.mrf.mxu0
      %v2751 = vadd.f32 0.0, %v2750
      %2752 = vmatmul.bf16.gmra.mxu0 %v984
      %v2753 = vpop.f32.mrf.mxu0
      %v2754 = vadd.f32 0.0, %v2753
      %v2755 = vpop.f32.mrf.mxu0
      %v2756 = vadd.f32 0.0, %v2755
      %2757 = vmatmul.bf16.gmra.mxu0 %v985
      %v2758 = vpop.f32.mrf.mxu0
      %v2759 = vadd.f32 0.0, %v2758
      %v2760 = vpop.f32.mrf.mxu0
      %v2761 = vadd.f32 0.0, %v2760
      %2762 = vdwg.mxu0
      %v2763 = vadd.f32 %v2562, %v2674
      %v2764 = vadd.f32 %v2563, %v2676
      %v2765 = vadd.f32 %v2564, %v2679
      %v2766 = vadd.f32 %v2565, %v2681
      %v2767 = vadd.f32 %v2566, %v2684
      %v2768 = vadd.f32 %v2567, %v2686
      %v2769 = vadd.f32 %v2568, %v2689
      %v2770 = vadd.f32 %v2569, %v2691
      %v2771 = vadd.f32 %v2570, %v2694
      %v2772 = vadd.f32 %v2571, %v2696
      %v2773 = vadd.f32 %v2572, %v2699
      %v2774 = vadd.f32 %v2573, %v2701
      %v2775 = vadd.f32 %v2574, %v2704
      %v2776 = vadd.f32 %v2575, %v2706
      %v2777 = vadd.f32 %v2576, %v2709
      %v2778 = vadd.f32 %v2577, %v2711
      %v2779 = vadd.f32 %v2578, %v2714
      %v2780 = vadd.f32 %v2579, %v2716
      %v2781 = vadd.f32 %v2580, %v2719
      %v2782 = vadd.f32 %v2581, %v2721
      %v2783 = vadd.f32 %v2582, %v2724
      %v2784 = vadd.f32 %v2583, %v2726
      %v2785 = vadd.f32 %v2584, %v2729
      %v2786 = vadd.f32 %v2585, %v2731
      %v2787 = vadd.f32 %v2586, %v2734
      %v2788 = vadd.f32 %v2587, %v2736
      %v2789 = vadd.f32 %v2588, %v2739
      %v2790 = vadd.f32 %v2589, %v2741
      %v2791 = vadd.f32 %v2590, %v2744
      %v2792 = vadd.f32 %v2591, %v2746
      %v2793 = vadd.f32 %v2592, %v2749
      %v2794 = vadd.f32 %v2593, %v2751
      %v2795 = vadd.f32 %v2594, %v2754
      %v2796 = vadd.f32 %v2595, %v2756
      %v2797 = vadd.f32 %v2596, %v2759
      %v2798 = vadd.f32 %v2597, %v2761
      %s2799 = scalar_lea.vmem %s2, 512
      %v2800 = vld [vmem:[%s2799] sm:$0xf]
      %v2801 = vld [vmem:[%s2799 + $0x4] sm:$0xf]
      %v2802 = vld [vmem:[%s2799 + $0x8] sm:$0xf]
      %v2803 = vld [vmem:[%s2799 + $0xc] sm:$0xf]
      %v2804 = vld [vmem:[%s2799 + $0x10] sm:$0xf]
      %v2805 = vld [vmem:[%s2799 + $0x14] sm:$0xf]
      %v2806 = vld [vmem:[%s2799 + $0x18] sm:$0xf]
      %v2807 = vld [vmem:[%s2799 + $0x1c] sm:$0xf]
      %v2808 = vld [vmem:[%s2799 + $0x20] sm:$0xf]
      %v2809 = vld [vmem:[%s2799 + $0x24] sm:$0xf]
      %v2810 = vld [vmem:[%s2799 + $0x28] sm:$0xf]
      %v2811 = vld [vmem:[%s2799 + $0x2c] sm:$0xf]
      %v2812 = vld [vmem:[%s2799 + $0x30] sm:$0xf]
      %v2813 = vld [vmem:[%s2799 + $0x34] sm:$0xf]
      %v2814 = vld [vmem:[%s2799 + $0x38] sm:$0xf]
      %v2815 = vld [vmem:[%s2799 + $0x3c] sm:$0xf]
      %v2832 = vunpack.c.l.b16 %v2800
      %v2833 = vunpack.c.l.b16 %v2801
      %v2834 = vunpack.c.l.b16 %v2802
      %v2835 = vunpack.c.l.b16 %v2803
      %v2836 = vunpack.c.l.b16 %v2804
      %v2837 = vunpack.c.l.b16 %v2805
      %v2838 = vunpack.c.l.b16 %v2806
      %v2839 = vunpack.c.l.b16 %v2807
      %v2840 = vunpack.c.l.b16 %v2808
      %v2841 = vunpack.c.l.b16 %v2809
      %v2842 = vunpack.c.l.b16 %v2810
      %v2843 = vunpack.c.l.b16 %v2811
      %v2844 = vunpack.c.l.b16 %v2812
      %v2845 = vunpack.c.l.b16 %v2813
      %v2846 = vunpack.c.l.b16 %v2814
      %v2847 = vunpack.c.l.b16 %v2815
      %v2848 = vpack.c.b16 %v2833, %v2832
      %v2849 = vpack.c.b16 %v2835, %v2834
      %v2850 = vpack.c.b16 %v2837, %v2836
      %v2851 = vpack.c.b16 %v2839, %v2838
      %v2852 = vpack.c.b16 %v2841, %v2840
      %v2853 = vpack.c.b16 %v2843, %v2842
      %v2854 = vpack.c.b16 %v2845, %v2844
      %v2855 = vpack.c.b16 %v2847, %v2846
      %2864 = vmatpush.bf16.msra.mxu0 %v2855
      %2865 = vmatpush.bf16.msra.mxu0 %v2854
      %2866 = vmatpush.bf16.msra.mxu0 %v2853
      %2867 = vmatpush.bf16.msra.mxu0 %v2852
      %2868 = vmatpush.bf16.msra.mxu0 %v2851
      %2869 = vmatpush.bf16.msra.mxu0 %v2850
      %2870 = vmatpush.bf16.msra.mxu0 %v2849
      %2871 = vmatpush.bf16.msra.mxu0 %v2848
      %2872 = vmatmul.bf16.gmra.mxu0 %v1234
      %v2873 = vpop.f32.mrf.mxu0
      %v2874 = vadd.f32 0.0, %v2873
      %v2875 = vpop.f32.mrf.mxu0
      %v2876 = vadd.f32 0.0, %v2875
      %2877 = vmatmul.bf16.gmra.mxu0 %v1235
      %v2878 = vpop.f32.mrf.mxu0
      %v2879 = vadd.f32 0.0, %v2878
      %v2880 = vpop.f32.mrf.mxu0
      %v2881 = vadd.f32 0.0, %v2880
      %2882 = vmatmul.bf16.gmra.mxu0 %v1236
      %v2883 = vpop.f32.mrf.mxu0
      %v2884 = vadd.f32 0.0, %v2883
      %v2885 = vpop.f32.mrf.mxu0
      %v2886 = vadd.f32 0.0, %v2885
      %2887 = vmatmul.bf16.gmra.mxu0 %v1237
      %v2888 = vpop.f32.mrf.mxu0
      %v2889 = vadd.f32 0.0, %v2888
      %v2890 = vpop.f32.mrf.mxu0
      %v2891 = vadd.f32 0.0, %v2890
      %2892 = vmatmul.bf16.gmra.mxu0 %v1238
      %v2893 = vpop.f32.mrf.mxu0
      %v2894 = vadd.f32 0.0, %v2893
      %v2895 = vpop.f32.mrf.mxu0
      %v2896 = vadd.f32 0.0, %v2895
      %2897 = vmatmul.bf16.gmra.mxu0 %v1239
      %v2898 = vpop.f32.mrf.mxu0
      %v2899 = vadd.f32 0.0, %v2898
      %v2900 = vpop.f32.mrf.mxu0
      %v2901 = vadd.f32 0.0, %v2900
      %2902 = vmatmul.bf16.gmra.mxu0 %v1240
      %v2903 = vpop.f32.mrf.mxu0
      %v2904 = vadd.f32 0.0, %v2903
      %v2905 = vpop.f32.mrf.mxu0
      %v2906 = vadd.f32 0.0, %v2905
      %2907 = vmatmul.bf16.gmra.mxu0 %v1241
      %v2908 = vpop.f32.mrf.mxu0
      %v2909 = vadd.f32 0.0, %v2908
      %v2910 = vpop.f32.mrf.mxu0
      %v2911 = vadd.f32 0.0, %v2910
      %2912 = vmatmul.bf16.gmra.mxu0 %v1242
      %v2913 = vpop.f32.mrf.mxu0
      %v2914 = vadd.f32 0.0, %v2913
      %v2915 = vpop.f32.mrf.mxu0
      %v2916 = vadd.f32 0.0, %v2915
      %2917 = vmatmul.bf16.gmra.mxu0 %v1243
      %v2918 = vpop.f32.mrf.mxu0
      %v2919 = vadd.f32 0.0, %v2918
      %v2920 = vpop.f32.mrf.mxu0
      %v2921 = vadd.f32 0.0, %v2920
      %2922 = vmatmul.bf16.gmra.mxu0 %v1244
      %v2923 = vpop.f32.mrf.mxu0
      %v2924 = vadd.f32 0.0, %v2923
      %v2925 = vpop.f32.mrf.mxu0
      %v2926 = vadd.f32 0.0, %v2925
      %2927 = vmatmul.bf16.gmra.mxu0 %v1245
      %v2928 = vpop.f32.mrf.mxu0
      %v2929 = vadd.f32 0.0, %v2928
      %v2930 = vpop.f32.mrf.mxu0
      %v2931 = vadd.f32 0.0, %v2930
      %2932 = vmatmul.bf16.gmra.mxu0 %v1246
      %v2933 = vpop.f32.mrf.mxu0
      %v2934 = vadd.f32 0.0, %v2933
      %v2935 = vpop.f32.mrf.mxu0
      %v2936 = vadd.f32 0.0, %v2935
      %2937 = vmatmul.bf16.gmra.mxu0 %v1247
      %v2938 = vpop.f32.mrf.mxu0
      %v2939 = vadd.f32 0.0, %v2938
      %v2940 = vpop.f32.mrf.mxu0
      %v2941 = vadd.f32 0.0, %v2940
      %2942 = vmatmul.bf16.gmra.mxu0 %v1248
      %v2943 = vpop.f32.mrf.mxu0
      %v2944 = vadd.f32 0.0, %v2943
      %v2945 = vpop.f32.mrf.mxu0
      %v2946 = vadd.f32 0.0, %v2945
      %2947 = vmatmul.bf16.gmra.mxu0 %v1249
      %v2948 = vpop.f32.mrf.mxu0
      %v2949 = vadd.f32 0.0, %v2948
      %v2950 = vpop.f32.mrf.mxu0
      %v2951 = vadd.f32 0.0, %v2950
      %2952 = vmatmul.bf16.gmra.mxu0 %v1250
      %v2953 = vpop.f32.mrf.mxu0
      %v2954 = vadd.f32 0.0, %v2953
      %v2955 = vpop.f32.mrf.mxu0
      %v2956 = vadd.f32 0.0, %v2955
      %2957 = vmatmul.bf16.gmra.mxu0 %v1251
      %v2958 = vpop.f32.mrf.mxu0
      %v2959 = vadd.f32 0.0, %v2958
      %v2960 = vpop.f32.mrf.mxu0
      %v2961 = vadd.f32 0.0, %v2960
      %2962 = vdwg.mxu0
      %v2963 = vadd.f32 %v2763, %v2874
      %v2964 = vadd.f32 %v2764, %v2876
      %v2965 = vadd.f32 %v2765, %v2879
      %v2966 = vadd.f32 %v2766, %v2881
      %v2967 = vadd.f32 %v2767, %v2884
      %v2968 = vadd.f32 %v2768, %v2886
      %v2969 = vadd.f32 %v2769, %v2889
      %v2970 = vadd.f32 %v2770, %v2891
      %v2971 = vadd.f32 %v2771, %v2894
      %v2972 = vadd.f32 %v2772, %v2896
      %v2973 = vadd.f32 %v2773, %v2899
      %v2974 = vadd.f32 %v2774, %v2901
      %v2975 = vadd.f32 %v2775, %v2904
      %v2976 = vadd.f32 %v2776, %v2906
      %v2977 = vadd.f32 %v2777, %v2909
      %v2978 = vadd.f32 %v2778, %v2911
      %v2979 = vadd.f32 %v2779, %v2914
      %v2980 = vadd.f32 %v2780, %v2916
      %v2981 = vadd.f32 %v2781, %v2919
      %v2982 = vadd.f32 %v2782, %v2921
      %v2983 = vadd.f32 %v2783, %v2924
      %v2984 = vadd.f32 %v2784, %v2926
      %v2985 = vadd.f32 %v2785, %v2929
      %v2986 = vadd.f32 %v2786, %v2931
      %v2987 = vadd.f32 %v2787, %v2934
      %v2988 = vadd.f32 %v2788, %v2936
      %v2989 = vadd.f32 %v2789, %v2939
      %v2990 = vadd.f32 %v2790, %v2941
      %v2991 = vadd.f32 %v2791, %v2944
      %v2992 = vadd.f32 %v2792, %v2946
      %v2993 = vadd.f32 %v2793, %v2949
      %v2994 = vadd.f32 %v2794, %v2951
      %v2995 = vadd.f32 %v2795, %v2954
      %v2996 = vadd.f32 %v2796, %v2956
      %v2997 = vadd.f32 %v2797, %v2959
      %v2998 = vadd.f32 %v2798, %v2961
      %v2999 = vld [vmem:[%s6] sm:$0x1]
      %v3001 = vperm.slane %v2999, 0
      %v3003 = vadd.f32 %v2963, %v3001
      %v3004 = vadd.f32 %v2964, %v3001
      %v3005 = vadd.f32 %v2965, %v3001
      %v3006 = vadd.f32 %v2966, %v3001
      %v3007 = vadd.f32 %v2967, %v3001
      %v3008 = vadd.f32 %v2968, %v3001
      %v3009 = vadd.f32 %v2969, %v3001
      %v3010 = vadd.f32 %v2970, %v3001
      %v3011 = vadd.f32 %v2971, %v3001
      %v3012 = vadd.f32 %v2972, %v3001
      %v3013 = vadd.f32 %v2973, %v3001
      %v3014 = vadd.f32 %v2974, %v3001
      %v3015 = vadd.f32 %v2975, %v3001
      %v3016 = vadd.f32 %v2976, %v3001
      %v3017 = vadd.f32 %v2977, %v3001
      %v3018 = vadd.f32 %v2978, %v3001
      %v3019 = vadd.f32 %v2979, %v3001
      %v3020 = vadd.f32 %v2980, %v3001
      %v3021 = vadd.f32 %v2981, %v3001
      %v3022 = vadd.f32 %v2982, %v3001
      %v3023 = vadd.f32 %v2983, %v3001
      %v3024 = vadd.f32 %v2984, %v3001
      %v3025 = vadd.f32 %v2985, %v3001
      %v3026 = vadd.f32 %v2986, %v3001
      %v3027 = vadd.f32 %v2987, %v3001
      %v3028 = vadd.f32 %v2988, %v3001
      %v3029 = vadd.f32 %v2989, %v3001
      %v3030 = vadd.f32 %v2990, %v3001
      %v3031 = vadd.f32 %v2991, %v3001
      %v3032 = vadd.f32 %v2992, %v3001
      %v3033 = vadd.f32 %v2993, %v3001
      %v3034 = vadd.f32 %v2994, %v3001
      %v3035 = vadd.f32 %v2995, %v3001
      %v3036 = vadd.f32 %v2996, %v3001
      %v3037 = vadd.f32 %v2997, %v3001
      %v3038 = vadd.f32 %v2998, %v3001
      %v3039 = vmax.f32 %v3003, 0.0
      %v3040 = vmax.f32 %v3004, 0.0
      %v3041 = vmax.f32 %v3005, 0.0
      %v3042 = vmax.f32 %v3006, 0.0
      %v3043 = vmax.f32 %v3007, 0.0
      %v3044 = vmax.f32 %v3008, 0.0
      %v3045 = vmax.f32 %v3009, 0.0
      %v3046 = vmax.f32 %v3010, 0.0
      %v3047 = vmax.f32 %v3011, 0.0
      %v3048 = vmax.f32 %v3012, 0.0
      %v3049 = vmax.f32 %v3013, 0.0
      %v3050 = vmax.f32 %v3014, 0.0
      %v3051 = vmax.f32 %v3015, 0.0
      %v3052 = vmax.f32 %v3016, 0.0
      %v3053 = vmax.f32 %v3017, 0.0
      %v3054 = vmax.f32 %v3018, 0.0
      %v3055 = vmax.f32 %v3019, 0.0
      %v3056 = vmax.f32 %v3020, 0.0
      %v3057 = vmax.f32 %v3021, 0.0
      %v3058 = vmax.f32 %v3022, 0.0
      %v3059 = vmax.f32 %v3023, 0.0
      %v3060 = vmax.f32 %v3024, 0.0
      %v3061 = vmax.f32 %v3025, 0.0
      %v3062 = vmax.f32 %v3026, 0.0
      %v3063 = vmax.f32 %v3027, 0.0
      %v3064 = vmax.f32 %v3028, 0.0
      %v3065 = vmax.f32 %v3029, 0.0
      %v3066 = vmax.f32 %v3030, 0.0
      %v3067 = vmax.f32 %v3031, 0.0
      %v3068 = vmax.f32 %v3032, 0.0
      %v3069 = vmax.f32 %v3033, 0.0
      %v3070 = vmax.f32 %v3034, 0.0
      %v3071 = vmax.f32 %v3035, 0.0
      %v3072 = vmax.f32 %v3036, 0.0
      %v3073 = vmax.f32 %v3037, 0.0
      %v3074 = vmax.f32 %v3038, 0.0
      %s3075 = ssub.s32 %s346, 1
      %v3076 = vstv %s3075
      %v3077 = vadd.s32 %v3076, 1
      %v3078 = vadd.s32 %v3076, 2
      %v3079 = vadd.s32 %v3076, 3
      %v3080 = vadd.s32 %v3076, 4
      %v3081 = vadd.s32 %v3076, 5
      %v3082 = vadd.s32 %v3076, 6
      %v3083 = vadd.s32 %v3076, 7
      %v3084 = vadd.s32 %v3076, 8
      %v3085 = vadd.s32 %v3076, 9
      %v3086 = vadd.s32 %v3076, 10
      %v3087 = vadd.s32 %v3076, 11
      %v3088 = vadd.s32 %v3076, 12
      %v3089 = vadd.s32 %v3076, 13
      %v3090 = vadd.s32 %v3076, 14
      %v3091 = vadd.s32 %v3076, 15
      %v3092 = vadd.s32 %v3076, 16
      %v3093 = vadd.s32 %v3076, 17
      %vm3094 = vcmp.ge.s32.totalorder %v3076, 0
      %vm3095 = vcmp.ge.s32.totalorder %v3077, 0
      %vm3096 = vcmp.ge.s32.totalorder %v3078, 0
      %vm3097 = vcmp.ge.s32.totalorder %v3079, 0
      %vm3098 = vcmp.ge.s32.totalorder %v3080, 0
      %vm3099 = vcmp.ge.s32.totalorder %v3081, 0
      %vm3100 = vcmp.ge.s32.totalorder %v3082, 0
      %vm3101 = vcmp.ge.s32.totalorder %v3083, 0
      %vm3102 = vcmp.ge.s32.totalorder %v3084, 0
      %vm3103 = vcmp.ge.s32.totalorder %v3085, 0
      %vm3104 = vcmp.ge.s32.totalorder %v3086, 0
      %vm3105 = vcmp.ge.s32.totalorder %v3087, 0
      %vm3106 = vcmp.ge.s32.totalorder %v3088, 0
      %vm3107 = vcmp.ge.s32.totalorder %v3089, 0
      %vm3108 = vcmp.ge.s32.totalorder %v3090, 0
      %vm3109 = vcmp.ge.s32.totalorder %v3091, 0
      %vm3110 = vcmp.ge.s32.totalorder %v3092, 0
      %vm3111 = vcmp.ge.s32.totalorder %v3093, 0
      %vm3112 = vcmp.lt.s32.totalorder %v3076, 16
      %vm3113 = vcmp.lt.s32.totalorder %v3077, 16
      %vm3114 = vcmp.lt.s32.totalorder %v3078, 16
      %vm3115 = vcmp.lt.s32.totalorder %v3079, 16
      %vm3116 = vcmp.lt.s32.totalorder %v3080, 16
      %vm3117 = vcmp.lt.s32.totalorder %v3081, 16
      %vm3118 = vcmp.lt.s32.totalorder %v3082, 16
      %vm3119 = vcmp.lt.s32.totalorder %v3083, 16
      %vm3120 = vcmp.lt.s32.totalorder %v3084, 16
      %vm3121 = vcmp.lt.s32.totalorder %v3085, 16
      %vm3122 = vcmp.lt.s32.totalorder %v3086, 16
      %vm3123 = vcmp.lt.s32.totalorder %v3087, 16
      %vm3124 = vcmp.lt.s32.totalorder %v3088, 16
      %vm3125 = vcmp.lt.s32.totalorder %v3089, 16
      %vm3126 = vcmp.lt.s32.totalorder %v3090, 16
      %vm3127 = vcmp.lt.s32.totalorder %v3091, 16
      %vm3128 = vcmp.lt.s32.totalorder %v3092, 16
      %vm3129 = vcmp.lt.s32.totalorder %v3093, 16
      %vm3130 = vmand %vm3094, %vm3112
      %vm3131 = vmand %vm3095, %vm3113
      %vm3132 = vmand %vm3096, %vm3114
      %vm3133 = vmand %vm3097, %vm3115
      %vm3134 = vmand %vm3098, %vm3116
      %vm3135 = vmand %vm3099, %vm3117
      %vm3136 = vmand %vm3100, %vm3118
      %vm3137 = vmand %vm3101, %vm3119
      %vm3138 = vmand %vm3102, %vm3120
      %vm3139 = vmand %vm3103, %vm3121
      %vm3140 = vmand %vm3104, %vm3122
      %vm3141 = vmand %vm3105, %vm3123
      %vm3142 = vmand %vm3106, %vm3124
      %vm3143 = vmand %vm3107, %vm3125
      %vm3144 = vmand %vm3108, %vm3126
      %vm3145 = vmand %vm3109, %vm3127
      %vm3146 = vmand %vm3110, %vm3128
      %vm3147 = vmand %vm3111, %vm3129
      %v3148 = vsel %vm3130, %v3039, 0.0
      %v3149 = vsel %vm3130, %v3040, 0.0
      %v3150 = vsel %vm3131, %v3041, 0.0
      %v3151 = vsel %vm3131, %v3042, 0.0
      %v3152 = vsel %vm3132, %v3043, 0.0
      %v3153 = vsel %vm3132, %v3044, 0.0
      %v3154 = vsel %vm3133, %v3045, 0.0
      %v3155 = vsel %vm3133, %v3046, 0.0
      %v3156 = vsel %vm3134, %v3047, 0.0
      %v3157 = vsel %vm3134, %v3048, 0.0
      %v3158 = vsel %vm3135, %v3049, 0.0
      %v3159 = vsel %vm3135, %v3050, 0.0
      %v3160 = vsel %vm3136, %v3051, 0.0
      %v3161 = vsel %vm3136, %v3052, 0.0
      %v3162 = vsel %vm3137, %v3053, 0.0
      %v3163 = vsel %vm3137, %v3054, 0.0
      %v3164 = vsel %vm3138, %v3055, 0.0
      %v3165 = vsel %vm3138, %v3056, 0.0
      %v3166 = vsel %vm3139, %v3057, 0.0
      %v3167 = vsel %vm3139, %v3058, 0.0
      %v3168 = vsel %vm3140, %v3059, 0.0
      %v3169 = vsel %vm3140, %v3060, 0.0
      %v3170 = vsel %vm3141, %v3061, 0.0
      %v3171 = vsel %vm3141, %v3062, 0.0
      %v3172 = vsel %vm3142, %v3063, 0.0
      %v3173 = vsel %vm3142, %v3064, 0.0
      %v3174 = vsel %vm3143, %v3065, 0.0
      %v3175 = vsel %vm3143, %v3066, 0.0
      %v3176 = vsel %vm3144, %v3067, 0.0
      %v3177 = vsel %vm3144, %v3068, 0.0
      %v3178 = vsel %vm3145, %v3069, 0.0
      %v3179 = vsel %vm3145, %v3070, 0.0
      %v3180 = vsel %vm3146, %v3071, 0.0
      %v3181 = vsel %vm3146, %v3072, 0.0
      %v3182 = vsel %vm3147, %v3073, 0.0
      %v3183 = vsel %vm3147, %v3074, 0.0
      %v3184 = vpack.c.bf16 %v3148, %v3148
      %v3185 = vpack.c.bf16 %v3149, %v3149
      %v3186 = vpack.c.bf16 %v3150, %v3150
      %v3187 = vpack.c.bf16 %v3151, %v3151
      %v3188 = vpack.c.bf16 %v3152, %v3152
      %v3189 = vpack.c.bf16 %v3153, %v3153
      %v3190 = vpack.c.bf16 %v3154, %v3154
      %v3191 = vpack.c.bf16 %v3155, %v3155
      %v3192 = vpack.c.bf16 %v3156, %v3156
      %v3193 = vpack.c.bf16 %v3157, %v3157
      %v3194 = vpack.c.bf16 %v3158, %v3158
      %v3195 = vpack.c.bf16 %v3159, %v3159
      %v3196 = vpack.c.bf16 %v3160, %v3160
      %v3197 = vpack.c.bf16 %v3161, %v3161
      %v3198 = vpack.c.bf16 %v3162, %v3162
      %v3199 = vpack.c.bf16 %v3163, %v3163
      %v3200 = vpack.c.bf16 %v3164, %v3164
      %v3201 = vpack.c.bf16 %v3165, %v3165
      %v3202 = vpack.c.bf16 %v3166, %v3166
      %v3203 = vpack.c.bf16 %v3167, %v3167
      %v3204 = vpack.c.bf16 %v3168, %v3168
      %v3205 = vpack.c.bf16 %v3169, %v3169
      %v3206 = vpack.c.bf16 %v3170, %v3170
      %v3207 = vpack.c.bf16 %v3171, %v3171
      %v3208 = vpack.c.bf16 %v3172, %v3172
      %v3209 = vpack.c.bf16 %v3173, %v3173
      %v3210 = vpack.c.bf16 %v3174, %v3174
      %v3211 = vpack.c.bf16 %v3175, %v3175
      %v3212 = vpack.c.bf16 %v3176, %v3176
      %v3213 = vpack.c.bf16 %v3177, %v3177
      %v3214 = vpack.c.bf16 %v3178, %v3178
      %v3215 = vpack.c.bf16 %v3179, %v3179
      %v3216 = vpack.c.bf16 %v3180, %v3180
      %v3217 = vpack.c.bf16 %v3181, %v3181
      %v3218 = vpack.c.bf16 %v3182, %v3182
      %v3219 = vpack.c.bf16 %v3183, %v3183
      %v3256 = vunpack.c.l.b16 %v3184
      %v3257 = vunpack.c.l.b16 %v3185
      %v3258 = vunpack.c.l.b16 %v3186
      %v3259 = vunpack.c.l.b16 %v3187
      %v3260 = vunpack.c.l.b16 %v3188
      %v3261 = vunpack.c.l.b16 %v3189
      %v3262 = vunpack.c.l.b16 %v3190
      %v3263 = vunpack.c.l.b16 %v3191
      %v3264 = vunpack.c.l.b16 %v3192
      %v3265 = vunpack.c.l.b16 %v3193
      %v3266 = vunpack.c.l.b16 %v3194
      %v3267 = vunpack.c.l.b16 %v3195
      %v3268 = vunpack.c.l.b16 %v3196
      %v3269 = vunpack.c.l.b16 %v3197
      %v3270 = vunpack.c.l.b16 %v3198
      %v3271 = vunpack.c.l.b16 %v3199
      %v3272 = vunpack.c.l.b16 %v3200
      %v3273 = vunpack.c.l.b16 %v3201
      %v3274 = vunpack.c.l.b16 %v3202
      %v3275 = vunpack.c.l.b16 %v3203
      %v3276 = vunpack.c.l.b16 %v3204
      %v3277 = vunpack.c.l.b16 %v3205
      %v3278 = vunpack.c.l.b16 %v3206
      %v3279 = vunpack.c.l.b16 %v3207
      %v3280 = vunpack.c.l.b16 %v3208
      %v3281 = vunpack.c.l.b16 %v3209
      %v3282 = vunpack.c.l.b16 %v3210
      %v3283 = vunpack.c.l.b16 %v3211
      %v3284 = vunpack.c.l.b16 %v3212
      %v3285 = vunpack.c.l.b16 %v3213
      %v3286 = vunpack.c.l.b16 %v3214
      %v3287 = vunpack.c.l.b16 %v3215
      %v3288 = vunpack.c.l.b16 %v3216
      %v3289 = vunpack.c.l.b16 %v3217
      %v3290 = vunpack.c.l.b16 %v3218
      %v3291 = vunpack.c.l.b16 %v3219
      %v3292 = vpack.c.b16 %v3257, %v3256
      %v3293 = vpack.c.b16 %v3259, %v3258
      %v3294 = vpack.c.b16 %v3261, %v3260
      %v3295 = vpack.c.b16 %v3263, %v3262
      %v3296 = vpack.c.b16 %v3265, %v3264
      %v3297 = vpack.c.b16 %v3267, %v3266
      %v3298 = vpack.c.b16 %v3269, %v3268
      %v3299 = vpack.c.b16 %v3271, %v3270
      %v3300 = vpack.c.b16 %v3273, %v3272
      %v3301 = vpack.c.b16 %v3275, %v3274
      %v3302 = vpack.c.b16 %v3277, %v3276
      %v3303 = vpack.c.b16 %v3279, %v3278
      %v3304 = vpack.c.b16 %v3281, %v3280
      %v3305 = vpack.c.b16 %v3283, %v3282
      %v3306 = vpack.c.b16 %v3285, %v3284
      %v3307 = vpack.c.b16 %v3287, %v3286
      %v3308 = vpack.c.b16 %v3289, %v3288
      %v3309 = vpack.c.b16 %v3291, %v3290
      %v3311 = vshrl.u32 %v3292, 16
      %v3313 = vrot.slane %v3311, 7
      %v3314 = vshll.u32 %v3292, 16
      %v3316 = vor.u32 %v3313, %v3314
      %v3318 = vshrl.u32 %v3293, 16
      %v3320 = vrot.slane %v3318, 7
      %v3321 = vshll.u32 %v3293, 16
      %v3323 = vor.u32 %v3320, %v3321
      %v3325 = vshrl.u32 %v3294, 16
      %v3327 = vrot.slane %v3325, 7
      %v3328 = vshll.u32 %v3294, 16
      %v3330 = vor.u32 %v3327, %v3328
      %v3332 = vshrl.u32 %v3295, 16
      %v3334 = vrot.slane %v3332, 7
      %v3335 = vshll.u32 %v3295, 16
      %v3337 = vor.u32 %v3334, %v3335
      %v3339 = vshrl.u32 %v3296, 16
      %v3341 = vrot.slane %v3339, 7
      %v3342 = vshll.u32 %v3296, 16
      %v3344 = vor.u32 %v3341, %v3342
      %v3346 = vshrl.u32 %v3297, 16
      %v3348 = vrot.slane %v3346, 7
      %v3349 = vshll.u32 %v3297, 16
      %v3351 = vor.u32 %v3348, %v3349
      %v3353 = vshrl.u32 %v3298, 16
      %v3355 = vrot.slane %v3353, 7
      %v3356 = vshll.u32 %v3298, 16
      %v3358 = vor.u32 %v3355, %v3356
      %v3360 = vshrl.u32 %v3299, 16
      %v3362 = vrot.slane %v3360, 7
      %v3363 = vshll.u32 %v3299, 16
      %v3365 = vor.u32 %v3362, %v3363
      %v3367 = vshrl.u32 %v3300, 16
      %v3369 = vrot.slane %v3367, 7
      %v3370 = vshll.u32 %v3300, 16
      %v3372 = vor.u32 %v3369, %v3370
      %v3374 = vshrl.u32 %v3301, 16
      %v3376 = vrot.slane %v3374, 7
      %v3377 = vshll.u32 %v3301, 16
      %v3379 = vor.u32 %v3376, %v3377
      %v3381 = vshrl.u32 %v3302, 16
      %v3383 = vrot.slane %v3381, 7
      %v3384 = vshll.u32 %v3302, 16
      %v3386 = vor.u32 %v3383, %v3384
      %v3388 = vshrl.u32 %v3303, 16
      %v3390 = vrot.slane %v3388, 7
      %v3391 = vshll.u32 %v3303, 16
      %v3393 = vor.u32 %v3390, %v3391
      %v3395 = vshrl.u32 %v3304, 16
      %v3397 = vrot.slane %v3395, 7
      %v3398 = vshll.u32 %v3304, 16
      %v3400 = vor.u32 %v3397, %v3398
      %v3402 = vshrl.u32 %v3305, 16
      %v3404 = vrot.slane %v3402, 7
      %v3405 = vshll.u32 %v3305, 16
      %v3407 = vor.u32 %v3404, %v3405
      %v3409 = vshrl.u32 %v3306, 16
      %v3411 = vrot.slane %v3409, 7
      %v3412 = vshll.u32 %v3306, 16
      %v3414 = vor.u32 %v3411, %v3412
      %v3416 = vshrl.u32 %v3307, 16
      %v3418 = vrot.slane %v3416, 7
      %v3419 = vshll.u32 %v3307, 16
      %v3421 = vor.u32 %v3418, %v3419
      %v3423 = vshrl.u32 %v3308, 16
      %v3425 = vrot.slane %v3423, 7
      %v3426 = vshll.u32 %v3308, 16
      %v3428 = vor.u32 %v3425, %v3426
      %v3430 = vshrl.u32 %v3309, 16
      %v3432 = vrot.slane %v3430, 7
      %v3433 = vshll.u32 %v3309, 16
      %v3435 = vor.u32 %v3432, %v3433
      %v3454 = vsel %vm1148, 0, %v3316
      %v3455 = vsel %vm1148, 0, %v3323
      %v3456 = vsel %vm1148, 0, %v3330
      %v3457 = vsel %vm1148, 0, %v3337
      %v3458 = vsel %vm1148, 0, %v3344
      %v3459 = vsel %vm1148, 0, %v3351
      %v3460 = vsel %vm1148, 0, %v3358
      %v3461 = vsel %vm1148, 0, %v3365
      %v3462 = vsel %vm1148, 0, %v3372
      %v3463 = vsel %vm1148, 0, %v3379
      %v3464 = vsel %vm1148, 0, %v3386
      %v3465 = vsel %vm1148, 0, %v3393
      %v3466 = vsel %vm1148, 0, %v3400
      %v3467 = vsel %vm1148, 0, %v3407
      %v3468 = vsel %vm1148, 0, %v3414
      %v3469 = vsel %vm1148, 0, %v3421
      %v3470 = vsel %vm1148, 0, %v3428
      %v3471 = vsel %vm1148, 0, %v3435
      %v3472 = vrot.slane %v3314, 1
      %v3473 = vor.u32 %v3311, %v3472
      %v3474 = vrot.slane %v3321, 1
      %v3475 = vor.u32 %v3318, %v3474
      %v3476 = vrot.slane %v3328, 1
      %v3477 = vor.u32 %v3325, %v3476
      %v3478 = vrot.slane %v3335, 1
      %v3479 = vor.u32 %v3332, %v3478
      %v3480 = vrot.slane %v3342, 1
      %v3481 = vor.u32 %v3339, %v3480
      %v3482 = vrot.slane %v3349, 1
      %v3483 = vor.u32 %v3346, %v3482
      %v3484 = vrot.slane %v3356, 1
      %v3485 = vor.u32 %v3353, %v3484
      %v3486 = vrot.slane %v3363, 1
      %v3487 = vor.u32 %v3360, %v3486
      %v3488 = vrot.slane %v3370, 1
      %v3489 = vor.u32 %v3367, %v3488
      %v3490 = vrot.slane %v3377, 1
      %v3491 = vor.u32 %v3374, %v3490
      %v3492 = vrot.slane %v3384, 1
      %v3493 = vor.u32 %v3381, %v3492
      %v3494 = vrot.slane %v3391, 1
      %v3495 = vor.u32 %v3388, %v3494
      %v3496 = vrot.slane %v3398, 1
      %v3497 = vor.u32 %v3395, %v3496
      %v3498 = vrot.slane %v3405, 1
      %v3499 = vor.u32 %v3402, %v3498
      %v3500 = vrot.slane %v3412, 1
      %v3501 = vor.u32 %v3409, %v3500
      %v3502 = vrot.slane %v3419, 1
      %v3503 = vor.u32 %v3416, %v3502
      %v3504 = vrot.slane %v3426, 1
      %v3505 = vor.u32 %v3423, %v3504
      %v3506 = vrot.slane %v3433, 1
      %v3507 = vor.u32 %v3430, %v3506
      %v3526 = vsel %vm1231, %v3473, 0
      %v3527 = vsel %vm1231, %v3475, 0
      %v3528 = vsel %vm1231, %v3477, 0
      %v3529 = vsel %vm1231, %v3479, 0
      %v3530 = vsel %vm1231, %v3481, 0
      %v3531 = vsel %vm1231, %v3483, 0
      %v3532 = vsel %vm1231, %v3485, 0
      %v3533 = vsel %vm1231, %v3487, 0
      %v3534 = vsel %vm1231, %v3489, 0
      %v3535 = vsel %vm1231, %v3491, 0
      %v3536 = vsel %vm1231, %v3493, 0
      %v3537 = vsel %vm1231, %v3495, 0
      %v3538 = vsel %vm1231, %v3497, 0
      %v3539 = vsel %vm1231, %v3499, 0
      %v3540 = vsel %vm1231, %v3501, 0
      %v3541 = vsel %vm1231, %v3503, 0
      %v3542 = vsel %vm1231, %v3505, 0
      %v3543 = vsel %vm1231, %v3507, 0
      %v3544 = vld [vmem:[%s3] sm:$0xf]
      %v3545 = vld [vmem:[%s3 + $0x4] sm:$0xf]
      %v3546 = vld [vmem:[%s3 + $0x8] sm:$0xf]
      %v3547 = vld [vmem:[%s3 + $0xc] sm:$0xf]
      %v3548 = vld [vmem:[%s3 + $0x10] sm:$0xf]
      %v3549 = vld [vmem:[%s3 + $0x14] sm:$0xf]
      %v3550 = vld [vmem:[%s3 + $0x18] sm:$0xf]
      %v3551 = vld [vmem:[%s3 + $0x1c] sm:$0xf]
      %v3552 = vld [vmem:[%s3 + $0x20] sm:$0xf]
      %v3553 = vld [vmem:[%s3 + $0x24] sm:$0xf]
      %v3554 = vld [vmem:[%s3 + $0x28] sm:$0xf]
      %v3555 = vld [vmem:[%s3 + $0x2c] sm:$0xf]
      %v3556 = vld [vmem:[%s3 + $0x30] sm:$0xf]
      %v3557 = vld [vmem:[%s3 + $0x34] sm:$0xf]
      %v3558 = vld [vmem:[%s3 + $0x38] sm:$0xf]
      %v3559 = vld [vmem:[%s3 + $0x3c] sm:$0xf]
      %s3560 = scalar_lea.vmem %s3, 64
      %v3561 = vld [vmem:[%s3560] sm:$0xf]
      %v3562 = vld [vmem:[%s3560 + $0x4] sm:$0xf]
      %v3563 = vld [vmem:[%s3560 + $0x8] sm:$0xf]
      %v3564 = vld [vmem:[%s3560 + $0xc] sm:$0xf]
      %v3565 = vld [vmem:[%s3560 + $0x10] sm:$0xf]
      %v3566 = vld [vmem:[%s3560 + $0x14] sm:$0xf]
      %v3567 = vld [vmem:[%s3560 + $0x18] sm:$0xf]
      %v3568 = vld [vmem:[%s3560 + $0x1c] sm:$0xf]
      %v3569 = vld [vmem:[%s3560 + $0x20] sm:$0xf]
      %v3570 = vld [vmem:[%s3560 + $0x24] sm:$0xf]
      %v3571 = vld [vmem:[%s3560 + $0x28] sm:$0xf]
      %v3572 = vld [vmem:[%s3560 + $0x2c] sm:$0xf]
      %v3573 = vld [vmem:[%s3560 + $0x30] sm:$0xf]
      %v3574 = vld [vmem:[%s3560 + $0x34] sm:$0xf]
      %v3575 = vld [vmem:[%s3560 + $0x38] sm:$0xf]
      %v3576 = vld [vmem:[%s3560 + $0x3c] sm:$0xf]
      %v3609 = vunpack.c.l.b16 %v3561
      %v3610 = vunpack.c.l.b16 %v3562
      %v3611 = vunpack.c.l.b16 %v3563
      %v3612 = vunpack.c.l.b16 %v3564
      %v3613 = vunpack.c.l.b16 %v3565
      %v3614 = vunpack.c.l.b16 %v3566
      %v3615 = vunpack.c.l.b16 %v3567
      %v3616 = vunpack.c.l.b16 %v3568
      %v3617 = vunpack.c.l.b16 %v3569
      %v3618 = vunpack.c.l.b16 %v3570
      %v3619 = vunpack.c.l.b16 %v3571
      %v3620 = vunpack.c.l.b16 %v3572
      %v3621 = vunpack.c.l.b16 %v3573
      %v3622 = vunpack.c.l.b16 %v3574
      %v3623 = vunpack.c.l.b16 %v3575
      %v3624 = vunpack.c.l.b16 %v3576
      %v3625 = vpack.c.b16 %v3610, %v3609
      %v3626 = vpack.c.b16 %v3612, %v3611
      %v3627 = vpack.c.b16 %v3614, %v3613
      %v3628 = vpack.c.b16 %v3616, %v3615
      %v3629 = vpack.c.b16 %v3618, %v3617
      %v3630 = vpack.c.b16 %v3620, %v3619
      %v3631 = vpack.c.b16 %v3622, %v3621
      %v3632 = vpack.c.b16 %v3624, %v3623
      %3641 = vmatpush.bf16.msra.mxu0 %v3632
      %3642 = vmatpush.bf16.msra.mxu0 %v3631
      %3643 = vmatpush.bf16.msra.mxu0 %v3630
      %3644 = vmatpush.bf16.msra.mxu0 %v3629
      %3645 = vmatpush.bf16.msra.mxu0 %v3628
      %3646 = vmatpush.bf16.msra.mxu0 %v3627
      %3647 = vmatpush.bf16.msra.mxu0 %v3626
      %3648 = vmatpush.bf16.msra.mxu0 %v3625
      %3649 = vmatmul.bf16.gmra.mxu0 %v3292
      %v3650 = vpop.f32.mrf.mxu0
      %v3651 = vadd.f32 0.0, %v3650
      %v3652 = vpop.f32.mrf.mxu0
      %v3653 = vadd.f32 0.0, %v3652
      %3654 = vmatmul.bf16.gmra.mxu0 %v3293
      %v3655 = vpop.f32.mrf.mxu0
      %v3656 = vadd.f32 0.0, %v3655
      %v3657 = vpop.f32.mrf.mxu0
      %v3658 = vadd.f32 0.0, %v3657
      %3659 = vmatmul.bf16.gmra.mxu0 %v3294
      %v3660 = vpop.f32.mrf.mxu0
      %v3661 = vadd.f32 0.0, %v3660
      %v3662 = vpop.f32.mrf.mxu0
      %v3663 = vadd.f32 0.0, %v3662
      %3664 = vmatmul.bf16.gmra.mxu0 %v3295
      %v3665 = vpop.f32.mrf.mxu0
      %v3666 = vadd.f32 0.0, %v3665
      %v3667 = vpop.f32.mrf.mxu0
      %v3668 = vadd.f32 0.0, %v3667
      %3669 = vmatmul.bf16.gmra.mxu0 %v3296
      %v3670 = vpop.f32.mrf.mxu0
      %v3671 = vadd.f32 0.0, %v3670
      %v3672 = vpop.f32.mrf.mxu0
      %v3673 = vadd.f32 0.0, %v3672
      %3674 = vmatmul.bf16.gmra.mxu0 %v3297
      %v3675 = vpop.f32.mrf.mxu0
      %v3676 = vadd.f32 0.0, %v3675
      %v3677 = vpop.f32.mrf.mxu0
      %v3678 = vadd.f32 0.0, %v3677
      %3679 = vmatmul.bf16.gmra.mxu0 %v3298
      %v3680 = vpop.f32.mrf.mxu0
      %v3681 = vadd.f32 0.0, %v3680
      %v3682 = vpop.f32.mrf.mxu0
      %v3683 = vadd.f32 0.0, %v3682
      %3684 = vmatmul.bf16.gmra.mxu0 %v3299
      %v3685 = vpop.f32.mrf.mxu0
      %v3686 = vadd.f32 0.0, %v3685
      %v3687 = vpop.f32.mrf.mxu0
      %v3688 = vadd.f32 0.0, %v3687
      %3689 = vmatmul.bf16.gmra.mxu0 %v3300
      %v3690 = vpop.f32.mrf.mxu0
      %v3691 = vadd.f32 0.0, %v3690
      %v3692 = vpop.f32.mrf.mxu0
      %v3693 = vadd.f32 0.0, %v3692
      %3694 = vmatmul.bf16.gmra.mxu0 %v3301
      %v3695 = vpop.f32.mrf.mxu0
      %v3696 = vadd.f32 0.0, %v3695
      %v3697 = vpop.f32.mrf.mxu0
      %v3698 = vadd.f32 0.0, %v3697
      %3699 = vmatmul.bf16.gmra.mxu0 %v3302
      %v3700 = vpop.f32.mrf.mxu0
      %v3701 = vadd.f32 0.0, %v3700
      %v3702 = vpop.f32.mrf.mxu0
      %v3703 = vadd.f32 0.0, %v3702
      %3704 = vmatmul.bf16.gmra.mxu0 %v3303
      %v3705 = vpop.f32.mrf.mxu0
      %v3706 = vadd.f32 0.0, %v3705
      %v3707 = vpop.f32.mrf.mxu0
      %v3708 = vadd.f32 0.0, %v3707
      %3709 = vmatmul.bf16.gmra.mxu0 %v3304
      %v3710 = vpop.f32.mrf.mxu0
      %v3711 = vadd.f32 0.0, %v3710
      %v3712 = vpop.f32.mrf.mxu0
      %v3713 = vadd.f32 0.0, %v3712
      %3714 = vmatmul.bf16.gmra.mxu0 %v3305
      %v3715 = vpop.f32.mrf.mxu0
      %v3716 = vadd.f32 0.0, %v3715
      %v3717 = vpop.f32.mrf.mxu0
      %v3718 = vadd.f32 0.0, %v3717
      %3719 = vmatmul.bf16.gmra.mxu0 %v3306
      %v3720 = vpop.f32.mrf.mxu0
      %v3721 = vadd.f32 0.0, %v3720
      %v3722 = vpop.f32.mrf.mxu0
      %v3723 = vadd.f32 0.0, %v3722
      %3724 = vmatmul.bf16.gmra.mxu0 %v3307
      %v3725 = vpop.f32.mrf.mxu0
      %v3726 = vadd.f32 0.0, %v3725
      %v3727 = vpop.f32.mrf.mxu0
      %v3728 = vadd.f32 0.0, %v3727
      %3729 = vdwg.mxu0
      %v3746 = vunpack.c.l.b16 %v3544
      %v3747 = vunpack.c.l.b16 %v3545
      %v3748 = vunpack.c.l.b16 %v3546
      %v3749 = vunpack.c.l.b16 %v3547
      %v3750 = vunpack.c.l.b16 %v3548
      %v3751 = vunpack.c.l.b16 %v3549
      %v3752 = vunpack.c.l.b16 %v3550
      %v3753 = vunpack.c.l.b16 %v3551
      %v3754 = vunpack.c.l.b16 %v3552
      %v3755 = vunpack.c.l.b16 %v3553
      %v3756 = vunpack.c.l.b16 %v3554
      %v3757 = vunpack.c.l.b16 %v3555
      %v3758 = vunpack.c.l.b16 %v3556
      %v3759 = vunpack.c.l.b16 %v3557
      %v3760 = vunpack.c.l.b16 %v3558
      %v3761 = vunpack.c.l.b16 %v3559
      %v3762 = vpack.c.b16 %v3747, %v3746
      %v3763 = vpack.c.b16 %v3749, %v3748
      %v3764 = vpack.c.b16 %v3751, %v3750
      %v3765 = vpack.c.b16 %v3753, %v3752
      %v3766 = vpack.c.b16 %v3755, %v3754
      %v3767 = vpack.c.b16 %v3757, %v3756
      %v3768 = vpack.c.b16 %v3759, %v3758
      %v3769 = vpack.c.b16 %v3761, %v3760
      %3778 = vmatpush.bf16.msra.mxu0 %v3769
      %3779 = vmatpush.bf16.msra.mxu0 %v3768
      %3780 = vmatpush.bf16.msra.mxu0 %v3767
      %3781 = vmatpush.bf16.msra.mxu0 %v3766
      %3782 = vmatpush.bf16.msra.mxu0 %v3765
      %3783 = vmatpush.bf16.msra.mxu0 %v3764
      %3784 = vmatpush.bf16.msra.mxu0 %v3763
      %3785 = vmatpush.bf16.msra.mxu0 %v3762
      %3786 = vmatmul.bf16.gmra.mxu0 %v3454
      %v3787 = vpop.f32.mrf.mxu0
      %v3788 = vadd.f32 %v3651, %v3787
      %v3789 = vpop.f32.mrf.mxu0
      %v3790 = vadd.f32 %v3653, %v3789
      %3791 = vmatmul.bf16.gmra.mxu0 %v3455
      %v3792 = vpop.f32.mrf.mxu0
      %v3793 = vadd.f32 %v3656, %v3792
      %v3794 = vpop.f32.mrf.mxu0
      %v3795 = vadd.f32 %v3658, %v3794
      %3796 = vmatmul.bf16.gmra.mxu0 %v3456
      %v3797 = vpop.f32.mrf.mxu0
      %v3798 = vadd.f32 %v3661, %v3797
      %v3799 = vpop.f32.mrf.mxu0
      %v3800 = vadd.f32 %v3663, %v3799
      %3801 = vmatmul.bf16.gmra.mxu0 %v3457
      %v3802 = vpop.f32.mrf.mxu0
      %v3803 = vadd.f32 %v3666, %v3802
      %v3804 = vpop.f32.mrf.mxu0
      %v3805 = vadd.f32 %v3668, %v3804
      %3806 = vmatmul.bf16.gmra.mxu0 %v3458
      %v3807 = vpop.f32.mrf.mxu0
      %v3808 = vadd.f32 %v3671, %v3807
      %v3809 = vpop.f32.mrf.mxu0
      %v3810 = vadd.f32 %v3673, %v3809
      %3811 = vmatmul.bf16.gmra.mxu0 %v3459
      %v3812 = vpop.f32.mrf.mxu0
      %v3813 = vadd.f32 %v3676, %v3812
      %v3814 = vpop.f32.mrf.mxu0
      %v3815 = vadd.f32 %v3678, %v3814
      %3816 = vmatmul.bf16.gmra.mxu0 %v3460
      %v3817 = vpop.f32.mrf.mxu0
      %v3818 = vadd.f32 %v3681, %v3817
      %v3819 = vpop.f32.mrf.mxu0
      %v3820 = vadd.f32 %v3683, %v3819
      %3821 = vmatmul.bf16.gmra.mxu0 %v3461
      %v3822 = vpop.f32.mrf.mxu0
      %v3823 = vadd.f32 %v3686, %v3822
      %v3824 = vpop.f32.mrf.mxu0
      %v3825 = vadd.f32 %v3688, %v3824
      %3826 = vmatmul.bf16.gmra.mxu0 %v3462
      %v3827 = vpop.f32.mrf.mxu0
      %v3828 = vadd.f32 %v3691, %v3827
      %v3829 = vpop.f32.mrf.mxu0
      %v3830 = vadd.f32 %v3693, %v3829
      %3831 = vmatmul.bf16.gmra.mxu0 %v3463
      %v3832 = vpop.f32.mrf.mxu0
      %v3833 = vadd.f32 %v3696, %v3832
      %v3834 = vpop.f32.mrf.mxu0
      %v3835 = vadd.f32 %v3698, %v3834
      %3836 = vmatmul.bf16.gmra.mxu0 %v3464
      %v3837 = vpop.f32.mrf.mxu0
      %v3838 = vadd.f32 %v3701, %v3837
      %v3839 = vpop.f32.mrf.mxu0
      %v3840 = vadd.f32 %v3703, %v3839
      %3841 = vmatmul.bf16.gmra.mxu0 %v3465
      %v3842 = vpop.f32.mrf.mxu0
      %v3843 = vadd.f32 %v3706, %v3842
      %v3844 = vpop.f32.mrf.mxu0
      %v3845 = vadd.f32 %v3708, %v3844
      %3846 = vmatmul.bf16.gmra.mxu0 %v3466
      %v3847 = vpop.f32.mrf.mxu0
      %v3848 = vadd.f32 %v3711, %v3847
      %v3849 = vpop.f32.mrf.mxu0
      %v3850 = vadd.f32 %v3713, %v3849
      %3851 = vmatmul.bf16.gmra.mxu0 %v3467
      %v3852 = vpop.f32.mrf.mxu0
      %v3853 = vadd.f32 %v3716, %v3852
      %v3854 = vpop.f32.mrf.mxu0
      %v3855 = vadd.f32 %v3718, %v3854
      %3856 = vmatmul.bf16.gmra.mxu0 %v3468
      %v3857 = vpop.f32.mrf.mxu0
      %v3858 = vadd.f32 %v3721, %v3857
      %v3859 = vpop.f32.mrf.mxu0
      %v3860 = vadd.f32 %v3723, %v3859
      %3861 = vmatmul.bf16.gmra.mxu0 %v3469
      %v3862 = vpop.f32.mrf.mxu0
      %v3863 = vadd.f32 %v3726, %v3862
      %v3864 = vpop.f32.mrf.mxu0
      %v3865 = vadd.f32 %v3728, %v3864
      %3866 = vdwg.mxu0
      %s3867 = scalar_lea.vmem %s3, 128
      %v3868 = vld [vmem:[%s3867] sm:$0xf]
      %v3869 = vld [vmem:[%s3867 + $0x4] sm:$0xf]
      %v3870 = vld [vmem:[%s3867 + $0x8] sm:$0xf]
      %v3871 = vld [vmem:[%s3867 + $0xc] sm:$0xf]
      %v3872 = vld [vmem:[%s3867 + $0x10] sm:$0xf]
      %v3873 = vld [vmem:[%s3867 + $0x14] sm:$0xf]
      %v3874 = vld [vmem:[%s3867 + $0x18] sm:$0xf]
      %v3875 = vld [vmem:[%s3867 + $0x1c] sm:$0xf]
      %v3876 = vld [vmem:[%s3867 + $0x20] sm:$0xf]
      %v3877 = vld [vmem:[%s3867 + $0x24] sm:$0xf]
      %v3878 = vld [vmem:[%s3867 + $0x28] sm:$0xf]
      %v3879 = vld [vmem:[%s3867 + $0x2c] sm:$0xf]
      %v3880 = vld [vmem:[%s3867 + $0x30] sm:$0xf]
      %v3881 = vld [vmem:[%s3867 + $0x34] sm:$0xf]
      %v3882 = vld [vmem:[%s3867 + $0x38] sm:$0xf]
      %v3883 = vld [vmem:[%s3867 + $0x3c] sm:$0xf]
      %v3900 = vunpack.c.l.b16 %v3868
      %v3901 = vunpack.c.l.b16 %v3869
      %v3902 = vunpack.c.l.b16 %v3870
      %v3903 = vunpack.c.l.b16 %v3871
      %v3904 = vunpack.c.l.b16 %v3872
      %v3905 = vunpack.c.l.b16 %v3873
      %v3906 = vunpack.c.l.b16 %v3874
      %v3907 = vunpack.c.l.b16 %v3875
      %v3908 = vunpack.c.l.b16 %v3876
      %v3909 = vunpack.c.l.b16 %v3877
      %v3910 = vunpack.c.l.b16 %v3878
      %v3911 = vunpack.c.l.b16 %v3879
      %v3912 = vunpack.c.l.b16 %v3880
      %v3913 = vunpack.c.l.b16 %v3881
      %v3914 = vunpack.c.l.b16 %v3882
      %v3915 = vunpack.c.l.b16 %v3883
      %v3916 = vpack.c.b16 %v3901, %v3900
      %v3917 = vpack.c.b16 %v3903, %v3902
      %v3918 = vpack.c.b16 %v3905, %v3904
      %v3919 = vpack.c.b16 %v3907, %v3906
      %v3920 = vpack.c.b16 %v3909, %v3908
      %v3921 = vpack.c.b16 %v3911, %v3910
      %v3922 = vpack.c.b16 %v3913, %v3912
      %v3923 = vpack.c.b16 %v3915, %v3914
      %3932 = vmatpush.bf16.msra.mxu0 %v3923
      %3933 = vmatpush.bf16.msra.mxu0 %v3922
      %3934 = vmatpush.bf16.msra.mxu0 %v3921
      %3935 = vmatpush.bf16.msra.mxu0 %v3920
      %3936 = vmatpush.bf16.msra.mxu0 %v3919
      %3937 = vmatpush.bf16.msra.mxu0 %v3918
      %3938 = vmatpush.bf16.msra.mxu0 %v3917
      %3939 = vmatpush.bf16.msra.mxu0 %v3916
      %3940 = vmatmul.bf16.gmra.mxu0 %v3526
      %v3941 = vpop.f32.mrf.mxu0
      %v3942 = vadd.f32 0.0, %v3941
      %v3943 = vpop.f32.mrf.mxu0
      %v3944 = vadd.f32 0.0, %v3943
      %3945 = vmatmul.bf16.gmra.mxu0 %v3527
      %v3946 = vpop.f32.mrf.mxu0
      %v3947 = vadd.f32 0.0, %v3946
      %v3948 = vpop.f32.mrf.mxu0
      %v3949 = vadd.f32 0.0, %v3948
      %3950 = vmatmul.bf16.gmra.mxu0 %v3528
      %v3951 = vpop.f32.mrf.mxu0
      %v3952 = vadd.f32 0.0, %v3951
      %v3953 = vpop.f32.mrf.mxu0
      %v3954 = vadd.f32 0.0, %v3953
      %3955 = vmatmul.bf16.gmra.mxu0 %v3529
      %v3956 = vpop.f32.mrf.mxu0
      %v3957 = vadd.f32 0.0, %v3956
      %v3958 = vpop.f32.mrf.mxu0
      %v3959 = vadd.f32 0.0, %v3958
      %3960 = vmatmul.bf16.gmra.mxu0 %v3530
      %v3961 = vpop.f32.mrf.mxu0
      %v3962 = vadd.f32 0.0, %v3961
      %v3963 = vpop.f32.mrf.mxu0
      %v3964 = vadd.f32 0.0, %v3963
      %3965 = vmatmul.bf16.gmra.mxu0 %v3531
      %v3966 = vpop.f32.mrf.mxu0
      %v3967 = vadd.f32 0.0, %v3966
      %v3968 = vpop.f32.mrf.mxu0
      %v3969 = vadd.f32 0.0, %v3968
      %3970 = vmatmul.bf16.gmra.mxu0 %v3532
      %v3971 = vpop.f32.mrf.mxu0
      %v3972 = vadd.f32 0.0, %v3971
      %v3973 = vpop.f32.mrf.mxu0
      %v3974 = vadd.f32 0.0, %v3973
      %3975 = vmatmul.bf16.gmra.mxu0 %v3533
      %v3976 = vpop.f32.mrf.mxu0
      %v3977 = vadd.f32 0.0, %v3976
      %v3978 = vpop.f32.mrf.mxu0
      %v3979 = vadd.f32 0.0, %v3978
      %3980 = vmatmul.bf16.gmra.mxu0 %v3534
      %v3981 = vpop.f32.mrf.mxu0
      %v3982 = vadd.f32 0.0, %v3981
      %v3983 = vpop.f32.mrf.mxu0
      %v3984 = vadd.f32 0.0, %v3983
      %3985 = vmatmul.bf16.gmra.mxu0 %v3535
      %v3986 = vpop.f32.mrf.mxu0
      %v3987 = vadd.f32 0.0, %v3986
      %v3988 = vpop.f32.mrf.mxu0
      %v3989 = vadd.f32 0.0, %v3988
      %3990 = vmatmul.bf16.gmra.mxu0 %v3536
      %v3991 = vpop.f32.mrf.mxu0
      %v3992 = vadd.f32 0.0, %v3991
      %v3993 = vpop.f32.mrf.mxu0
      %v3994 = vadd.f32 0.0, %v3993
      %3995 = vmatmul.bf16.gmra.mxu0 %v3537
      %v3996 = vpop.f32.mrf.mxu0
      %v3997 = vadd.f32 0.0, %v3996
      %v3998 = vpop.f32.mrf.mxu0
      %v3999 = vadd.f32 0.0, %v3998
      %4000 = vmatmul.bf16.gmra.mxu0 %v3538
      %v4001 = vpop.f32.mrf.mxu0
      %v4002 = vadd.f32 0.0, %v4001
      %v4003 = vpop.f32.mrf.mxu0
      %v4004 = vadd.f32 0.0, %v4003
      %4005 = vmatmul.bf16.gmra.mxu0 %v3539
      %v4006 = vpop.f32.mrf.mxu0
      %v4007 = vadd.f32 0.0, %v4006
      %v4008 = vpop.f32.mrf.mxu0
      %v4009 = vadd.f32 0.0, %v4008
      %4010 = vmatmul.bf16.gmra.mxu0 %v3540
      %v4011 = vpop.f32.mrf.mxu0
      %v4012 = vadd.f32 0.0, %v4011
      %v4013 = vpop.f32.mrf.mxu0
      %v4014 = vadd.f32 0.0, %v4013
      %4015 = vmatmul.bf16.gmra.mxu0 %v3541
      %v4016 = vpop.f32.mrf.mxu0
      %v4017 = vadd.f32 0.0, %v4016
      %v4018 = vpop.f32.mrf.mxu0
      %v4019 = vadd.f32 0.0, %v4018
      %4020 = vdwg.mxu0
      %v4021 = vadd.f32 %v3788, %v3942
      %v4022 = vadd.f32 %v3790, %v3944
      %v4023 = vadd.f32 %v3793, %v3947
      %v4024 = vadd.f32 %v3795, %v3949
      %v4025 = vadd.f32 %v3798, %v3952
      %v4026 = vadd.f32 %v3800, %v3954
      %v4027 = vadd.f32 %v3803, %v3957
      %v4028 = vadd.f32 %v3805, %v3959
      %v4029 = vadd.f32 %v3808, %v3962
      %v4030 = vadd.f32 %v3810, %v3964
      %v4031 = vadd.f32 %v3813, %v3967
      %v4032 = vadd.f32 %v3815, %v3969
      %v4033 = vadd.f32 %v3818, %v3972
      %v4034 = vadd.f32 %v3820, %v3974
      %v4035 = vadd.f32 %v3823, %v3977
      %v4036 = vadd.f32 %v3825, %v3979
      %v4037 = vadd.f32 %v3828, %v3982
      %v4038 = vadd.f32 %v3830, %v3984
      %v4039 = vadd.f32 %v3833, %v3987
      %v4040 = vadd.f32 %v3835, %v3989
      %v4041 = vadd.f32 %v3838, %v3992
      %v4042 = vadd.f32 %v3840, %v3994
      %v4043 = vadd.f32 %v3843, %v3997
      %v4044 = vadd.f32 %v3845, %v3999
      %v4045 = vadd.f32 %v3848, %v4002
      %v4046 = vadd.f32 %v3850, %v4004
      %v4047 = vadd.f32 %v3853, %v4007
      %v4048 = vadd.f32 %v3855, %v4009
      %v4049 = vadd.f32 %v3858, %v4012
      %v4050 = vadd.f32 %v3860, %v4014
      %v4051 = vadd.f32 %v3863, %v4017
      %v4052 = vadd.f32 %v3865, %v4019
      %s4053 = scalar_lea.vmem %s3, 192
      %v4054 = vld [vmem:[%s4053] sm:$0xf]
      %v4055 = vld [vmem:[%s4053 + $0x4] sm:$0xf]
      %v4056 = vld [vmem:[%s4053 + $0x8] sm:$0xf]
      %v4057 = vld [vmem:[%s4053 + $0xc] sm:$0xf]
      %v4058 = vld [vmem:[%s4053 + $0x10] sm:$0xf]
      %v4059 = vld [vmem:[%s4053 + $0x14] sm:$0xf]
      %v4060 = vld [vmem:[%s4053 + $0x18] sm:$0xf]
      %v4061 = vld [vmem:[%s4053 + $0x1c] sm:$0xf]
      %v4062 = vld [vmem:[%s4053 + $0x20] sm:$0xf]
      %v4063 = vld [vmem:[%s4053 + $0x24] sm:$0xf]
      %v4064 = vld [vmem:[%s4053 + $0x28] sm:$0xf]
      %v4065 = vld [vmem:[%s4053 + $0x2c] sm:$0xf]
      %v4066 = vld [vmem:[%s4053 + $0x30] sm:$0xf]
      %v4067 = vld [vmem:[%s4053 + $0x34] sm:$0xf]
      %v4068 = vld [vmem:[%s4053 + $0x38] sm:$0xf]
      %v4069 = vld [vmem:[%s4053 + $0x3c] sm:$0xf]
      %v4086 = vunpack.c.l.b16 %v4054
      %v4087 = vunpack.c.l.b16 %v4055
      %v4088 = vunpack.c.l.b16 %v4056
      %v4089 = vunpack.c.l.b16 %v4057
      %v4090 = vunpack.c.l.b16 %v4058
      %v4091 = vunpack.c.l.b16 %v4059
      %v4092 = vunpack.c.l.b16 %v4060
      %v4093 = vunpack.c.l.b16 %v4061
      %v4094 = vunpack.c.l.b16 %v4062
      %v4095 = vunpack.c.l.b16 %v4063
      %v4096 = vunpack.c.l.b16 %v4064
      %v4097 = vunpack.c.l.b16 %v4065
      %v4098 = vunpack.c.l.b16 %v4066
      %v4099 = vunpack.c.l.b16 %v4067
      %v4100 = vunpack.c.l.b16 %v4068
      %v4101 = vunpack.c.l.b16 %v4069
      %v4102 = vpack.c.b16 %v4087, %v4086
      %v4103 = vpack.c.b16 %v4089, %v4088
      %v4104 = vpack.c.b16 %v4091, %v4090
      %v4105 = vpack.c.b16 %v4093, %v4092
      %v4106 = vpack.c.b16 %v4095, %v4094
      %v4107 = vpack.c.b16 %v4097, %v4096
      %v4108 = vpack.c.b16 %v4099, %v4098
      %v4109 = vpack.c.b16 %v4101, %v4100
      %4118 = vmatpush.bf16.msra.mxu0 %v4109
      %4119 = vmatpush.bf16.msra.mxu0 %v4108
      %4120 = vmatpush.bf16.msra.mxu0 %v4107
      %4121 = vmatpush.bf16.msra.mxu0 %v4106
      %4122 = vmatpush.bf16.msra.mxu0 %v4105
      %4123 = vmatpush.bf16.msra.mxu0 %v4104
      %4124 = vmatpush.bf16.msra.mxu0 %v4103
      %4125 = vmatpush.bf16.msra.mxu0 %v4102
      %4126 = vmatmul.bf16.gmra.mxu0 %v3455
      %v4127 = vpop.f32.mrf.mxu0
      %v4128 = vadd.f32 0.0, %v4127
      %v4129 = vpop.f32.mrf.mxu0
      %v4130 = vadd.f32 0.0, %v4129
      %4131 = vmatmul.bf16.gmra.mxu0 %v3456
      %v4132 = vpop.f32.mrf.mxu0
      %v4133 = vadd.f32 0.0, %v4132
      %v4134 = vpop.f32.mrf.mxu0
      %v4135 = vadd.f32 0.0, %v4134
      %4136 = vmatmul.bf16.gmra.mxu0 %v3457
      %v4137 = vpop.f32.mrf.mxu0
      %v4138 = vadd.f32 0.0, %v4137
      %v4139 = vpop.f32.mrf.mxu0
      %v4140 = vadd.f32 0.0, %v4139
      %4141 = vmatmul.bf16.gmra.mxu0 %v3458
      %v4142 = vpop.f32.mrf.mxu0
      %v4143 = vadd.f32 0.0, %v4142
      %v4144 = vpop.f32.mrf.mxu0
      %v4145 = vadd.f32 0.0, %v4144
      %4146 = vmatmul.bf16.gmra.mxu0 %v3459
      %v4147 = vpop.f32.mrf.mxu0
      %v4148 = vadd.f32 0.0, %v4147
      %v4149 = vpop.f32.mrf.mxu0
      %v4150 = vadd.f32 0.0, %v4149
      %4151 = vmatmul.bf16.gmra.mxu0 %v3460
      %v4152 = vpop.f32.mrf.mxu0
      %v4153 = vadd.f32 0.0, %v4152
      %v4154 = vpop.f32.mrf.mxu0
      %v4155 = vadd.f32 0.0, %v4154
      %4156 = vmatmul.bf16.gmra.mxu0 %v3461
      %v4157 = vpop.f32.mrf.mxu0
      %v4158 = vadd.f32 0.0, %v4157
      %v4159 = vpop.f32.mrf.mxu0
      %v4160 = vadd.f32 0.0, %v4159
      %4161 = vmatmul.bf16.gmra.mxu0 %v3462
      %v4162 = vpop.f32.mrf.mxu0
      %v4163 = vadd.f32 0.0, %v4162
      %v4164 = vpop.f32.mrf.mxu0
      %v4165 = vadd.f32 0.0, %v4164
      %4166 = vmatmul.bf16.gmra.mxu0 %v3463
      %v4167 = vpop.f32.mrf.mxu0
      %v4168 = vadd.f32 0.0, %v4167
      %v4169 = vpop.f32.mrf.mxu0
      %v4170 = vadd.f32 0.0, %v4169
      %4171 = vmatmul.bf16.gmra.mxu0 %v3464
      %v4172 = vpop.f32.mrf.mxu0
      %v4173 = vadd.f32 0.0, %v4172
      %v4174 = vpop.f32.mrf.mxu0
      %v4175 = vadd.f32 0.0, %v4174
      %4176 = vmatmul.bf16.gmra.mxu0 %v3465
      %v4177 = vpop.f32.mrf.mxu0
      %v4178 = vadd.f32 0.0, %v4177
      %v4179 = vpop.f32.mrf.mxu0
      %v4180 = vadd.f32 0.0, %v4179
      %4181 = vmatmul.bf16.gmra.mxu0 %v3466
      %v4182 = vpop.f32.mrf.mxu0
      %v4183 = vadd.f32 0.0, %v4182
      %v4184 = vpop.f32.mrf.mxu0
      %v4185 = vadd.f32 0.0, %v4184
      %4186 = vmatmul.bf16.gmra.mxu0 %v3467
      %v4187 = vpop.f32.mrf.mxu0
      %v4188 = vadd.f32 0.0, %v4187
      %v4189 = vpop.f32.mrf.mxu0
      %v4190 = vadd.f32 0.0, %v4189
      %4191 = vmatmul.bf16.gmra.mxu0 %v3468
      %v4192 = vpop.f32.mrf.mxu0
      %v4193 = vadd.f32 0.0, %v4192
      %v4194 = vpop.f32.mrf.mxu0
      %v4195 = vadd.f32 0.0, %v4194
      %4196 = vmatmul.bf16.gmra.mxu0 %v3469
      %v4197 = vpop.f32.mrf.mxu0
      %v4198 = vadd.f32 0.0, %v4197
      %v4199 = vpop.f32.mrf.mxu0
      %v4200 = vadd.f32 0.0, %v4199
      %4201 = vmatmul.bf16.gmra.mxu0 %v3470
      %v4202 = vpop.f32.mrf.mxu0
      %v4203 = vadd.f32 0.0, %v4202
      %v4204 = vpop.f32.mrf.mxu0
      %v4205 = vadd.f32 0.0, %v4204
      %4206 = vdwg.mxu0
      %v4207 = vadd.f32 %v4021, %v4128
      %v4208 = vadd.f32 %v4022, %v4130
      %v4209 = vadd.f32 %v4023, %v4133
      %v4210 = vadd.f32 %v4024, %v4135
      %v4211 = vadd.f32 %v4025, %v4138
      %v4212 = vadd.f32 %v4026, %v4140
      %v4213 = vadd.f32 %v4027, %v4143
      %v4214 = vadd.f32 %v4028, %v4145
      %v4215 = vadd.f32 %v4029, %v4148
      %v4216 = vadd.f32 %v4030, %v4150
      %v4217 = vadd.f32 %v4031, %v4153
      %v4218 = vadd.f32 %v4032, %v4155
      %v4219 = vadd.f32 %v4033, %v4158
      %v4220 = vadd.f32 %v4034, %v4160
      %v4221 = vadd.f32 %v4035, %v4163
      %v4222 = vadd.f32 %v4036, %v4165
      %v4223 = vadd.f32 %v4037, %v4168
      %v4224 = vadd.f32 %v4038, %v4170
      %v4225 = vadd.f32 %v4039, %v4173
      %v4226 = vadd.f32 %v4040, %v4175
      %v4227 = vadd.f32 %v4041, %v4178
      %v4228 = vadd.f32 %v4042, %v4180
      %v4229 = vadd.f32 %v4043, %v4183
      %v4230 = vadd.f32 %v4044, %v4185
      %v4231 = vadd.f32 %v4045, %v4188
      %v4232 = vadd.f32 %v4046, %v4190
      %v4233 = vadd.f32 %v4047, %v4193
      %v4234 = vadd.f32 %v4048, %v4195
      %v4235 = vadd.f32 %v4049, %v4198
      %v4236 = vadd.f32 %v4050, %v4200
      %v4237 = vadd.f32 %v4051, %v4203
      %v4238 = vadd.f32 %v4052, %v4205
      %s4239 = scalar_lea.vmem %s3, 256
      %v4240 = vld [vmem:[%s4239] sm:$0xf]
      %v4241 = vld [vmem:[%s4239 + $0x4] sm:$0xf]
      %v4242 = vld [vmem:[%s4239 + $0x8] sm:$0xf]
      %v4243 = vld [vmem:[%s4239 + $0xc] sm:$0xf]
      %v4244 = vld [vmem:[%s4239 + $0x10] sm:$0xf]
      %v4245 = vld [vmem:[%s4239 + $0x14] sm:$0xf]
      %v4246 = vld [vmem:[%s4239 + $0x18] sm:$0xf]
      %v4247 = vld [vmem:[%s4239 + $0x1c] sm:$0xf]
      %v4248 = vld [vmem:[%s4239 + $0x20] sm:$0xf]
      %v4249 = vld [vmem:[%s4239 + $0x24] sm:$0xf]
      %v4250 = vld [vmem:[%s4239 + $0x28] sm:$0xf]
      %v4251 = vld [vmem:[%s4239 + $0x2c] sm:$0xf]
      %v4252 = vld [vmem:[%s4239 + $0x30] sm:$0xf]
      %v4253 = vld [vmem:[%s4239 + $0x34] sm:$0xf]
      %v4254 = vld [vmem:[%s4239 + $0x38] sm:$0xf]
      %v4255 = vld [vmem:[%s4239 + $0x3c] sm:$0xf]
      %v4273 = vunpack.c.l.b16 %v4240
      %v4274 = vunpack.c.l.b16 %v4241
      %v4275 = vunpack.c.l.b16 %v4242
      %v4276 = vunpack.c.l.b16 %v4243
      %v4277 = vunpack.c.l.b16 %v4244
      %v4278 = vunpack.c.l.b16 %v4245
      %v4279 = vunpack.c.l.b16 %v4246
      %v4280 = vunpack.c.l.b16 %v4247
      %v4281 = vunpack.c.l.b16 %v4248
      %v4282 = vunpack.c.l.b16 %v4249
      %v4283 = vunpack.c.l.b16 %v4250
      %v4284 = vunpack.c.l.b16 %v4251
      %v4285 = vunpack.c.l.b16 %v4252
      %v4286 = vunpack.c.l.b16 %v4253
      %v4287 = vunpack.c.l.b16 %v4254
      %v4288 = vunpack.c.l.b16 %v4255
      %v4289 = vpack.c.b16 %v4274, %v4273
      %v4290 = vpack.c.b16 %v4276, %v4275
      %v4291 = vpack.c.b16 %v4278, %v4277
      %v4292 = vpack.c.b16 %v4280, %v4279
      %v4293 = vpack.c.b16 %v4282, %v4281
      %v4294 = vpack.c.b16 %v4284, %v4283
      %v4295 = vpack.c.b16 %v4286, %v4285
      %v4296 = vpack.c.b16 %v4288, %v4287
      %4305 = vmatpush.bf16.msra.mxu0 %v4296
      %4306 = vmatpush.bf16.msra.mxu0 %v4295
      %4307 = vmatpush.bf16.msra.mxu0 %v4294
      %4308 = vmatpush.bf16.msra.mxu0 %v4293
      %4309 = vmatpush.bf16.msra.mxu0 %v4292
      %4310 = vmatpush.bf16.msra.mxu0 %v4291
      %4311 = vmatpush.bf16.msra.mxu0 %v4290
      %4312 = vmatpush.bf16.msra.mxu0 %v4289
      %4313 = vmatmul.bf16.gmra.mxu0 %v3293
      %v4314 = vpop.f32.mrf.mxu0
      %v4315 = vadd.f32 0.0, %v4314
      %v4316 = vpop.f32.mrf.mxu0
      %v4317 = vadd.f32 0.0, %v4316
      %4318 = vmatmul.bf16.gmra.mxu0 %v3294
      %v4319 = vpop.f32.mrf.mxu0
      %v4320 = vadd.f32 0.0, %v4319
      %v4321 = vpop.f32.mrf.mxu0
      %v4322 = vadd.f32 0.0, %v4321
      %4323 = vmatmul.bf16.gmra.mxu0 %v3295
      %v4324 = vpop.f32.mrf.mxu0
      %v4325 = vadd.f32 0.0, %v4324
      %v4326 = vpop.f32.mrf.mxu0
      %v4327 = vadd.f32 0.0, %v4326
      %4328 = vmatmul.bf16.gmra.mxu0 %v3296
      %v4329 = vpop.f32.mrf.mxu0
      %v4330 = vadd.f32 0.0, %v4329
      %v4331 = vpop.f32.mrf.mxu0
      %v4332 = vadd.f32 0.0, %v4331
      %4333 = vmatmul.bf16.gmra.mxu0 %v3297
      %v4334 = vpop.f32.mrf.mxu0
      %v4335 = vadd.f32 0.0, %v4334
      %v4336 = vpop.f32.mrf.mxu0
      %v4337 = vadd.f32 0.0, %v4336
      %4338 = vmatmul.bf16.gmra.mxu0 %v3298
      %v4339 = vpop.f32.mrf.mxu0
      %v4340 = vadd.f32 0.0, %v4339
      %v4341 = vpop.f32.mrf.mxu0
      %v4342 = vadd.f32 0.0, %v4341
      %4343 = vmatmul.bf16.gmra.mxu0 %v3299
      %v4344 = vpop.f32.mrf.mxu0
      %v4345 = vadd.f32 0.0, %v4344
      %v4346 = vpop.f32.mrf.mxu0
      %v4347 = vadd.f32 0.0, %v4346
      %4348 = vmatmul.bf16.gmra.mxu0 %v3300
      %v4349 = vpop.f32.mrf.mxu0
      %v4350 = vadd.f32 0.0, %v4349
      %v4351 = vpop.f32.mrf.mxu0
      %v4352 = vadd.f32 0.0, %v4351
      %4353 = vmatmul.bf16.gmra.mxu0 %v3301
      %v4354 = vpop.f32.mrf.mxu0
      %v4355 = vadd.f32 0.0, %v4354
      %v4356 = vpop.f32.mrf.mxu0
      %v4357 = vadd.f32 0.0, %v4356
      %4358 = vmatmul.bf16.gmra.mxu0 %v3302
      %v4359 = vpop.f32.mrf.mxu0
      %v4360 = vadd.f32 0.0, %v4359
      %v4361 = vpop.f32.mrf.mxu0
      %v4362 = vadd.f32 0.0, %v4361
      %4363 = vmatmul.bf16.gmra.mxu0 %v3303
      %v4364 = vpop.f32.mrf.mxu0
      %v4365 = vadd.f32 0.0, %v4364
      %v4366 = vpop.f32.mrf.mxu0
      %v4367 = vadd.f32 0.0, %v4366
      %4368 = vmatmul.bf16.gmra.mxu0 %v3304
      %v4369 = vpop.f32.mrf.mxu0
      %v4370 = vadd.f32 0.0, %v4369
      %v4371 = vpop.f32.mrf.mxu0
      %v4372 = vadd.f32 0.0, %v4371
      %4373 = vmatmul.bf16.gmra.mxu0 %v3305
      %v4374 = vpop.f32.mrf.mxu0
      %v4375 = vadd.f32 0.0, %v4374
      %v4376 = vpop.f32.mrf.mxu0
      %v4377 = vadd.f32 0.0, %v4376
      %4378 = vmatmul.bf16.gmra.mxu0 %v3306
      %v4379 = vpop.f32.mrf.mxu0
      %v4380 = vadd.f32 0.0, %v4379
      %v4381 = vpop.f32.mrf.mxu0
      %v4382 = vadd.f32 0.0, %v4381
      %4383 = vmatmul.bf16.gmra.mxu0 %v3307
      %v4384 = vpop.f32.mrf.mxu0
      %v4385 = vadd.f32 0.0, %v4384
      %v4386 = vpop.f32.mrf.mxu0
      %v4387 = vadd.f32 0.0, %v4386
      %4388 = vmatmul.bf16.gmra.mxu0 %v3308
      %v4389 = vpop.f32.mrf.mxu0
      %v4390 = vadd.f32 0.0, %v4389
      %v4391 = vpop.f32.mrf.mxu0
      %v4392 = vadd.f32 0.0, %v4391
      %4393 = vdwg.mxu0
      %v4394 = vadd.f32 %v4207, %v4315
      %v4395 = vadd.f32 %v4208, %v4317
      %v4396 = vadd.f32 %v4209, %v4320
      %v4397 = vadd.f32 %v4210, %v4322
      %v4398 = vadd.f32 %v4211, %v4325
      %v4399 = vadd.f32 %v4212, %v4327
      %v4400 = vadd.f32 %v4213, %v4330
      %v4401 = vadd.f32 %v4214, %v4332
      %v4402 = vadd.f32 %v4215, %v4335
      %v4403 = vadd.f32 %v4216, %v4337
      %v4404 = vadd.f32 %v4217, %v4340
      %v4405 = vadd.f32 %v4218, %v4342
      %v4406 = vadd.f32 %v4219, %v4345
      %v4407 = vadd.f32 %v4220, %v4347
      %v4408 = vadd.f32 %v4221, %v4350
      %v4409 = vadd.f32 %v4222, %v4352
      %v4410 = vadd.f32 %v4223, %v4355
      %v4411 = vadd.f32 %v4224, %v4357
      %v4412 = vadd.f32 %v4225, %v4360
      %v4413 = vadd.f32 %v4226, %v4362
      %v4414 = vadd.f32 %v4227, %v4365
      %v4415 = vadd.f32 %v4228, %v4367
      %v4416 = vadd.f32 %v4229, %v4370
      %v4417 = vadd.f32 %v4230, %v4372
      %v4418 = vadd.f32 %v4231, %v4375
      %v4419 = vadd.f32 %v4232, %v4377
      %v4420 = vadd.f32 %v4233, %v4380
      %v4421 = vadd.f32 %v4234, %v4382
      %v4422 = vadd.f32 %v4235, %v4385
      %v4423 = vadd.f32 %v4236, %v4387
      %v4424 = vadd.f32 %v4237, %v4390
      %v4425 = vadd.f32 %v4238, %v4392
      %s4426 = scalar_lea.vmem %s3, 320
      %v4427 = vld [vmem:[%s4426] sm:$0xf]
      %v4428 = vld [vmem:[%s4426 + $0x4] sm:$0xf]
      %v4429 = vld [vmem:[%s4426 + $0x8] sm:$0xf]
      %v4430 = vld [vmem:[%s4426 + $0xc] sm:$0xf]
      %v4431 = vld [vmem:[%s4426 + $0x10] sm:$0xf]
      %v4432 = vld [vmem:[%s4426 + $0x14] sm:$0xf]
      %v4433 = vld [vmem:[%s4426 + $0x18] sm:$0xf]
      %v4434 = vld [vmem:[%s4426 + $0x1c] sm:$0xf]
      %v4435 = vld [vmem:[%s4426 + $0x20] sm:$0xf]
      %v4436 = vld [vmem:[%s4426 + $0x24] sm:$0xf]
      %v4437 = vld [vmem:[%s4426 + $0x28] sm:$0xf]
      %v4438 = vld [vmem:[%s4426 + $0x2c] sm:$0xf]
      %v4439 = vld [vmem:[%s4426 + $0x30] sm:$0xf]
      %v4440 = vld [vmem:[%s4426 + $0x34] sm:$0xf]
      %v4441 = vld [vmem:[%s4426 + $0x38] sm:$0xf]
      %v4442 = vld [vmem:[%s4426 + $0x3c] sm:$0xf]
      %v4459 = vunpack.c.l.b16 %v4427
      %v4460 = vunpack.c.l.b16 %v4428
      %v4461 = vunpack.c.l.b16 %v4429
      %v4462 = vunpack.c.l.b16 %v4430
      %v4463 = vunpack.c.l.b16 %v4431
      %v4464 = vunpack.c.l.b16 %v4432
      %v4465 = vunpack.c.l.b16 %v4433
      %v4466 = vunpack.c.l.b16 %v4434
      %v4467 = vunpack.c.l.b16 %v4435
      %v4468 = vunpack.c.l.b16 %v4436
      %v4469 = vunpack.c.l.b16 %v4437
      %v4470 = vunpack.c.l.b16 %v4438
      %v4471 = vunpack.c.l.b16 %v4439
      %v4472 = vunpack.c.l.b16 %v4440
      %v4473 = vunpack.c.l.b16 %v4441
      %v4474 = vunpack.c.l.b16 %v4442
      %v4475 = vpack.c.b16 %v4460, %v4459
      %v4476 = vpack.c.b16 %v4462, %v4461
      %v4477 = vpack.c.b16 %v4464, %v4463
      %v4478 = vpack.c.b16 %v4466, %v4465
      %v4479 = vpack.c.b16 %v4468, %v4467
      %v4480 = vpack.c.b16 %v4470, %v4469
      %v4481 = vpack.c.b16 %v4472, %v4471
      %v4482 = vpack.c.b16 %v4474, %v4473
      %4491 = vmatpush.bf16.msra.mxu0 %v4482
      %4492 = vmatpush.bf16.msra.mxu0 %v4481
      %4493 = vmatpush.bf16.msra.mxu0 %v4480
      %4494 = vmatpush.bf16.msra.mxu0 %v4479
      %4495 = vmatpush.bf16.msra.mxu0 %v4478
      %4496 = vmatpush.bf16.msra.mxu0 %v4477
      %4497 = vmatpush.bf16.msra.mxu0 %v4476
      %4498 = vmatpush.bf16.msra.mxu0 %v4475
      %4499 = vmatmul.bf16.gmra.mxu0 %v3527
      %v4500 = vpop.f32.mrf.mxu0
      %v4501 = vadd.f32 0.0, %v4500
      %v4502 = vpop.f32.mrf.mxu0
      %v4503 = vadd.f32 0.0, %v4502
      %4504 = vmatmul.bf16.gmra.mxu0 %v3528
      %v4505 = vpop.f32.mrf.mxu0
      %v4506 = vadd.f32 0.0, %v4505
      %v4507 = vpop.f32.mrf.mxu0
      %v4508 = vadd.f32 0.0, %v4507
      %4509 = vmatmul.bf16.gmra.mxu0 %v3529
      %v4510 = vpop.f32.mrf.mxu0
      %v4511 = vadd.f32 0.0, %v4510
      %v4512 = vpop.f32.mrf.mxu0
      %v4513 = vadd.f32 0.0, %v4512
      %4514 = vmatmul.bf16.gmra.mxu0 %v3530
      %v4515 = vpop.f32.mrf.mxu0
      %v4516 = vadd.f32 0.0, %v4515
      %v4517 = vpop.f32.mrf.mxu0
      %v4518 = vadd.f32 0.0, %v4517
      %4519 = vmatmul.bf16.gmra.mxu0 %v3531
      %v4520 = vpop.f32.mrf.mxu0
      %v4521 = vadd.f32 0.0, %v4520
      %v4522 = vpop.f32.mrf.mxu0
      %v4523 = vadd.f32 0.0, %v4522
      %4524 = vmatmul.bf16.gmra.mxu0 %v3532
      %v4525 = vpop.f32.mrf.mxu0
      %v4526 = vadd.f32 0.0, %v4525
      %v4527 = vpop.f32.mrf.mxu0
      %v4528 = vadd.f32 0.0, %v4527
      %4529 = vmatmul.bf16.gmra.mxu0 %v3533
      %v4530 = vpop.f32.mrf.mxu0
      %v4531 = vadd.f32 0.0, %v4530
      %v4532 = vpop.f32.mrf.mxu0
      %v4533 = vadd.f32 0.0, %v4532
      %4534 = vmatmul.bf16.gmra.mxu0 %v3534
      %v4535 = vpop.f32.mrf.mxu0
      %v4536 = vadd.f32 0.0, %v4535
      %v4537 = vpop.f32.mrf.mxu0
      %v4538 = vadd.f32 0.0, %v4537
      %4539 = vmatmul.bf16.gmra.mxu0 %v3535
      %v4540 = vpop.f32.mrf.mxu0
      %v4541 = vadd.f32 0.0, %v4540
      %v4542 = vpop.f32.mrf.mxu0
      %v4543 = vadd.f32 0.0, %v4542
      %4544 = vmatmul.bf16.gmra.mxu0 %v3536
      %v4545 = vpop.f32.mrf.mxu0
      %v4546 = vadd.f32 0.0, %v4545
      %v4547 = vpop.f32.mrf.mxu0
      %v4548 = vadd.f32 0.0, %v4547
      %4549 = vmatmul.bf16.gmra.mxu0 %v3537
      %v4550 = vpop.f32.mrf.mxu0
      %v4551 = vadd.f32 0.0, %v4550
      %v4552 = vpop.f32.mrf.mxu0
      %v4553 = vadd.f32 0.0, %v4552
      %4554 = vmatmul.bf16.gmra.mxu0 %v3538
      %v4555 = vpop.f32.mrf.mxu0
      %v4556 = vadd.f32 0.0, %v4555
      %v4557 = vpop.f32.mrf.mxu0
      %v4558 = vadd.f32 0.0, %v4557
      %4559 = vmatmul.bf16.gmra.mxu0 %v3539
      %v4560 = vpop.f32.mrf.mxu0
      %v4561 = vadd.f32 0.0, %v4560
      %v4562 = vpop.f32.mrf.mxu0
      %v4563 = vadd.f32 0.0, %v4562
      %4564 = vmatmul.bf16.gmra.mxu0 %v3540
      %v4565 = vpop.f32.mrf.mxu0
      %v4566 = vadd.f32 0.0, %v4565
      %v4567 = vpop.f32.mrf.mxu0
      %v4568 = vadd.f32 0.0, %v4567
      %4569 = vmatmul.bf16.gmra.mxu0 %v3541
      %v4570 = vpop.f32.mrf.mxu0
      %v4571 = vadd.f32 0.0, %v4570
      %v4572 = vpop.f32.mrf.mxu0
      %v4573 = vadd.f32 0.0, %v4572
      %4574 = vmatmul.bf16.gmra.mxu0 %v3542
      %v4575 = vpop.f32.mrf.mxu0
      %v4576 = vadd.f32 0.0, %v4575
      %v4577 = vpop.f32.mrf.mxu0
      %v4578 = vadd.f32 0.0, %v4577
      %4579 = vdwg.mxu0
      %v4580 = vadd.f32 %v4394, %v4501
      %v4581 = vadd.f32 %v4395, %v4503
      %v4582 = vadd.f32 %v4396, %v4506
      %v4583 = vadd.f32 %v4397, %v4508
      %v4584 = vadd.f32 %v4398, %v4511
      %v4585 = vadd.f32 %v4399, %v4513
      %v4586 = vadd.f32 %v4400, %v4516
      %v4587 = vadd.f32 %v4401, %v4518
      %v4588 = vadd.f32 %v4402, %v4521
      %v4589 = vadd.f32 %v4403, %v4523
      %v4590 = vadd.f32 %v4404, %v4526
      %v4591 = vadd.f32 %v4405, %v4528
      %v4592 = vadd.f32 %v4406, %v4531
      %v4593 = vadd.f32 %v4407, %v4533
      %v4594 = vadd.f32 %v4408, %v4536
      %v4595 = vadd.f32 %v4409, %v4538
      %v4596 = vadd.f32 %v4410, %v4541
      %v4597 = vadd.f32 %v4411, %v4543
      %v4598 = vadd.f32 %v4412, %v4546
      %v4599 = vadd.f32 %v4413, %v4548
      %v4600 = vadd.f32 %v4414, %v4551
      %v4601 = vadd.f32 %v4415, %v4553
      %v4602 = vadd.f32 %v4416, %v4556
      %v4603 = vadd.f32 %v4417, %v4558
      %v4604 = vadd.f32 %v4418, %v4561
      %v4605 = vadd.f32 %v4419, %v4563
      %v4606 = vadd.f32 %v4420, %v4566
      %v4607 = vadd.f32 %v4421, %v4568
      %v4608 = vadd.f32 %v4422, %v4571
      %v4609 = vadd.f32 %v4423, %v4573
      %v4610 = vadd.f32 %v4424, %v4576
      %v4611 = vadd.f32 %v4425, %v4578
      %s4612 = scalar_lea.vmem %s3, 384
      %v4613 = vld [vmem:[%s4612] sm:$0xf]
      %v4614 = vld [vmem:[%s4612 + $0x4] sm:$0xf]
      %v4615 = vld [vmem:[%s4612 + $0x8] sm:$0xf]
      %v4616 = vld [vmem:[%s4612 + $0xc] sm:$0xf]
      %v4617 = vld [vmem:[%s4612 + $0x10] sm:$0xf]
      %v4618 = vld [vmem:[%s4612 + $0x14] sm:$0xf]
      %v4619 = vld [vmem:[%s4612 + $0x18] sm:$0xf]
      %v4620 = vld [vmem:[%s4612 + $0x1c] sm:$0xf]
      %v4621 = vld [vmem:[%s4612 + $0x20] sm:$0xf]
      %v4622 = vld [vmem:[%s4612 + $0x24] sm:$0xf]
      %v4623 = vld [vmem:[%s4612 + $0x28] sm:$0xf]
      %v4624 = vld [vmem:[%s4612 + $0x2c] sm:$0xf]
      %v4625 = vld [vmem:[%s4612 + $0x30] sm:$0xf]
      %v4626 = vld [vmem:[%s4612 + $0x34] sm:$0xf]
      %v4627 = vld [vmem:[%s4612 + $0x38] sm:$0xf]
      %v4628 = vld [vmem:[%s4612 + $0x3c] sm:$0xf]
      %v4645 = vunpack.c.l.b16 %v4613
      %v4646 = vunpack.c.l.b16 %v4614
      %v4647 = vunpack.c.l.b16 %v4615
      %v4648 = vunpack.c.l.b16 %v4616
      %v4649 = vunpack.c.l.b16 %v4617
      %v4650 = vunpack.c.l.b16 %v4618
      %v4651 = vunpack.c.l.b16 %v4619
      %v4652 = vunpack.c.l.b16 %v4620
      %v4653 = vunpack.c.l.b16 %v4621
      %v4654 = vunpack.c.l.b16 %v4622
      %v4655 = vunpack.c.l.b16 %v4623
      %v4656 = vunpack.c.l.b16 %v4624
      %v4657 = vunpack.c.l.b16 %v4625
      %v4658 = vunpack.c.l.b16 %v4626
      %v4659 = vunpack.c.l.b16 %v4627
      %v4660 = vunpack.c.l.b16 %v4628
      %v4661 = vpack.c.b16 %v4646, %v4645
      %v4662 = vpack.c.b16 %v4648, %v4647
      %v4663 = vpack.c.b16 %v4650, %v4649
      %v4664 = vpack.c.b16 %v4652, %v4651
      %v4665 = vpack.c.b16 %v4654, %v4653
      %v4666 = vpack.c.b16 %v4656, %v4655
      %v4667 = vpack.c.b16 %v4658, %v4657
      %v4668 = vpack.c.b16 %v4660, %v4659
      %4677 = vmatpush.bf16.msra.mxu0 %v4668
      %4678 = vmatpush.bf16.msra.mxu0 %v4667
      %4679 = vmatpush.bf16.msra.mxu0 %v4666
      %4680 = vmatpush.bf16.msra.mxu0 %v4665
      %4681 = vmatpush.bf16.msra.mxu0 %v4664
      %4682 = vmatpush.bf16.msra.mxu0 %v4663
      %4683 = vmatpush.bf16.msra.mxu0 %v4662
      %4684 = vmatpush.bf16.msra.mxu0 %v4661
      %4685 = vmatmul.bf16.gmra.mxu0 %v3456
      %v4686 = vpop.f32.mrf.mxu0
      %v4687 = vadd.f32 0.0, %v4686
      %v4688 = vpop.f32.mrf.mxu0
      %v4689 = vadd.f32 0.0, %v4688
      %4690 = vmatmul.bf16.gmra.mxu0 %v3457
      %v4691 = vpop.f32.mrf.mxu0
      %v4692 = vadd.f32 0.0, %v4691
      %v4693 = vpop.f32.mrf.mxu0
      %v4694 = vadd.f32 0.0, %v4693
      %4695 = vmatmul.bf16.gmra.mxu0 %v3458
      %v4696 = vpop.f32.mrf.mxu0
      %v4697 = vadd.f32 0.0, %v4696
      %v4698 = vpop.f32.mrf.mxu0
      %v4699 = vadd.f32 0.0, %v4698
      %4700 = vmatmul.bf16.gmra.mxu0 %v3459
      %v4701 = vpop.f32.mrf.mxu0
      %v4702 = vadd.f32 0.0, %v4701
      %v4703 = vpop.f32.mrf.mxu0
      %v4704 = vadd.f32 0.0, %v4703
      %4705 = vmatmul.bf16.gmra.mxu0 %v3460
      %v4706 = vpop.f32.mrf.mxu0
      %v4707 = vadd.f32 0.0, %v4706
      %v4708 = vpop.f32.mrf.mxu0
      %v4709 = vadd.f32 0.0, %v4708
      %4710 = vmatmul.bf16.gmra.mxu0 %v3461
      %v4711 = vpop.f32.mrf.mxu0
      %v4712 = vadd.f32 0.0, %v4711
      %v4713 = vpop.f32.mrf.mxu0
      %v4714 = vadd.f32 0.0, %v4713
      %4715 = vmatmul.bf16.gmra.mxu0 %v3462
      %v4716 = vpop.f32.mrf.mxu0
      %v4717 = vadd.f32 0.0, %v4716
      %v4718 = vpop.f32.mrf.mxu0
      %v4719 = vadd.f32 0.0, %v4718
      %4720 = vmatmul.bf16.gmra.mxu0 %v3463
      %v4721 = vpop.f32.mrf.mxu0
      %v4722 = vadd.f32 0.0, %v4721
      %v4723 = vpop.f32.mrf.mxu0
      %v4724 = vadd.f32 0.0, %v4723
      %4725 = vmatmul.bf16.gmra.mxu0 %v3464
      %v4726 = vpop.f32.mrf.mxu0
      %v4727 = vadd.f32 0.0, %v4726
      %v4728 = vpop.f32.mrf.mxu0
      %v4729 = vadd.f32 0.0, %v4728
      %4730 = vmatmul.bf16.gmra.mxu0 %v3465
      %v4731 = vpop.f32.mrf.mxu0
      %v4732 = vadd.f32 0.0, %v4731
      %v4733 = vpop.f32.mrf.mxu0
      %v4734 = vadd.f32 0.0, %v4733
      %4735 = vmatmul.bf16.gmra.mxu0 %v3466
      %v4736 = vpop.f32.mrf.mxu0
      %v4737 = vadd.f32 0.0, %v4736
      %v4738 = vpop.f32.mrf.mxu0
      %v4739 = vadd.f32 0.0, %v4738
      %4740 = vmatmul.bf16.gmra.mxu0 %v3467
      %v4741 = vpop.f32.mrf.mxu0
      %v4742 = vadd.f32 0.0, %v4741
      %v4743 = vpop.f32.mrf.mxu0
      %v4744 = vadd.f32 0.0, %v4743
      %4745 = vmatmul.bf16.gmra.mxu0 %v3468
      %v4746 = vpop.f32.mrf.mxu0
      %v4747 = vadd.f32 0.0, %v4746
      %v4748 = vpop.f32.mrf.mxu0
      %v4749 = vadd.f32 0.0, %v4748
      %4750 = vmatmul.bf16.gmra.mxu0 %v3469
      %v4751 = vpop.f32.mrf.mxu0
      %v4752 = vadd.f32 0.0, %v4751
      %v4753 = vpop.f32.mrf.mxu0
      %v4754 = vadd.f32 0.0, %v4753
      %4755 = vmatmul.bf16.gmra.mxu0 %v3470
      %v4756 = vpop.f32.mrf.mxu0
      %v4757 = vadd.f32 0.0, %v4756
      %v4758 = vpop.f32.mrf.mxu0
      %v4759 = vadd.f32 0.0, %v4758
      %4760 = vmatmul.bf16.gmra.mxu0 %v3471
      %v4761 = vpop.f32.mrf.mxu0
      %v4762 = vadd.f32 0.0, %v4761
      %v4763 = vpop.f32.mrf.mxu0
      %v4764 = vadd.f32 0.0, %v4763
      %4765 = vdwg.mxu0
      %v4766 = vadd.f32 %v4580, %v4687
      %v4767 = vadd.f32 %v4581, %v4689
      %v4768 = vadd.f32 %v4582, %v4692
      %v4769 = vadd.f32 %v4583, %v4694
      %v4770 = vadd.f32 %v4584, %v4697
      %v4771 = vadd.f32 %v4585, %v4699
      %v4772 = vadd.f32 %v4586, %v4702
      %v4773 = vadd.f32 %v4587, %v4704
      %v4774 = vadd.f32 %v4588, %v4707
      %v4775 = vadd.f32 %v4589, %v4709
      %v4776 = vadd.f32 %v4590, %v4712
      %v4777 = vadd.f32 %v4591, %v4714
      %v4778 = vadd.f32 %v4592, %v4717
      %v4779 = vadd.f32 %v4593, %v4719
      %v4780 = vadd.f32 %v4594, %v4722
      %v4781 = vadd.f32 %v4595, %v4724
      %v4782 = vadd.f32 %v4596, %v4727
      %v4783 = vadd.f32 %v4597, %v4729
      %v4784 = vadd.f32 %v4598, %v4732
      %v4785 = vadd.f32 %v4599, %v4734
      %v4786 = vadd.f32 %v4600, %v4737
      %v4787 = vadd.f32 %v4601, %v4739
      %v4788 = vadd.f32 %v4602, %v4742
      %v4789 = vadd.f32 %v4603, %v4744
      %v4790 = vadd.f32 %v4604, %v4747
      %v4791 = vadd.f32 %v4605, %v4749
      %v4792 = vadd.f32 %v4606, %v4752
      %v4793 = vadd.f32 %v4607, %v4754
      %v4794 = vadd.f32 %v4608, %v4757
      %v4795 = vadd.f32 %v4609, %v4759
      %v4796 = vadd.f32 %v4610, %v4762
      %v4797 = vadd.f32 %v4611, %v4764
      %s4798 = scalar_lea.vmem %s3, 448
      %v4799 = vld [vmem:[%s4798] sm:$0xf]
      %v4800 = vld [vmem:[%s4798 + $0x4] sm:$0xf]
      %v4801 = vld [vmem:[%s4798 + $0x8] sm:$0xf]
      %v4802 = vld [vmem:[%s4798 + $0xc] sm:$0xf]
      %v4803 = vld [vmem:[%s4798 + $0x10] sm:$0xf]
      %v4804 = vld [vmem:[%s4798 + $0x14] sm:$0xf]
      %v4805 = vld [vmem:[%s4798 + $0x18] sm:$0xf]
      %v4806 = vld [vmem:[%s4798 + $0x1c] sm:$0xf]
      %v4807 = vld [vmem:[%s4798 + $0x20] sm:$0xf]
      %v4808 = vld [vmem:[%s4798 + $0x24] sm:$0xf]
      %v4809 = vld [vmem:[%s4798 + $0x28] sm:$0xf]
      %v4810 = vld [vmem:[%s4798 + $0x2c] sm:$0xf]
      %v4811 = vld [vmem:[%s4798 + $0x30] sm:$0xf]
      %v4812 = vld [vmem:[%s4798 + $0x34] sm:$0xf]
      %v4813 = vld [vmem:[%s4798 + $0x38] sm:$0xf]
      %v4814 = vld [vmem:[%s4798 + $0x3c] sm:$0xf]
      %v4832 = vunpack.c.l.b16 %v4799
      %v4833 = vunpack.c.l.b16 %v4800
      %v4834 = vunpack.c.l.b16 %v4801
      %v4835 = vunpack.c.l.b16 %v4802
      %v4836 = vunpack.c.l.b16 %v4803
      %v4837 = vunpack.c.l.b16 %v4804
      %v4838 = vunpack.c.l.b16 %v4805
      %v4839 = vunpack.c.l.b16 %v4806
      %v4840 = vunpack.c.l.b16 %v4807
      %v4841 = vunpack.c.l.b16 %v4808
      %v4842 = vunpack.c.l.b16 %v4809
      %v4843 = vunpack.c.l.b16 %v4810
      %v4844 = vunpack.c.l.b16 %v4811
      %v4845 = vunpack.c.l.b16 %v4812
      %v4846 = vunpack.c.l.b16 %v4813
      %v4847 = vunpack.c.l.b16 %v4814
      %v4848 = vpack.c.b16 %v4833, %v4832
      %v4849 = vpack.c.b16 %v4835, %v4834
      %v4850 = vpack.c.b16 %v4837, %v4836
      %v4851 = vpack.c.b16 %v4839, %v4838
      %v4852 = vpack.c.b16 %v4841, %v4840
      %v4853 = vpack.c.b16 %v4843, %v4842
      %v4854 = vpack.c.b16 %v4845, %v4844
      %v4855 = vpack.c.b16 %v4847, %v4846
      %4864 = vmatpush.bf16.msra.mxu0 %v4855
      %4865 = vmatpush.bf16.msra.mxu0 %v4854
      %4866 = vmatpush.bf16.msra.mxu0 %v4853
      %4867 = vmatpush.bf16.msra.mxu0 %v4852
      %4868 = vmatpush.bf16.msra.mxu0 %v4851
      %4869 = vmatpush.bf16.msra.mxu0 %v4850
      %4870 = vmatpush.bf16.msra.mxu0 %v4849
      %4871 = vmatpush.bf16.msra.mxu0 %v4848
      %4872 = vmatmul.bf16.gmra.mxu0 %v3294
      %v4873 = vpop.f32.mrf.mxu0
      %v4874 = vadd.f32 0.0, %v4873
      %v4875 = vpop.f32.mrf.mxu0
      %v4876 = vadd.f32 0.0, %v4875
      %4877 = vmatmul.bf16.gmra.mxu0 %v3295
      %v4878 = vpop.f32.mrf.mxu0
      %v4879 = vadd.f32 0.0, %v4878
      %v4880 = vpop.f32.mrf.mxu0
      %v4881 = vadd.f32 0.0, %v4880
      %4882 = vmatmul.bf16.gmra.mxu0 %v3296
      %v4883 = vpop.f32.mrf.mxu0
      %v4884 = vadd.f32 0.0, %v4883
      %v4885 = vpop.f32.mrf.mxu0
      %v4886 = vadd.f32 0.0, %v4885
      %4887 = vmatmul.bf16.gmra.mxu0 %v3297
      %v4888 = vpop.f32.mrf.mxu0
      %v4889 = vadd.f32 0.0, %v4888
      %v4890 = vpop.f32.mrf.mxu0
      %v4891 = vadd.f32 0.0, %v4890
      %4892 = vmatmul.bf16.gmra.mxu0 %v3298
      %v4893 = vpop.f32.mrf.mxu0
      %v4894 = vadd.f32 0.0, %v4893
      %v4895 = vpop.f32.mrf.mxu0
      %v4896 = vadd.f32 0.0, %v4895
      %4897 = vmatmul.bf16.gmra.mxu0 %v3299
      %v4898 = vpop.f32.mrf.mxu0
      %v4899 = vadd.f32 0.0, %v4898
      %v4900 = vpop.f32.mrf.mxu0
      %v4901 = vadd.f32 0.0, %v4900
      %4902 = vmatmul.bf16.gmra.mxu0 %v3300
      %v4903 = vpop.f32.mrf.mxu0
      %v4904 = vadd.f32 0.0, %v4903
      %v4905 = vpop.f32.mrf.mxu0
      %v4906 = vadd.f32 0.0, %v4905
      %4907 = vmatmul.bf16.gmra.mxu0 %v3301
      %v4908 = vpop.f32.mrf.mxu0
      %v4909 = vadd.f32 0.0, %v4908
      %v4910 = vpop.f32.mrf.mxu0
      %v4911 = vadd.f32 0.0, %v4910
      %4912 = vmatmul.bf16.gmra.mxu0 %v3302
      %v4913 = vpop.f32.mrf.mxu0
      %v4914 = vadd.f32 0.0, %v4913
      %v4915 = vpop.f32.mrf.mxu0
      %v4916 = vadd.f32 0.0, %v4915
      %4917 = vmatmul.bf16.gmra.mxu0 %v3303
      %v4918 = vpop.f32.mrf.mxu0
      %v4919 = vadd.f32 0.0, %v4918
      %v4920 = vpop.f32.mrf.mxu0
      %v4921 = vadd.f32 0.0, %v4920
      %4922 = vmatmul.bf16.gmra.mxu0 %v3304
      %v4923 = vpop.f32.mrf.mxu0
      %v4924 = vadd.f32 0.0, %v4923
      %v4925 = vpop.f32.mrf.mxu0
      %v4926 = vadd.f32 0.0, %v4925
      %4927 = vmatmul.bf16.gmra.mxu0 %v3305
      %v4928 = vpop.f32.mrf.mxu0
      %v4929 = vadd.f32 0.0, %v4928
      %v4930 = vpop.f32.mrf.mxu0
      %v4931 = vadd.f32 0.0, %v4930
      %4932 = vmatmul.bf16.gmra.mxu0 %v3306
      %v4933 = vpop.f32.mrf.mxu0
      %v4934 = vadd.f32 0.0, %v4933
      %v4935 = vpop.f32.mrf.mxu0
      %v4936 = vadd.f32 0.0, %v4935
      %4937 = vmatmul.bf16.gmra.mxu0 %v3307
      %v4938 = vpop.f32.mrf.mxu0
      %v4939 = vadd.f32 0.0, %v4938
      %v4940 = vpop.f32.mrf.mxu0
      %v4941 = vadd.f32 0.0, %v4940
      %4942 = vmatmul.bf16.gmra.mxu0 %v3308
      %v4943 = vpop.f32.mrf.mxu0
      %v4944 = vadd.f32 0.0, %v4943
      %v4945 = vpop.f32.mrf.mxu0
      %v4946 = vadd.f32 0.0, %v4945
      %4947 = vmatmul.bf16.gmra.mxu0 %v3309
      %v4948 = vpop.f32.mrf.mxu0
      %v4949 = vadd.f32 0.0, %v4948
      %v4950 = vpop.f32.mrf.mxu0
      %v4951 = vadd.f32 0.0, %v4950
      %4952 = vdwg.mxu0
      %v4953 = vadd.f32 %v4766, %v4874
      %v4954 = vadd.f32 %v4767, %v4876
      %v4955 = vadd.f32 %v4768, %v4879
      %v4956 = vadd.f32 %v4769, %v4881
      %v4957 = vadd.f32 %v4770, %v4884
      %v4958 = vadd.f32 %v4771, %v4886
      %v4959 = vadd.f32 %v4772, %v4889
      %v4960 = vadd.f32 %v4773, %v4891
      %v4961 = vadd.f32 %v4774, %v4894
      %v4962 = vadd.f32 %v4775, %v4896
      %v4963 = vadd.f32 %v4776, %v4899
      %v4964 = vadd.f32 %v4777, %v4901
      %v4965 = vadd.f32 %v4778, %v4904
      %v4966 = vadd.f32 %v4779, %v4906
      %v4967 = vadd.f32 %v4780, %v4909
      %v4968 = vadd.f32 %v4781, %v4911
      %v4969 = vadd.f32 %v4782, %v4914
      %v4970 = vadd.f32 %v4783, %v4916
      %v4971 = vadd.f32 %v4784, %v4919
      %v4972 = vadd.f32 %v4785, %v4921
      %v4973 = vadd.f32 %v4786, %v4924
      %v4974 = vadd.f32 %v4787, %v4926
      %v4975 = vadd.f32 %v4788, %v4929
      %v4976 = vadd.f32 %v4789, %v4931
      %v4977 = vadd.f32 %v4790, %v4934
      %v4978 = vadd.f32 %v4791, %v4936
      %v4979 = vadd.f32 %v4792, %v4939
      %v4980 = vadd.f32 %v4793, %v4941
      %v4981 = vadd.f32 %v4794, %v4944
      %v4982 = vadd.f32 %v4795, %v4946
      %v4983 = vadd.f32 %v4796, %v4949
      %v4984 = vadd.f32 %v4797, %v4951
      %s4985 = scalar_lea.vmem %s3, 512
      %v4986 = vld [vmem:[%s4985] sm:$0xf]
      %v4987 = vld [vmem:[%s4985 + $0x4] sm:$0xf]
      %v4988 = vld [vmem:[%s4985 + $0x8] sm:$0xf]
      %v4989 = vld [vmem:[%s4985 + $0xc] sm:$0xf]
      %v4990 = vld [vmem:[%s4985 + $0x10] sm:$0xf]
      %v4991 = vld [vmem:[%s4985 + $0x14] sm:$0xf]
      %v4992 = vld [vmem:[%s4985 + $0x18] sm:$0xf]
      %v4993 = vld [vmem:[%s4985 + $0x1c] sm:$0xf]
      %v4994 = vld [vmem:[%s4985 + $0x20] sm:$0xf]
      %v4995 = vld [vmem:[%s4985 + $0x24] sm:$0xf]
      %v4996 = vld [vmem:[%s4985 + $0x28] sm:$0xf]
      %v4997 = vld [vmem:[%s4985 + $0x2c] sm:$0xf]
      %v4998 = vld [vmem:[%s4985 + $0x30] sm:$0xf]
      %v4999 = vld [vmem:[%s4985 + $0x34] sm:$0xf]
      %v5000 = vld [vmem:[%s4985 + $0x38] sm:$0xf]
      %v5001 = vld [vmem:[%s4985 + $0x3c] sm:$0xf]
      %v5018 = vunpack.c.l.b16 %v4986
      %v5019 = vunpack.c.l.b16 %v4987
      %v5020 = vunpack.c.l.b16 %v4988
      %v5021 = vunpack.c.l.b16 %v4989
      %v5022 = vunpack.c.l.b16 %v4990
      %v5023 = vunpack.c.l.b16 %v4991
      %v5024 = vunpack.c.l.b16 %v4992
      %v5025 = vunpack.c.l.b16 %v4993
      %v5026 = vunpack.c.l.b16 %v4994
      %v5027 = vunpack.c.l.b16 %v4995
      %v5028 = vunpack.c.l.b16 %v4996
      %v5029 = vunpack.c.l.b16 %v4997
      %v5030 = vunpack.c.l.b16 %v4998
      %v5031 = vunpack.c.l.b16 %v4999
      %v5032 = vunpack.c.l.b16 %v5000
      %v5033 = vunpack.c.l.b16 %v5001
      %v5034 = vpack.c.b16 %v5019, %v5018
      %v5035 = vpack.c.b16 %v5021, %v5020
      %v5036 = vpack.c.b16 %v5023, %v5022
      %v5037 = vpack.c.b16 %v5025, %v5024
      %v5038 = vpack.c.b16 %v5027, %v5026
      %v5039 = vpack.c.b16 %v5029, %v5028
      %v5040 = vpack.c.b16 %v5031, %v5030
      %v5041 = vpack.c.b16 %v5033, %v5032
      %5050 = vmatpush.bf16.msra.mxu0 %v5041
      %5051 = vmatpush.bf16.msra.mxu0 %v5040
      %5052 = vmatpush.bf16.msra.mxu0 %v5039
      %5053 = vmatpush.bf16.msra.mxu0 %v5038
      %5054 = vmatpush.bf16.msra.mxu0 %v5037
      %5055 = vmatpush.bf16.msra.mxu0 %v5036
      %5056 = vmatpush.bf16.msra.mxu0 %v5035
      %5057 = vmatpush.bf16.msra.mxu0 %v5034
      %5058 = vmatmul.bf16.gmra.mxu0 %v3528
      %v5059 = vpop.f32.mrf.mxu0
      %v5060 = vadd.f32 0.0, %v5059
      %v5061 = vpop.f32.mrf.mxu0
      %v5062 = vadd.f32 0.0, %v5061
      %5063 = vmatmul.bf16.gmra.mxu0 %v3529
      %v5064 = vpop.f32.mrf.mxu0
      %v5065 = vadd.f32 0.0, %v5064
      %v5066 = vpop.f32.mrf.mxu0
      %v5067 = vadd.f32 0.0, %v5066
      %5068 = vmatmul.bf16.gmra.mxu0 %v3530
      %v5069 = vpop.f32.mrf.mxu0
      %v5070 = vadd.f32 0.0, %v5069
      %v5071 = vpop.f32.mrf.mxu0
      %v5072 = vadd.f32 0.0, %v5071
      %5073 = vmatmul.bf16.gmra.mxu0 %v3531
      %v5074 = vpop.f32.mrf.mxu0
      %v5075 = vadd.f32 0.0, %v5074
      %v5076 = vpop.f32.mrf.mxu0
      %v5077 = vadd.f32 0.0, %v5076
      %5078 = vmatmul.bf16.gmra.mxu0 %v3532
      %v5079 = vpop.f32.mrf.mxu0
      %v5080 = vadd.f32 0.0, %v5079
      %v5081 = vpop.f32.mrf.mxu0
      %v5082 = vadd.f32 0.0, %v5081
      %5083 = vmatmul.bf16.gmra.mxu0 %v3533
      %v5084 = vpop.f32.mrf.mxu0
      %v5085 = vadd.f32 0.0, %v5084
      %v5086 = vpop.f32.mrf.mxu0
      %v5087 = vadd.f32 0.0, %v5086
      %5088 = vmatmul.bf16.gmra.mxu0 %v3534
      %v5089 = vpop.f32.mrf.mxu0
      %v5090 = vadd.f32 0.0, %v5089
      %v5091 = vpop.f32.mrf.mxu0
      %v5092 = vadd.f32 0.0, %v5091
      %5093 = vmatmul.bf16.gmra.mxu0 %v3535
      %v5094 = vpop.f32.mrf.mxu0
      %v5095 = vadd.f32 0.0, %v5094
      %v5096 = vpop.f32.mrf.mxu0
      %v5097 = vadd.f32 0.0, %v5096
      %5098 = vmatmul.bf16.gmra.mxu0 %v3536
      %v5099 = vpop.f32.mrf.mxu0
      %v5100 = vadd.f32 0.0, %v5099
      %v5101 = vpop.f32.mrf.mxu0
      %v5102 = vadd.f32 0.0, %v5101
      %5103 = vmatmul.bf16.gmra.mxu0 %v3537
      %v5104 = vpop.f32.mrf.mxu0
      %v5105 = vadd.f32 0.0, %v5104
      %v5106 = vpop.f32.mrf.mxu0
      %v5107 = vadd.f32 0.0, %v5106
      %5108 = vmatmul.bf16.gmra.mxu0 %v3538
      %v5109 = vpop.f32.mrf.mxu0
      %v5110 = vadd.f32 0.0, %v5109
      %v5111 = vpop.f32.mrf.mxu0
      %v5112 = vadd.f32 0.0, %v5111
      %5113 = vmatmul.bf16.gmra.mxu0 %v3539
      %v5114 = vpop.f32.mrf.mxu0
      %v5115 = vadd.f32 0.0, %v5114
      %v5116 = vpop.f32.mrf.mxu0
      %v5117 = vadd.f32 0.0, %v5116
      %5118 = vmatmul.bf16.gmra.mxu0 %v3540
      %v5119 = vpop.f32.mrf.mxu0
      %v5120 = vadd.f32 0.0, %v5119
      %v5121 = vpop.f32.mrf.mxu0
      %v5122 = vadd.f32 0.0, %v5121
      %5123 = vmatmul.bf16.gmra.mxu0 %v3541
      %v5124 = vpop.f32.mrf.mxu0
      %v5125 = vadd.f32 0.0, %v5124
      %v5126 = vpop.f32.mrf.mxu0
      %v5127 = vadd.f32 0.0, %v5126
      %5128 = vmatmul.bf16.gmra.mxu0 %v3542
      %v5129 = vpop.f32.mrf.mxu0
      %v5130 = vadd.f32 0.0, %v5129
      %v5131 = vpop.f32.mrf.mxu0
      %v5132 = vadd.f32 0.0, %v5131
      %5133 = vmatmul.bf16.gmra.mxu0 %v3543
      %v5134 = vpop.f32.mrf.mxu0
      %v5135 = vadd.f32 0.0, %v5134
      %v5136 = vpop.f32.mrf.mxu0
      %v5137 = vadd.f32 0.0, %v5136
      %5138 = vdwg.mxu0
      %v5139 = vadd.f32 %v4953, %v5060
      %v5140 = vadd.f32 %v4954, %v5062
      %v5141 = vadd.f32 %v4955, %v5065
      %v5142 = vadd.f32 %v4956, %v5067
      %v5143 = vadd.f32 %v4957, %v5070
      %v5144 = vadd.f32 %v4958, %v5072
      %v5145 = vadd.f32 %v4959, %v5075
      %v5146 = vadd.f32 %v4960, %v5077
      %v5147 = vadd.f32 %v4961, %v5080
      %v5148 = vadd.f32 %v4962, %v5082
      %v5149 = vadd.f32 %v4963, %v5085
      %v5150 = vadd.f32 %v4964, %v5087
      %v5151 = vadd.f32 %v4965, %v5090
      %v5152 = vadd.f32 %v4966, %v5092
      %v5153 = vadd.f32 %v4967, %v5095
      %v5154 = vadd.f32 %v4968, %v5097
      %v5155 = vadd.f32 %v4969, %v5100
      %v5156 = vadd.f32 %v4970, %v5102
      %v5157 = vadd.f32 %v4971, %v5105
      %v5158 = vadd.f32 %v4972, %v5107
      %v5159 = vadd.f32 %v4973, %v5110
      %v5160 = vadd.f32 %v4974, %v5112
      %v5161 = vadd.f32 %v4975, %v5115
      %v5162 = vadd.f32 %v4976, %v5117
      %v5163 = vadd.f32 %v4977, %v5120
      %v5164 = vadd.f32 %v4978, %v5122
      %v5165 = vadd.f32 %v4979, %v5125
      %v5166 = vadd.f32 %v4980, %v5127
      %v5167 = vadd.f32 %v4981, %v5130
      %v5168 = vadd.f32 %v4982, %v5132
      %v5169 = vadd.f32 %v4983, %v5135
      %v5170 = vadd.f32 %v4984, %v5137
      %s5171 = scalar_lea.vmem %s333, 16
      %v5172 = vld [vmem:[%s5171] sm:$0xf]
      %v5173 = vld [vmem:[%s5171 + $0x4] sm:$0xf]
      %v5174 = vld [vmem:[%s5171 + $0x8] sm:$0xf]
      %v5175 = vld [vmem:[%s5171 + $0xc] sm:$0xf]
      %v5176 = vld [vmem:[%s5171 + $0x10] sm:$0xf]
      %v5177 = vld [vmem:[%s5171 + $0x14] sm:$0xf]
      %v5178 = vld [vmem:[%s5171 + $0x18] sm:$0xf]
      %v5179 = vld [vmem:[%s5171 + $0x1c] sm:$0xf]
      %v5180 = vld [vmem:[%s5171 + $0x20] sm:$0xf]
      %v5181 = vld [vmem:[%s5171 + $0x24] sm:$0xf]
      %v5182 = vld [vmem:[%s5171 + $0x28] sm:$0xf]
      %v5183 = vld [vmem:[%s5171 + $0x2c] sm:$0xf]
      %v5184 = vld [vmem:[%s5171 + $0x30] sm:$0xf]
      %v5185 = vld [vmem:[%s5171 + $0x34] sm:$0xf]
      %v5186 = vld [vmem:[%s5171 + $0x38] sm:$0xf]
      %v5187 = vld [vmem:[%s5171 + $0x3c] sm:$0xf]
      %v5188 = vld [vmem:[%s5171 + $0x40] sm:$0xf]
      %v5189 = vld [vmem:[%s5171 + $0x44] sm:$0xf]
      %v5190 = vld [vmem:[%s5171 + $0x48] sm:$0xf]
      %v5191 = vld [vmem:[%s5171 + $0x4c] sm:$0xf]
      %v5192 = vld [vmem:[%s5171 + $0x50] sm:$0xf]
      %v5193 = vld [vmem:[%s5171 + $0x54] sm:$0xf]
      %v5194 = vld [vmem:[%s5171 + $0x58] sm:$0xf]
      %v5195 = vld [vmem:[%s5171 + $0x5c] sm:$0xf]
      %v5196 = vld [vmem:[%s5171 + $0x60] sm:$0xf]
      %v5197 = vld [vmem:[%s5171 + $0x64] sm:$0xf]
      %v5198 = vld [vmem:[%s5171 + $0x68] sm:$0xf]
      %v5199 = vld [vmem:[%s5171 + $0x6c] sm:$0xf]
      %v5200 = vld [vmem:[%s5171 + $0x70] sm:$0xf]
      %v5201 = vld [vmem:[%s5171 + $0x74] sm:$0xf]
      %v5202 = vld [vmem:[%s5171 + $0x78] sm:$0xf]
      %v5203 = vld [vmem:[%s5171 + $0x7c] sm:$0xf]
      %v5204 = vld [vmem:[%s4] sm:$0xf]
      %v5205 = vld [vmem:[%s4 + $0x4] sm:$0xf]
      %v5206 = vld [vmem:[%s4 + $0x8] sm:$0xf]
      %v5207 = vld [vmem:[%s4 + $0xc] sm:$0xf]
      %v5208 = vld [vmem:[%s4 + $0x10] sm:$0x3]
      %v5241 = vunpack.c.l.b16 %v5172
      %v5242 = vunpack.c.l.b16 %v5173
      %v5243 = vunpack.c.l.b16 %v5174
      %v5244 = vunpack.c.l.b16 %v5175
      %v5245 = vunpack.c.l.b16 %v5176
      %v5246 = vunpack.c.l.b16 %v5177
      %v5247 = vunpack.c.l.b16 %v5178
      %v5248 = vunpack.c.l.b16 %v5179
      %v5249 = vunpack.c.l.b16 %v5180
      %v5250 = vunpack.c.l.b16 %v5181
      %v5251 = vunpack.c.l.b16 %v5182
      %v5252 = vunpack.c.l.b16 %v5183
      %v5253 = vunpack.c.l.b16 %v5184
      %v5254 = vunpack.c.l.b16 %v5185
      %v5255 = vunpack.c.l.b16 %v5186
      %v5256 = vunpack.c.l.b16 %v5187
      %v5257 = vunpack.c.l.b16 %v5188
      %v5258 = vunpack.c.l.b16 %v5189
      %v5259 = vunpack.c.l.b16 %v5190
      %v5260 = vunpack.c.l.b16 %v5191
      %v5261 = vunpack.c.l.b16 %v5192
      %v5262 = vunpack.c.l.b16 %v5193
      %v5263 = vunpack.c.l.b16 %v5194
      %v5264 = vunpack.c.l.b16 %v5195
      %v5265 = vunpack.c.l.b16 %v5196
      %v5266 = vunpack.c.l.b16 %v5197
      %v5267 = vunpack.c.l.b16 %v5198
      %v5268 = vunpack.c.l.b16 %v5199
      %v5269 = vunpack.c.l.b16 %v5200
      %v5270 = vunpack.c.l.b16 %v5201
      %v5271 = vunpack.c.l.b16 %v5202
      %v5272 = vunpack.c.l.b16 %v5203
      %v5273 = vpack.c.b16 %v5242, %v5241
      %v5274 = vpack.c.b16 %v5244, %v5243
      %v5275 = vpack.c.b16 %v5246, %v5245
      %v5276 = vpack.c.b16 %v5248, %v5247
      %v5277 = vpack.c.b16 %v5250, %v5249
      %v5278 = vpack.c.b16 %v5252, %v5251
      %v5279 = vpack.c.b16 %v5254, %v5253
      %v5280 = vpack.c.b16 %v5256, %v5255
      %v5281 = vpack.c.b16 %v5258, %v5257
      %v5282 = vpack.c.b16 %v5260, %v5259
      %v5283 = vpack.c.b16 %v5262, %v5261
      %v5284 = vpack.c.b16 %v5264, %v5263
      %v5285 = vpack.c.b16 %v5266, %v5265
      %v5286 = vpack.c.b16 %v5268, %v5267
      %v5287 = vpack.c.b16 %v5270, %v5269
      %v5288 = vpack.c.b16 %v5272, %v5271
      %v5294 = vunpack.c.l.b16 %v5204
      %v5295 = vunpack.c.l.b16 %v5205
      %v5296 = vunpack.c.l.b16 %v5206
      %v5297 = vunpack.c.l.b16 %v5207
      %v5298 = vunpack.c.l.b16 %v5208
      %v5299 = vpack.c.b16 %v5295, %v5294
      %v5300 = vpack.c.b16 %v5297, %v5296
      %v5301 = vpack.c.b16 %v5298, %v5298
      %v5305 = vsel %vm511, %v5273, 0
      %v5308 = vsel %vm511, %v5274, 0
      %v5311 = vsel %vm511, %v5275, 0
      %v5314 = vsel %vm511, %v5276, 0
      %v5317 = vsel %vm511, %v5277, 0
      %v5320 = vsel %vm511, %v5278, 0
      %v5323 = vsel %vm511, %v5279, 0
      %v5326 = vsel %vm511, %v5280, 0
      %v5329 = vsel %vm511, %v5281, 0
      %v5332 = vsel %vm511, %v5282, 0
      %v5335 = vsel %vm511, %v5283, 0
      %v5338 = vsel %vm511, %v5284, 0
      %v5341 = vsel %vm511, %v5285, 0
      %v5344 = vsel %vm511, %v5286, 0
      %v5347 = vsel %vm511, %v5287, 0
      %v5350 = vsel %vm511, %v5288, 0
      %v5353 = vsel %vm572, %v5301, 0
      %5355 = vmatpush.bf16.msra.mxu0 0
      %5356 = vmatpush.bf16.msra.mxu0 0
      %5357 = vmatpush.bf16.msra.mxu0 0
      %5358 = vmatpush.bf16.msra.mxu0 0
      %5359 = vmatpush.bf16.msra.mxu0 0
      %5360 = vmatpush.bf16.msra.mxu0 %v5353
      %5361 = vmatpush.bf16.msra.mxu0 %v5300
      %5362 = vmatpush.bf16.msra.mxu0 %v5299
      %5363 = vmatmul.bf16.gmra.mxu0 %v5305
      %v5364 = vpop.f32.mrf.mxu0
      %v5365 = vadd.f32 0.0, %v5364
      %v5366 = vpop.f32.mrf.mxu0
      %v5367 = vadd.f32 0.0, %v5366
      %5368 = vmatmul.bf16.gmra.mxu0 %v5308
      %v5369 = vpop.f32.mrf.mxu0
      %v5370 = vadd.f32 0.0, %v5369
      %v5371 = vpop.f32.mrf.mxu0
      %v5372 = vadd.f32 0.0, %v5371
      %5373 = vmatmul.bf16.gmra.mxu0 %v5311
      %v5374 = vpop.f32.mrf.mxu0
      %v5375 = vadd.f32 0.0, %v5374
      %v5376 = vpop.f32.mrf.mxu0
      %v5377 = vadd.f32 0.0, %v5376
      %5378 = vmatmul.bf16.gmra.mxu0 %v5314
      %v5379 = vpop.f32.mrf.mxu0
      %v5380 = vadd.f32 0.0, %v5379
      %v5381 = vpop.f32.mrf.mxu0
      %v5382 = vadd.f32 0.0, %v5381
      %5383 = vmatmul.bf16.gmra.mxu0 %v5317
      %v5384 = vpop.f32.mrf.mxu0
      %v5385 = vadd.f32 0.0, %v5384
      %v5386 = vpop.f32.mrf.mxu0
      %v5387 = vadd.f32 0.0, %v5386
      %5388 = vmatmul.bf16.gmra.mxu0 %v5320
      %v5389 = vpop.f32.mrf.mxu0
      %v5390 = vadd.f32 0.0, %v5389
      %v5391 = vpop.f32.mrf.mxu0
      %v5392 = vadd.f32 0.0, %v5391
      %5393 = vmatmul.bf16.gmra.mxu0 %v5323
      %v5394 = vpop.f32.mrf.mxu0
      %v5395 = vadd.f32 0.0, %v5394
      %v5396 = vpop.f32.mrf.mxu0
      %v5397 = vadd.f32 0.0, %v5396
      %5398 = vmatmul.bf16.gmra.mxu0 %v5326
      %v5399 = vpop.f32.mrf.mxu0
      %v5400 = vadd.f32 0.0, %v5399
      %v5401 = vpop.f32.mrf.mxu0
      %v5402 = vadd.f32 0.0, %v5401
      %5403 = vmatmul.bf16.gmra.mxu0 %v5329
      %v5404 = vpop.f32.mrf.mxu0
      %v5405 = vadd.f32 0.0, %v5404
      %v5406 = vpop.f32.mrf.mxu0
      %v5407 = vadd.f32 0.0, %v5406
      %5408 = vmatmul.bf16.gmra.mxu0 %v5332
      %v5409 = vpop.f32.mrf.mxu0
      %v5410 = vadd.f32 0.0, %v5409
      %v5411 = vpop.f32.mrf.mxu0
      %v5412 = vadd.f32 0.0, %v5411
      %5413 = vmatmul.bf16.gmra.mxu0 %v5335
      %v5414 = vpop.f32.mrf.mxu0
      %v5415 = vadd.f32 0.0, %v5414
      %v5416 = vpop.f32.mrf.mxu0
      %v5417 = vadd.f32 0.0, %v5416
      %5418 = vmatmul.bf16.gmra.mxu0 %v5338
      %v5419 = vpop.f32.mrf.mxu0
      %v5420 = vadd.f32 0.0, %v5419
      %v5421 = vpop.f32.mrf.mxu0
      %v5422 = vadd.f32 0.0, %v5421
      %5423 = vmatmul.bf16.gmra.mxu0 %v5341
      %v5424 = vpop.f32.mrf.mxu0
      %v5425 = vadd.f32 0.0, %v5424
      %v5426 = vpop.f32.mrf.mxu0
      %v5427 = vadd.f32 0.0, %v5426
      %5428 = vmatmul.bf16.gmra.mxu0 %v5344
      %v5429 = vpop.f32.mrf.mxu0
      %v5430 = vadd.f32 0.0, %v5429
      %v5431 = vpop.f32.mrf.mxu0
      %v5432 = vadd.f32 0.0, %v5431
      %5433 = vmatmul.bf16.gmra.mxu0 %v5347
      %v5434 = vpop.f32.mrf.mxu0
      %v5435 = vadd.f32 0.0, %v5434
      %v5436 = vpop.f32.mrf.mxu0
      %v5437 = vadd.f32 0.0, %v5436
      %5438 = vmatmul.bf16.gmra.mxu0 %v5350
      %v5439 = vpop.f32.mrf.mxu0
      %v5440 = vadd.f32 0.0, %v5439
      %v5441 = vpop.f32.mrf.mxu0
      %v5442 = vadd.f32 0.0, %v5441
      %5443 = vdwg.mxu0
      %v5444 = vadd.f32 %v5139, %v5365
      %v5445 = vadd.f32 %v5140, %v5367
      %v5446 = vadd.f32 %v5141, %v5370
      %v5447 = vadd.f32 %v5142, %v5372
      %v5448 = vadd.f32 %v5143, %v5375
      %v5449 = vadd.f32 %v5144, %v5377
      %v5450 = vadd.f32 %v5145, %v5380
      %v5451 = vadd.f32 %v5146, %v5382
      %v5452 = vadd.f32 %v5147, %v5385
      %v5453 = vadd.f32 %v5148, %v5387
      %v5454 = vadd.f32 %v5149, %v5390
      %v5455 = vadd.f32 %v5150, %v5392
      %v5456 = vadd.f32 %v5151, %v5395
      %v5457 = vadd.f32 %v5152, %v5397
      %v5458 = vadd.f32 %v5153, %v5400
      %v5459 = vadd.f32 %v5154, %v5402
      %v5460 = vadd.f32 %v5155, %v5405
      %v5461 = vadd.f32 %v5156, %v5407
      %v5462 = vadd.f32 %v5157, %v5410
      %v5463 = vadd.f32 %v5158, %v5412
      %v5464 = vadd.f32 %v5159, %v5415
      %v5465 = vadd.f32 %v5160, %v5417
      %v5466 = vadd.f32 %v5161, %v5420
      %v5467 = vadd.f32 %v5162, %v5422
      %v5468 = vadd.f32 %v5163, %v5425
      %v5469 = vadd.f32 %v5164, %v5427
      %v5470 = vadd.f32 %v5165, %v5430
      %v5471 = vadd.f32 %v5166, %v5432
      %v5472 = vadd.f32 %v5167, %v5435
      %v5473 = vadd.f32 %v5168, %v5437
      %v5474 = vadd.f32 %v5169, %v5440
      %v5475 = vadd.f32 %v5170, %v5442
      %v5476 = vld [vmem:[%s7] sm:$0x1]
      %v5478 = vperm.slane %v5476, 0
      %v5480 = vadd.f32 %v5444, %v5478
      %v5481 = vadd.f32 %v5445, %v5478
      %v5482 = vadd.f32 %v5446, %v5478
      %v5483 = vadd.f32 %v5447, %v5478
      %v5484 = vadd.f32 %v5448, %v5478
      %v5485 = vadd.f32 %v5449, %v5478
      %v5486 = vadd.f32 %v5450, %v5478
      %v5487 = vadd.f32 %v5451, %v5478
      %v5488 = vadd.f32 %v5452, %v5478
      %v5489 = vadd.f32 %v5453, %v5478
      %v5490 = vadd.f32 %v5454, %v5478
      %v5491 = vadd.f32 %v5455, %v5478
      %v5492 = vadd.f32 %v5456, %v5478
      %v5493 = vadd.f32 %v5457, %v5478
      %v5494 = vadd.f32 %v5458, %v5478
      %v5495 = vadd.f32 %v5459, %v5478
      %v5496 = vadd.f32 %v5460, %v5478
      %v5497 = vadd.f32 %v5461, %v5478
      %v5498 = vadd.f32 %v5462, %v5478
      %v5499 = vadd.f32 %v5463, %v5478
      %v5500 = vadd.f32 %v5464, %v5478
      %v5501 = vadd.f32 %v5465, %v5478
      %v5502 = vadd.f32 %v5466, %v5478
      %v5503 = vadd.f32 %v5467, %v5478
      %v5504 = vadd.f32 %v5468, %v5478
      %v5505 = vadd.f32 %v5469, %v5478
      %v5506 = vadd.f32 %v5470, %v5478
      %v5507 = vadd.f32 %v5471, %v5478
      %v5508 = vadd.f32 %v5472, %v5478
      %v5509 = vadd.f32 %v5473, %v5478
      %v5510 = vadd.f32 %v5474, %v5478
      %v5511 = vadd.f32 %v5475, %v5478
      %v5512 = vunpack.c.l.bf16 %v850
      %v5513 = vunpack.c.l.bf16 %v851
      %v5514 = vunpack.c.l.bf16 %v852
      %v5515 = vunpack.c.l.bf16 %v853
      %v5516 = vunpack.c.l.bf16 %v854
      %v5517 = vunpack.c.l.bf16 %v855
      %v5518 = vunpack.c.l.bf16 %v856
      %v5519 = vunpack.c.l.bf16 %v857
      %v5520 = vunpack.c.l.bf16 %v858
      %v5521 = vunpack.c.l.bf16 %v859
      %v5522 = vunpack.c.l.bf16 %v860
      %v5523 = vunpack.c.l.bf16 %v861
      %v5524 = vunpack.c.l.bf16 %v862
      %v5525 = vunpack.c.l.bf16 %v863
      %v5526 = vunpack.c.l.bf16 %v864
      %v5527 = vunpack.c.l.bf16 %v865
      %v5528 = vunpack.c.l.bf16 %v866
      %v5529 = vunpack.c.l.bf16 %v867
      %v5530 = vunpack.c.l.bf16 %v868
      %v5531 = vunpack.c.l.bf16 %v869
      %v5532 = vunpack.c.l.bf16 %v870
      %v5533 = vunpack.c.l.bf16 %v871
      %v5534 = vunpack.c.l.bf16 %v872
      %v5535 = vunpack.c.l.bf16 %v873
      %v5536 = vunpack.c.l.bf16 %v874
      %v5537 = vunpack.c.l.bf16 %v875
      %v5538 = vunpack.c.l.bf16 %v876
      %v5539 = vunpack.c.l.bf16 %v877
      %v5540 = vunpack.c.l.bf16 %v878
      %v5541 = vunpack.c.l.bf16 %v879
      %v5542 = vunpack.c.l.bf16 %v880
      %v5543 = vunpack.c.l.bf16 %v881
      %v5544 = vadd.f32 %v5480, %v5512
      %v5545 = vadd.f32 %v5481, %v5513
      %v5546 = vadd.f32 %v5482, %v5514
      %v5547 = vadd.f32 %v5483, %v5515
      %v5548 = vadd.f32 %v5484, %v5516
      %v5549 = vadd.f32 %v5485, %v5517
      %v5550 = vadd.f32 %v5486, %v5518
      %v5551 = vadd.f32 %v5487, %v5519
      %v5552 = vadd.f32 %v5488, %v5520
      %v5553 = vadd.f32 %v5489, %v5521
      %v5554 = vadd.f32 %v5490, %v5522
      %v5555 = vadd.f32 %v5491, %v5523
      %v5556 = vadd.f32 %v5492, %v5524
      %v5557 = vadd.f32 %v5493, %v5525
      %v5558 = vadd.f32 %v5494, %v5526
      %v5559 = vadd.f32 %v5495, %v5527
      %v5560 = vadd.f32 %v5496, %v5528
      %v5561 = vadd.f32 %v5497, %v5529
      %v5562 = vadd.f32 %v5498, %v5530
      %v5563 = vadd.f32 %v5499, %v5531
      %v5564 = vadd.f32 %v5500, %v5532
      %v5565 = vadd.f32 %v5501, %v5533
      %v5566 = vadd.f32 %v5502, %v5534
      %v5567 = vadd.f32 %v5503, %v5535
      %v5568 = vadd.f32 %v5504, %v5536
      %v5569 = vadd.f32 %v5505, %v5537
      %v5570 = vadd.f32 %v5506, %v5538
      %v5571 = vadd.f32 %v5507, %v5539
      %v5572 = vadd.f32 %v5508, %v5540
      %v5573 = vadd.f32 %v5509, %v5541
      %v5574 = vadd.f32 %v5510, %v5542
      %v5575 = vadd.f32 %v5511, %v5543
      %v5576 = vmax.f32 %v5544, 0.0
      %v5577 = vmax.f32 %v5545, 0.0
      %v5578 = vmax.f32 %v5546, 0.0
      %v5579 = vmax.f32 %v5547, 0.0
      %v5580 = vmax.f32 %v5548, 0.0
      %v5581 = vmax.f32 %v5549, 0.0
      %v5582 = vmax.f32 %v5550, 0.0
      %v5583 = vmax.f32 %v5551, 0.0
      %v5584 = vmax.f32 %v5552, 0.0
      %v5585 = vmax.f32 %v5553, 0.0
      %v5586 = vmax.f32 %v5554, 0.0
      %v5587 = vmax.f32 %v5555, 0.0
      %v5588 = vmax.f32 %v5556, 0.0
      %v5589 = vmax.f32 %v5557, 0.0
      %v5590 = vmax.f32 %v5558, 0.0
      %v5591 = vmax.f32 %v5559, 0.0
      %v5592 = vmax.f32 %v5560, 0.0
      %v5593 = vmax.f32 %v5561, 0.0
      %v5594 = vmax.f32 %v5562, 0.0
      %v5595 = vmax.f32 %v5563, 0.0
      %v5596 = vmax.f32 %v5564, 0.0
      %v5597 = vmax.f32 %v5565, 0.0
      %v5598 = vmax.f32 %v5566, 0.0
      %v5599 = vmax.f32 %v5567, 0.0
      %v5600 = vmax.f32 %v5568, 0.0
      %v5601 = vmax.f32 %v5569, 0.0
      %v5602 = vmax.f32 %v5570, 0.0
      %v5603 = vmax.f32 %v5571, 0.0
      %v5604 = vmax.f32 %v5572, 0.0
      %v5605 = vmax.f32 %v5573, 0.0
      %v5606 = vmax.f32 %v5574, 0.0
      %v5607 = vmax.f32 %v5575, 0.0
      %v5608 = vpack.c.bf16 %v5576, %v5576
      %v5609 = vpack.c.bf16 %v5577, %v5577
      %v5610 = vpack.c.bf16 %v5578, %v5578
      %v5611 = vpack.c.bf16 %v5579, %v5579
      %v5612 = vpack.c.bf16 %v5580, %v5580
      %v5613 = vpack.c.bf16 %v5581, %v5581
      %v5614 = vpack.c.bf16 %v5582, %v5582
      %v5615 = vpack.c.bf16 %v5583, %v5583
      %v5616 = vpack.c.bf16 %v5584, %v5584
      %v5617 = vpack.c.bf16 %v5585, %v5585
      %v5618 = vpack.c.bf16 %v5586, %v5586
      %v5619 = vpack.c.bf16 %v5587, %v5587
      %v5620 = vpack.c.bf16 %v5588, %v5588
      %v5621 = vpack.c.bf16 %v5589, %v5589
      %v5622 = vpack.c.bf16 %v5590, %v5590
      %v5623 = vpack.c.bf16 %v5591, %v5591
      %v5624 = vpack.c.bf16 %v5592, %v5592
      %v5625 = vpack.c.bf16 %v5593, %v5593
      %v5626 = vpack.c.bf16 %v5594, %v5594
      %v5627 = vpack.c.bf16 %v5595, %v5595
      %v5628 = vpack.c.bf16 %v5596, %v5596
      %v5629 = vpack.c.bf16 %v5597, %v5597
      %v5630 = vpack.c.bf16 %v5598, %v5598
      %v5631 = vpack.c.bf16 %v5599, %v5599
      %v5632 = vpack.c.bf16 %v5600, %v5600
      %v5633 = vpack.c.bf16 %v5601, %v5601
      %v5634 = vpack.c.bf16 %v5602, %v5602
      %v5635 = vpack.c.bf16 %v5603, %v5603
      %v5636 = vpack.c.bf16 %v5604, %v5604
      %v5637 = vpack.c.bf16 %v5605, %v5605
      %v5638 = vpack.c.bf16 %v5606, %v5606
      %v5639 = vpack.c.bf16 %v5607, %v5607
      %5640 = vst [vmem:[%s343] sm:$0xf] %v5608
      %5641 = vst [vmem:[%s343 + $0x4] sm:$0xf] %v5609
      %5642 = vst [vmem:[%s343 + $0x8] sm:$0xf] %v5610
      %5643 = vst [vmem:[%s343 + $0xc] sm:$0xf] %v5611
      %5644 = vst [vmem:[%s343 + $0x10] sm:$0xf] %v5612
      %5645 = vst [vmem:[%s343 + $0x14] sm:$0xf] %v5613
      %5646 = vst [vmem:[%s343 + $0x18] sm:$0xf] %v5614
      %5647 = vst [vmem:[%s343 + $0x1c] sm:$0xf] %v5615
      %5648 = vst [vmem:[%s343 + $0x20] sm:$0xf] %v5616
      %5649 = vst [vmem:[%s343 + $0x24] sm:$0xf] %v5617
      %5650 = vst [vmem:[%s343 + $0x28] sm:$0xf] %v5618
      %5651 = vst [vmem:[%s343 + $0x2c] sm:$0xf] %v5619
      %5652 = vst [vmem:[%s343 + $0x30] sm:$0xf] %v5620
      %5653 = vst [vmem:[%s343 + $0x34] sm:$0xf] %v5621
      %5654 = vst [vmem:[%s343 + $0x38] sm:$0xf] %v5622
      %5655 = vst [vmem:[%s343 + $0x3c] sm:$0xf] %v5623
      %5656 = vst [vmem:[%s343 + $0x40] sm:$0xf] %v5624
      %5657 = vst [vmem:[%s343 + $0x44] sm:$0xf] %v5625
      %5658 = vst [vmem:[%s343 + $0x48] sm:$0xf] %v5626
      %5659 = vst [vmem:[%s343 + $0x4c] sm:$0xf] %v5627
      %5660 = vst [vmem:[%s343 + $0x50] sm:$0xf] %v5628
      %5661 = vst [vmem:[%s343 + $0x54] sm:$0xf] %v5629
      %5662 = vst [vmem:[%s343 + $0x58] sm:$0xf] %v5630
      %5663 = vst [vmem:[%s343 + $0x5c] sm:$0xf] %v5631
      %5664 = vst [vmem:[%s343 + $0x60] sm:$0xf] %v5632
      %5665 = vst [vmem:[%s343 + $0x64] sm:$0xf] %v5633
      %5666 = vst [vmem:[%s343 + $0x68] sm:$0xf] %v5634
      %5667 = vst [vmem:[%s343 + $0x6c] sm:$0xf] %v5635
      %5668 = vst [vmem:[%s343 + $0x70] sm:$0xf] %v5636
      %5669 = vst [vmem:[%s343 + $0x74] sm:$0xf] %v5637
      %5670 = vst [vmem:[%s343 + $0x78] sm:$0xf] %v5638
      %5671 = vst [vmem:[%s343 + $0x7c] sm:$0xf] %v5639
      %s5672 = smul.u32 16, %s24
      %p5673 = scmp.lt.s32.totalorder %s23, 1
      %s5674 = scalar_select %p5673, %s23, 1
      %p5675 = scmp.lt.s32.totalorder %s5672, 15
      %s5676 = scalar_select %p5675, %s5672, 15
      %s5677 = smul.addr %s5676, 2
      %s5678 = smul.addr %s5674, 32
      %s5679 = sadd.s32 %s5677, %s5678
      %s5680 = smul.addr %s5679, 4
      %s5681 = scalar_lea.vmem %s8, %s5680
      // Predicated region
      $region53: #{multires_bottleneck.1} parent=51 // pred_check
        %p5682 = pneg %p226
      $region54: #{multires_bottleneck.1} parent=51 // pred_check_branch
        %5684 = sbr.rel (%p5682) target = $region56
      $region55: #{multires_bottleneck.1} parent=51 // pred_region
        %s5685 = smul.u32 16, %s24
      $region56: #{multires_bottleneck.1} parent=51 // pred_fallthru
        _
    $region52: #{multires_bottleneck.1} parent=5 // pred_fallthru
      _
    %p5686 = scmp.le.s32.totalorder 2, %s14
    // Predicated region
    $region57: #{multires_bottleneck.1} parent=5 // pred_check
      %p5687 = pneg %p5686
    $region58: #{multires_bottleneck.1} parent=5 // pred_check_branch
      %5689 = sbr.rel (%p5687) target = $region60
    $region59: #{multires_bottleneck.1} parent=5 // pred_region
      %s5690 = ssub.s32 %s14, 2
      // Predicated region
      $region61: #{multires_bottleneck.1} parent=59 // pred_check
        %p5691 = pneg %p232
      $region62: #{multires_bottleneck.1} parent=59 // pred_check_branch
        %5693 = sbr.rel (%p5691) target = $region64
      $region63: #{multires_bottleneck.1} parent=59 // pred_region
        %s5694 = smul.u32 16, %s26
        %p5695 = scmp.lt.s32.totalorder %s25, 1
        %s5696 = scalar_select %p5695, %s25, 1
        %p5697 = scmp.lt.s32.totalorder %s5694, 15
        %s5698 = scalar_select %p5697, %s5694, 15
        %s5699 = smul.addr %s5698, 2
        %s5700 = smul.addr %s5696, 32
        %s5701 = sadd.s32 %s5699, %s5700
        %s5702 = smul.addr %s5701, 4
        %s5703 = scalar_lea.vmem %s8, %s5702
      $region64: #{multires_bottleneck.1} parent=59 // pred_fallthru
        _
    $region60: #{multires_bottleneck.1} parent=5 // pred_fallthru
      _
  $region6: #{multires_bottleneck.1} parent=0 // loop_footer
    %s18 = sadd.s32 1, %s14
  $region7: #{multires_bottleneck.1} parent=0 // loop_footer_branch
    %13 = sbr.rel target = $region3
  $region8: #{multires_bottleneck.1} parent=0 // loop_exit
    _

</llo_original>
